<compile_context>
chip_gen: v6e
topology: v6e:2x2x1
jax: 0.10.0
libtpu: 0.0.40
codegen_flags: <defaults>
</compile_context>

<pallas_src>
import functools

import numpy as np
import jax
import jax.numpy as jnp
from jax.experimental import pallas as pl
from jax.experimental.pallas import tpu as pltpu


# ------------------------------ small helpers -------------------------------

def _ceil_mult(v, m):
    return ((v + m - 1) // m) * m


def _pad_to(x, axis, target):
    cur = x.shape[axis]
    if cur == target:
        return x
    widths = [(0, 0)] * x.ndim
    widths[axis] = (0, target - cur)
    return jnp.pad(x, widths)


# ----------------------------- Pallas kernels ------------------------------

def _conv_accumulate(w_ref, x_ref, shifts, l_out_pad):
    """In-kernel im2col: sum of shifted sub-GEMMs == Conv2d(4x4, pad 0).

    w_ref : (n_sub, Cout_t, Cin_p)  bf16   per-offset weight slices
    x_ref : (n_phase, Cin_p, L_in)  bf16   flattened (phase-decimated) sample
    Returns the f32 accumulator (Cout_t, L_out).  Lanes outside the valid
    (OH, OW) window hold junk; the wrapper slices them off.
    """
    cout_t = w_ref.shape[1]
    acc = jnp.zeros((cout_t, l_out_pad), jnp.float32)
    for ph in range(x_ref.shape[0]):
        xv = x_ref[ph]                                   # (Cin_p, L_in), aligned load
        for idx, (p_i, sh) in enumerate(shifts):
            if p_i != ph:
                continue
            slab = xv[:, sh:sh + l_out_pad]              # static shifted window
            acc = acc + jnp.dot(w_ref[idx], slab,
                                preferred_element_type=jnp.float32)
    return acc


def _conv_bias_act_kernel(w_ref, b_ref, x_ref, o_ref, *, shifts, l_out_pad,
                          slope, apply_act):
    """o = [leaky_relu](conv(x) + b) for one sample / one Cout tile."""
    acc = _conv_accumulate(w_ref, x_ref, shifts, l_out_pad)
    acc = acc + b_ref[...]                               # (Cout_t, 1) lane-broadcast
    if apply_act:
        acc = jnp.where(acc >= 0.0, acc, slope * acc)
    o_ref[...] = acc.astype(o_ref.dtype)


def _conv_in_lrelu_kernel(w_ref, x_ref, m_ref, o_ref, *, shifts, l_out_pad,
                          count, eps, slope):
    """o = leaky_relu(instance_norm(conv(x))) for one sample / one Cout tile.

    m_ref is a {0,1} lane-validity mask so junk lanes never enter the stats.
    Stats are masked, two-pass (mean-shifted) in f32.
    """
    acc = _conv_accumulate(w_ref, x_ref, shifts, l_out_pad)
    mask = m_ref[...]                                    # (1, L_out) f32
    inv_n = jnp.float32(1.0 / count)
    mean = jnp.sum(acc * mask, axis=-1, keepdims=True) * inv_n
    diff = (acc - mean) * mask
    var = jnp.sum(diff * diff, axis=-1, keepdims=True) * inv_n
    y = (acc - mean) * jax.lax.rsqrt(var + eps)
    y = jnp.where(y >= 0.0, y, slope * y)
    o_ref[...] = y.astype(o_ref.dtype)


# ------------------------------ JAX wrapper ---------------------------------

def _conv2d_pallas(x, weight, bias, stride, *, mode, out_dtype,
                   slope=0.2, eps=1e-5):
    """Conv2d(kernel 4x4, padding 0) with fused epilogue via Pallas.

    mode in {'lrelu', 'in_lrelu', 'none'}.  Operands are cast to bf16 for the
    MXU; accumulation / epilogue stay f32 (expect ~1e-2 rel. error vs an f32
    PyTorch reference).
    """
    cout, cin, kh, kw = weight.shape
    n, c, h, w = x.shape
    assert c == cin and kh % stride == 0 and kw % stride == 0
    s = stride
    oh = (h - kh) // s + 1
    ow = (w - kw) // s + 1
    n_off = kh // s                                      # kernel offsets per phase axis
    hneed = oh + n_off - 1
    wneed = ow + n_off - 1

    # --- phase decimation (pure rearrangement, no duplication) --------------
    phases = []
    for p in range(s):
        for q in range(s):
            phases.append(x[:, :, p:p + s * (hneed - 1) + 1:s,
                                  q:q + s * (wneed - 1) + 1:s])
    xp = jnp.stack(phases, axis=1)                       # (N, s*s, Cin, Hneed, Wneed)

    l_out = oh * wneed
    l_out_pad = _ceil_mult(l_out, 128)
    shift_max = (n_off - 1) * (wneed + 1)
    l_in_pad = _ceil_mult(shift_max + l_out_pad, 128)
    cin_pad = _ceil_mult(cin, 8)

    xf = xp.reshape(n, s * s, cin, hneed * wneed).astype(jnp.bfloat16)
    xf = _pad_to(_pad_to(xf, 2, cin_pad), 3, l_in_pad)   # (N, s*s, Cin_p, L_in)

    # --- per-offset weight slices and their lane shifts ----------------------
    w_subs, shifts = [], []
    for p in range(s):
        for q in range(s):
            for di in range(n_off):
                for dj in range(n_off):
                    w_subs.append(weight[:, :, di * s + p, dj * s + q])
                    shifts.append((p * s + q, di * wneed + dj))
    n_sub = len(shifts)
    cout_pad = _ceil_mult(cout, 16) if cout <= 128 else _ceil_mult(cout, 128)
    cout_tile = min(cout_pad, 128)
    wk = jnp.stack(w_subs, axis=0)                       # (n_sub, Cout, Cin)
    wk = _pad_to(_pad_to(wk, 1, cout_pad), 2, cin_pad).astype(jnp.bfloat16)
    b2 = _pad_to(bias.reshape(cout, 1), 0, cout_pad).astype(jnp.float32)

    grid = (n, cout_pad // cout_tile)
    w_spec = pl.BlockSpec((n_sub, cout_tile, cin_pad), lambda b, t: (0, t, 0))
    x_spec = pl.BlockSpec((None, s * s, cin_pad, l_in_pad),
                          lambda b, t: (b, 0, 0, 0))
    o_spec = pl.BlockSpec((None, cout_tile, l_out_pad), lambda b, t: (b, t, 0))
    out_shape = jax.ShapeDtypeStruct((n, cout_pad, l_out_pad), out_dtype)

    osize = 2 if out_dtype == jnp.bfloat16 else 4
    vmem_est = (2 * s * s * cin_pad * l_in_pad * 2       # x block (double-buffered)
                + 2 * n_sub * cout_tile * cin_pad * 2    # weights
                + 2 * cout_tile * l_out_pad * osize      # output block
                + 2 * (cout_pad + l_out_pad) * 4         # bias / mask
                + (8 << 20))                             # scratch slack
    cp = pltpu.CompilerParams(
        dimension_semantics=("parallel", "parallel"),
        vmem_limit_bytes=int(min(max(vmem_est, 32 << 20), 64 << 20)))

    if mode == "in_lrelu":
        lane = np.arange(l_out_pad)
        mask = jnp.asarray(((lane < l_out) & ((lane % wneed) < ow))
                           .astype(np.float32)[None, :])
        m_spec = pl.BlockSpec((1, l_out_pad), lambda b, t: (0, 0))
        kern = functools.partial(_conv_in_lrelu_kernel, shifts=tuple(shifts),
                                 l_out_pad=l_out_pad, count=oh * ow,
                                 eps=eps, slope=slope)
        out = pl.pallas_call(
            kern, out_shape=out_shape, grid=grid,
            in_specs=[w_spec, x_spec, m_spec], out_specs=o_spec,
            compiler_params=cp)(wk, xf, mask)
    else:
        b_spec = pl.BlockSpec((cout_tile, 1), lambda b, t: (t, 0))
        kern = functools.partial(_conv_bias_act_kernel, shifts=tuple(shifts),
                                 l_out_pad=l_out_pad, slope=slope,
                                 apply_act=(mode == "lrelu"))
        out = pl.pallas_call(
            kern, out_shape=out_shape, grid=grid,
            in_specs=[w_spec, b_spec, x_spec], out_specs=o_spec,
            compiler_params=cp)(wk, b2, xf)

    # Drop Cout/lane padding and the junk columns (ow .. wneed); result is NCHW.
    out = out[:, :cout, :l_out].reshape(n, cout, oh, wneed)[:, :, :, :ow]
    return out


# ----------------------- Discriminator (params + fwd) -----------------------

def _conv_init(key, cout, cin, k, with_bias):
    """PyTorch-style uniform(-1/sqrt(fan_in), 1/sqrt(fan_in)) init."""
    kw_, kb_ = jax.random.split(key)
    fan_in = cin * k * k
    bound = 1.0 / (float(fan_in) ** 0.5)
    w = jax.random.uniform(kw_, (cout, cin, k, k), jnp.float32, -bound, bound)
    if with_bias:
        b = jax.random.uniform(kb_, (cout,), jnp.float32, -bound, bound)
    else:
        b = jnp.zeros((cout,), jnp.float32)
    return w, b


def init_discriminator_params(key, im_channel, num_filters_last, n_layers):
    keys = jax.random.split(key, n_layers + 2)
    params = []
    # Conv(im_channel -> nf, 4, stride 2, pad 0) + LeakyReLU(0.2)
    params.append(_conv_init(keys[0], num_filters_last, im_channel, 4, True)
                  + (2, "lrelu"))
    mult = 1
    for i in range(1, n_layers + 1):
        mult_last = mult
        mult = min(2 ** i, 8)
        stride = 2 if i < n_layers else 1
        # Conv(..., bias=False) + InstanceNorm2d + LeakyReLU(0.2)
        params.append(_conv_init(keys[i], num_filters_last * mult,
                                 num_filters_last * mult_last, 4, False)
                      + (stride, "in_lrelu"))
    # Final Conv(nf*mult -> 1, 4, stride 1, pad 0), bias, no activation.
    params.append(_conv_init(keys[-1], 1, num_filters_last * mult, 4, True)
                  + (1, "none"))
    return params


def discriminator_forward(params, x):
    for (wgt, b, stride, post) in params:
        out_dtype = jnp.float32 if post == "none" else jnp.bfloat16
        x = _conv2d_pallas(x, wgt, b, stride, mode=post, out_dtype=out_dtype)
    return x


# ----------------------------- f32 reference --------------------------------

def _reference_forward(params, x):
    y = x
    for (wgt, b, stride, post) in params:
        y = jax.lax.conv_general_dilated(
            y, wgt, (stride, stride), "VALID",
            dimension_numbers=("NCHW", "OIHW", "NCHW"))
        if post != "in_lrelu":
            y = y + b.reshape(1, -1, 1, 1)
        if post == "in_lrelu":
            mean = y.mean(axis=(2, 3), keepdims=True)
            var = y.var(axis=(2, 3), keepdims=True)
            y = (y - mean) * jax.lax.rsqrt(var + 1e-5)
        if post in ("lrelu", "in_lrelu"):
            y = jnp.where(y >= 0.0, y, 0.2 * y)
    return y


# ---------------------------------- main -------------------------------------

if __name__ == "__main__":
    args = {"im_channel": 3, "num_filters_last": 8, "n_layers": 1}

    key = jax.random.PRNGKey(0)
    k_params, k_x = jax.random.split(key)
    params = init_discriminator_params(
        k_params, args["im_channel"], args["num_filters_last"], args["n_layers"])

    # NCHW input; 4x4 pad-0 convs: 20 ->(s2) 9 ->(s1, IN+lrelu) 6 ->(s1) 3
    x = jax.random.normal(k_x, (2, args["im_channel"], 20, 20), jnp.float32)

    fwd = jax.jit(functools.partial(discriminator_forward, params))
    out = jax.block_until_ready(fwd(x))
    assert out.shape == (2, 1, 3, 3), out.shape

    # Loose-tolerance check vs an f32 XLA reference (bf16 MXU operands).
    ref = jax.block_until_ready(
        jax.jit(functools.partial(_reference_forward, params))(x))
    err = float(jnp.max(jnp.abs(out.astype(jnp.float32) - ref)))
    assert err < 0.25, f"max abs err vs f32 reference too large: {err}"

    print("KERNEL_OK")
</pallas_src>

<mosaic_0001>
module attributes {stable_mosaic.version = 11 : i64} {
  func.func @_conv_bias_act_kernel(%arg0: i32, %arg1: i32, %arg2: memref<16x16x8xbf16, #tpu.memory_space<vmem>>, %arg3: memref<16x1xf32, #tpu.memory_space<vmem>>, %arg4: memref<1x4x8x256xbf16, #tpu.memory_space<vmem>>, %arg5: memref<1x16x128xbf16, #tpu.memory_space<vmem>>) attributes {dimension_semantics = [#tpu.dimension_semantics<parallel>, #tpu.dimension_semantics<parallel>], iteration_bounds = array<i64: 2, 1>, scalar_prefetch = 0 : i64, scratch_operands = 0 : i64, tpu.core_type = #tpu.core_type<tc>, window_params = [{transform_indices = @transform_0, window_bounds = array<i64: 16, 16, 8>}, {transform_indices = @transform_1, window_bounds = array<i64: 16, 1>}, {transform_indices = @transform_2, window_bounds = array<i64: 1, 4, 8, 256>}, {transform_indices = @transform_3, window_bounds = array<i64: 1, 16, 128>}]} {
    %cst = arith.constant 0.000000e+00 : f32
    %0 = vector.broadcast %cst : f32 to vector<16x128xf32>
    %c0 = arith.constant 0 : index
    %c0_0 = arith.constant 0 : index
    %c0_1 = arith.constant 0 : index
    %c0_2 = arith.constant 0 : index
    %1 = vector.load %arg4[%c0, %c0_0, %c0_1, %c0_2] : memref<1x4x8x256xbf16, #tpu.memory_space<vmem>>, vector<1x1x8x256xbf16>
    %2 = vector.shape_cast %1 : vector<1x1x8x256xbf16> to vector<8x256xbf16>
    %3 = vector.extract_strided_slice %2 {offsets = [0, 0], sizes = [8, 128], strides = [1, 1]} : vector<8x256xbf16> to vector<8x128xbf16>
    %c0_3 = arith.constant 0 : index
    %c0_4 = arith.constant 0 : index
    %c0_5 = arith.constant 0 : index
    %4 = vector.load %arg2[%c0_3, %c0_4, %c0_5] : memref<16x16x8xbf16, #tpu.memory_space<vmem>>, vector<1x16x8xbf16>
    %5 = vector.shape_cast %4 : vector<1x16x8xbf16> to vector<16x8xbf16>
    %cst_6 = arith.constant dense<0.000000e+00> : vector<16x128xf32>
    %6 = tpu.matmul %5, %3, %cst_6 {dimension_numbers = #tpu.dot_dimension_numbers<[1], [0], [0], [1], [0, 0, 1, 1], [], []>} : vector<16x8xbf16>, vector<8x128xbf16>, vector<16x128xf32> -> vector<16x128xf32>
    %7 = arith.addf %0, %6 : vector<16x128xf32>
    %8 = vector.extract_strided_slice %2 {offsets = [0, 1], sizes = [8, 128], strides = [1, 1]} : vector<8x256xbf16> to vector<8x128xbf16>
    %c1 = arith.constant 1 : index
    %c0_7 = arith.constant 0 : index
    %c0_8 = arith.constant 0 : index
    %9 = vector.load %arg2[%c1, %c0_7, %c0_8] : memref<16x16x8xbf16, #tpu.memory_space<vmem>>, vector<1x16x8xbf16>
    %10 = vector.shape_cast %9 : vector<1x16x8xbf16> to vector<16x8xbf16>
    %cst_9 = arith.constant dense<0.000000e+00> : vector<16x128xf32>
    %11 = tpu.matmul %10, %8, %cst_9 {dimension_numbers = #tpu.dot_dimension_numbers<[1], [0], [0], [1], [0, 0, 1, 1], [], []>} : vector<16x8xbf16>, vector<8x128xbf16>, vector<16x128xf32> -> vector<16x128xf32>
    %12 = arith.addf %7, %11 : vector<16x128xf32>
    %13 = vector.extract_strided_slice %2 {offsets = [0, 10], sizes = [8, 128], strides = [1, 1]} : vector<8x256xbf16> to vector<8x128xbf16>
    %c2 = arith.constant 2 : index
    %c0_10 = arith.constant 0 : index
    %c0_11 = arith.constant 0 : index
    %14 = vector.load %arg2[%c2, %c0_10, %c0_11] : memref<16x16x8xbf16, #tpu.memory_space<vmem>>, vector<1x16x8xbf16>
    %15 = vector.shape_cast %14 : vector<1x16x8xbf16> to vector<16x8xbf16>
    %cst_12 = arith.constant dense<0.000000e+00> : vector<16x128xf32>
    %16 = tpu.matmul %15, %13, %cst_12 {dimension_numbers = #tpu.dot_dimension_numbers<[1], [0], [0], [1], [0, 0, 1, 1], [], []>} : vector<16x8xbf16>, vector<8x128xbf16>, vector<16x128xf32> -> vector<16x128xf32>
    %17 = arith.addf %12, %16 : vector<16x128xf32>
    %18 = vector.extract_strided_slice %2 {offsets = [0, 11], sizes = [8, 128], strides = [1, 1]} : vector<8x256xbf16> to vector<8x128xbf16>
    %c3 = arith.constant 3 : index
    %c0_13 = arith.constant 0 : index
    %c0_14 = arith.constant 0 : index
    %19 = vector.load %arg2[%c3, %c0_13, %c0_14] : memref<16x16x8xbf16, #tpu.memory_space<vmem>>, vector<1x16x8xbf16>
    %20 = vector.shape_cast %19 : vector<1x16x8xbf16> to vector<16x8xbf16>
    %cst_15 = arith.constant dense<0.000000e+00> : vector<16x128xf32>
    %21 = tpu.matmul %20, %18, %cst_15 {dimension_numbers = #tpu.dot_dimension_numbers<[1], [0], [0], [1], [0, 0, 1, 1], [], []>} : vector<16x8xbf16>, vector<8x128xbf16>, vector<16x128xf32> -> vector<16x128xf32>
    %22 = arith.addf %17, %21 : vector<16x128xf32>
    %c0_16 = arith.constant 0 : index
    %c1_17 = arith.constant 1 : index
    %c0_18 = arith.constant 0 : index
    %c0_19 = arith.constant 0 : index
    %23 = vector.load %arg4[%c0_16, %c1_17, %c0_18, %c0_19] : memref<1x4x8x256xbf16, #tpu.memory_space<vmem>>, vector<1x1x8x256xbf16>
    %24 = vector.shape_cast %23 : vector<1x1x8x256xbf16> to vector<8x256xbf16>
    %25 = vector.extract_strided_slice %24 {offsets = [0, 0], sizes = [8, 128], strides = [1, 1]} : vector<8x256xbf16> to vector<8x128xbf16>
    %c4 = arith.constant 4 : index
    %c0_20 = arith.constant 0 : index
    %c0_21 = arith.constant 0 : index
    %26 = vector.load %arg2[%c4, %c0_20, %c0_21] : memref<16x16x8xbf16, #tpu.memory_space<vmem>>, vector<1x16x8xbf16>
    %27 = vector.shape_cast %26 : vector<1x16x8xbf16> to vector<16x8xbf16>
    %cst_22 = arith.constant dense<0.000000e+00> : vector<16x128xf32>
    %28 = tpu.matmul %27, %25, %cst_22 {dimension_numbers = #tpu.dot_dimension_numbers<[1], [0], [0], [1], [0, 0, 1, 1], [], []>} : vector<16x8xbf16>, vector<8x128xbf16>, vector<16x128xf32> -> vector<16x128xf32>
    %29 = arith.addf %22, %28 : vector<16x128xf32>
    %30 = vector.extract_strided_slice %24 {offsets = [0, 1], sizes = [8, 128], strides = [1, 1]} : vector<8x256xbf16> to vector<8x128xbf16>
    %c5 = arith.constant 5 : index
    %c0_23 = arith.constant 0 : index
    %c0_24 = arith.constant 0 : index
    %31 = vector.load %arg2[%c5, %c0_23, %c0_24] : memref<16x16x8xbf16, #tpu.memory_space<vmem>>, vector<1x16x8xbf16>
    %32 = vector.shape_cast %31 : vector<1x16x8xbf16> to vector<16x8xbf16>
    %cst_25 = arith.constant dense<0.000000e+00> : vector<16x128xf32>
    %33 = tpu.matmul %32, %30, %cst_25 {dimension_numbers = #tpu.dot_dimension_numbers<[1], [0], [0], [1], [0, 0, 1, 1], [], []>} : vector<16x8xbf16>, vector<8x128xbf16>, vector<16x128xf32> -> vector<16x128xf32>
    %34 = arith.addf %29, %33 : vector<16x128xf32>
    %35 = vector.extract_strided_slice %24 {offsets = [0, 10], sizes = [8, 128], strides = [1, 1]} : vector<8x256xbf16> to vector<8x128xbf16>
    %c6 = arith.constant 6 : index
    %c0_26 = arith.constant 0 : index
    %c0_27 = arith.constant 0 : index
    %36 = vector.load %arg2[%c6, %c0_26, %c0_27] : memref<16x16x8xbf16, #tpu.memory_space<vmem>>, vector<1x16x8xbf16>
    %37 = vector.shape_cast %36 : vector<1x16x8xbf16> to vector<16x8xbf16>
    %cst_28 = arith.constant dense<0.000000e+00> : vector<16x128xf32>
    %38 = tpu.matmul %37, %35, %cst_28 {dimension_numbers = #tpu.dot_dimension_numbers<[1], [0], [0], [1], [0, 0, 1, 1], [], []>} : vector<16x8xbf16>, vector<8x128xbf16>, vector<16x128xf32> -> vector<16x128xf32>
    %39 = arith.addf %34, %38 : vector<16x128xf32>
    %40 = vector.extract_strided_slice %24 {offsets = [0, 11], sizes = [8, 128], strides = [1, 1]} : vector<8x256xbf16> to vector<8x128xbf16>
    %c7 = arith.constant 7 : index
    %c0_29 = arith.constant 0 : index
    %c0_30 = arith.constant 0 : index
    %41 = vector.load %arg2[%c7, %c0_29, %c0_30] : memref<16x16x8xbf16, #tpu.memory_space<vmem>>, vector<1x16x8xbf16>
    %42 = vector.shape_cast %41 : vector<1x16x8xbf16> to vector<16x8xbf16>
    %cst_31 = arith.constant dense<0.000000e+00> : vector<16x128xf32>
    %43 = tpu.matmul %42, %40, %cst_31 {dimension_numbers = #tpu.dot_dimension_numbers<[1], [0], [0], [1], [0, 0, 1, 1], [], []>} : vector<16x8xbf16>, vector<8x128xbf16>, vector<16x128xf32> -> vector<16x128xf32>
    %44 = arith.addf %39, %43 : vector<16x128xf32>
    %c0_32 = arith.constant 0 : index
    %c2_33 = arith.constant 2 : index
    %c0_34 = arith.constant 0 : index
    %c0_35 = arith.constant 0 : index
    %45 = vector.load %arg4[%c0_32, %c2_33, %c0_34, %c0_35] : memref<1x4x8x256xbf16, #tpu.memory_space<vmem>>, vector<1x1x8x256xbf16>
    %46 = vector.shape_cast %45 : vector<1x1x8x256xbf16> to vector<8x256xbf16>
    %47 = vector.extract_strided_slice %46 {offsets = [0, 0], sizes = [8, 128], strides = [1, 1]} : vector<8x256xbf16> to vector<8x128xbf16>
    %c8 = arith.constant 8 : index
    %c0_36 = arith.constant 0 : index
    %c0_37 = arith.constant 0 : index
    %48 = vector.load %arg2[%c8, %c0_36, %c0_37] : memref<16x16x8xbf16, #tpu.memory_space<vmem>>, vector<1x16x8xbf16>
    %49 = vector.shape_cast %48 : vector<1x16x8xbf16> to vector<16x8xbf16>
    %cst_38 = arith.constant dense<0.000000e+00> : vector<16x128xf32>
    %50 = tpu.matmul %49, %47, %cst_38 {dimension_numbers = #tpu.dot_dimension_numbers<[1], [0], [0], [1], [0, 0, 1, 1], [], []>} : vector<16x8xbf16>, vector<8x128xbf16>, vector<16x128xf32> -> vector<16x128xf32>
    %51 = arith.addf %44, %50 : vector<16x128xf32>
    %52 = vector.extract_strided_slice %46 {offsets = [0, 1], sizes = [8, 128], strides = [1, 1]} : vector<8x256xbf16> to vector<8x128xbf16>
    %c9 = arith.constant 9 : index
    %c0_39 = arith.constant 0 : index
    %c0_40 = arith.constant 0 : index
    %53 = vector.load %arg2[%c9, %c0_39, %c0_40] : memref<16x16x8xbf16, #tpu.memory_space<vmem>>, vector<1x16x8xbf16>
    %54 = vector.shape_cast %53 : vector<1x16x8xbf16> to vector<16x8xbf16>
    %cst_41 = arith.constant dense<0.000000e+00> : vector<16x128xf32>
    %55 = tpu.matmul %54, %52, %cst_41 {dimension_numbers = #tpu.dot_dimension_numbers<[1], [0], [0], [1], [0, 0, 1, 1], [], []>} : vector<16x8xbf16>, vector<8x128xbf16>, vector<16x128xf32> -> vector<16x128xf32>
    %56 = arith.addf %51, %55 : vector<16x128xf32>
    %57 = vector.extract_strided_slice %46 {offsets = [0, 10], sizes = [8, 128], strides = [1, 1]} : vector<8x256xbf16> to vector<8x128xbf16>
    %c10 = arith.constant 10 : index
    %c0_42 = arith.constant 0 : index
    %c0_43 = arith.constant 0 : index
    %58 = vector.load %arg2[%c10, %c0_42, %c0_43] : memref<16x16x8xbf16, #tpu.memory_space<vmem>>, vector<1x16x8xbf16>
    %59 = vector.shape_cast %58 : vector<1x16x8xbf16> to vector<16x8xbf16>
    %cst_44 = arith.constant dense<0.000000e+00> : vector<16x128xf32>
    %60 = tpu.matmul %59, %57, %cst_44 {dimension_numbers = #tpu.dot_dimension_numbers<[1], [0], [0], [1], [0, 0, 1, 1], [], []>} : vector<16x8xbf16>, vector<8x128xbf16>, vector<16x128xf32> -> vector<16x128xf32>
    %61 = arith.addf %56, %60 : vector<16x128xf32>
    %62 = vector.extract_strided_slice %46 {offsets = [0, 11], sizes = [8, 128], strides = [1, 1]} : vector<8x256xbf16> to vector<8x128xbf16>
    %c11 = arith.constant 11 : index
    %c0_45 = arith.constant 0 : index
    %c0_46 = arith.constant 0 : index
    %63 = vector.load %arg2[%c11, %c0_45, %c0_46] : memref<16x16x8xbf16, #tpu.memory_space<vmem>>, vector<1x16x8xbf16>
    %64 = vector.shape_cast %63 : vector<1x16x8xbf16> to vector<16x8xbf16>
    %cst_47 = arith.constant dense<0.000000e+00> : vector<16x128xf32>
    %65 = tpu.matmul %64, %62, %cst_47 {dimension_numbers = #tpu.dot_dimension_numbers<[1], [0], [0], [1], [0, 0, 1, 1], [], []>} : vector<16x8xbf16>, vector<8x128xbf16>, vector<16x128xf32> -> vector<16x128xf32>
    %66 = arith.addf %61, %65 : vector<16x128xf32>
    %c0_48 = arith.constant 0 : index
    %c3_49 = arith.constant 3 : index
    %c0_50 = arith.constant 0 : index
    %c0_51 = arith.constant 0 : index
    %67 = vector.load %arg4[%c0_48, %c3_49, %c0_50, %c0_51] : memref<1x4x8x256xbf16, #tpu.memory_space<vmem>>, vector<1x1x8x256xbf16>
    %68 = vector.shape_cast %67 : vector<1x1x8x256xbf16> to vector<8x256xbf16>
    %69 = vector.extract_strided_slice %68 {offsets = [0, 0], sizes = [8, 128], strides = [1, 1]} : vector<8x256xbf16> to vector<8x128xbf16>
    %c12 = arith.constant 12 : index
    %c0_52 = arith.constant 0 : index
    %c0_53 = arith.constant 0 : index
    %70 = vector.load %arg2[%c12, %c0_52, %c0_53] : memref<16x16x8xbf16, #tpu.memory_space<vmem>>, vector<1x16x8xbf16>
    %71 = vector.shape_cast %70 : vector<1x16x8xbf16> to vector<16x8xbf16>
    %cst_54 = arith.constant dense<0.000000e+00> : vector<16x128xf32>
    %72 = tpu.matmul %71, %69, %cst_54 {dimension_numbers = #tpu.dot_dimension_numbers<[1], [0], [0], [1], [0, 0, 1, 1], [], []>} : vector<16x8xbf16>, vector<8x128xbf16>, vector<16x128xf32> -> vector<16x128xf32>
    %73 = arith.addf %66, %72 : vector<16x128xf32>
    %74 = vector.extract_strided_slice %68 {offsets = [0, 1], sizes = [8, 128], strides = [1, 1]} : vector<8x256xbf16> to vector<8x128xbf16>
    %c13 = arith.constant 13 : index
    %c0_55 = arith.constant 0 : index
    %c0_56 = arith.constant 0 : index
    %75 = vector.load %arg2[%c13, %c0_55, %c0_56] : memref<16x16x8xbf16, #tpu.memory_space<vmem>>, vector<1x16x8xbf16>
    %76 = vector.shape_cast %75 : vector<1x16x8xbf16> to vector<16x8xbf16>
    %cst_57 = arith.constant dense<0.000000e+00> : vector<16x128xf32>
    %77 = tpu.matmul %76, %74, %cst_57 {dimension_numbers = #tpu.dot_dimension_numbers<[1], [0], [0], [1], [0, 0, 1, 1], [], []>} : vector<16x8xbf16>, vector<8x128xbf16>, vector<16x128xf32> -> vector<16x128xf32>
    %78 = arith.addf %73, %77 : vector<16x128xf32>
    %79 = vector.extract_strided_slice %68 {offsets = [0, 10], sizes = [8, 128], strides = [1, 1]} : vector<8x256xbf16> to vector<8x128xbf16>
    %c14 = arith.constant 14 : index
    %c0_58 = arith.constant 0 : index
    %c0_59 = arith.constant 0 : index
    %80 = vector.load %arg2[%c14, %c0_58, %c0_59] : memref<16x16x8xbf16, #tpu.memory_space<vmem>>, vector<1x16x8xbf16>
    %81 = vector.shape_cast %80 : vector<1x16x8xbf16> to vector<16x8xbf16>
    %cst_60 = arith.constant dense<0.000000e+00> : vector<16x128xf32>
    %82 = tpu.matmul %81, %79, %cst_60 {dimension_numbers = #tpu.dot_dimension_numbers<[1], [0], [0], [1], [0, 0, 1, 1], [], []>} : vector<16x8xbf16>, vector<8x128xbf16>, vector<16x128xf32> -> vector<16x128xf32>
    %83 = arith.addf %78, %82 : vector<16x128xf32>
    %84 = vector.extract_strided_slice %68 {offsets = [0, 11], sizes = [8, 128], strides = [1, 1]} : vector<8x256xbf16> to vector<8x128xbf16>
    %c15 = arith.constant 15 : index
    %c0_61 = arith.constant 0 : index
    %c0_62 = arith.constant 0 : index
    %85 = vector.load %arg2[%c15, %c0_61, %c0_62] : memref<16x16x8xbf16, #tpu.memory_space<vmem>>, vector<1x16x8xbf16>
    %86 = vector.shape_cast %85 : vector<1x16x8xbf16> to vector<16x8xbf16>
    %cst_63 = arith.constant dense<0.000000e+00> : vector<16x128xf32>
    %87 = tpu.matmul %86, %84, %cst_63 {dimension_numbers = #tpu.dot_dimension_numbers<[1], [0], [0], [1], [0, 0, 1, 1], [], []>} : vector<16x8xbf16>, vector<8x128xbf16>, vector<16x128xf32> -> vector<16x128xf32>
    %88 = arith.addf %83, %87 : vector<16x128xf32>
    %c0_64 = arith.constant 0 : index
    %c0_65 = arith.constant 0 : index
    %89 = vector.load %arg3[%c0_64, %c0_65] : memref<16x1xf32, #tpu.memory_space<vmem>>, vector<16x1xf32>
    %90 = vector.broadcast %89 : vector<16x1xf32> to vector<16x128xf32>
    %91 = arith.addf %88, %90 : vector<16x128xf32>
    %cst_66 = arith.constant 0.000000e+00 : f32
    %92 = vector.broadcast %cst_66 : f32 to vector<16x128xf32>
    %93 = arith.cmpf oge, %91, %92 : vector<16x128xf32>
    %cst_67 = arith.constant 2.000000e-01 : f32
    %94 = vector.broadcast %cst_67 : f32 to vector<16x128xf32>
    %95 = arith.mulf %94, %91 : vector<16x128xf32>
    %96 = arith.select %93, %91, %95 : vector<16x128xi1>, vector<16x128xf32>
    %97 = arith.truncf %96 : vector<16x128xf32> to vector<16x128xbf16>
    %c0_68 = arith.constant 0 : index
    %c0_69 = arith.constant 0 : index
    %c0_70 = arith.constant 0 : index
    %98 = vector.load %arg5[%c0_68, %c0_69, %c0_70] : memref<1x16x128xbf16, #tpu.memory_space<vmem>>, vector<1x16x128xbf16>
    %99 = vector.shape_cast %98 : vector<1x16x128xbf16> to vector<16x128xbf16>
    %100 = vector.shape_cast %97 : vector<16x128xbf16> to vector<1x16x128xbf16>
    tpu.vector_store %arg5[%c0_68, %c0_69, %c0_70], %100 {strides = array<i32>} : memref<1x16x128xbf16, #tpu.memory_space<vmem>>, vector<1x16x128xbf16>,
    return
  }
  func.func @transform_0(%arg0: i32, %arg1: i32) -> (i32, i32, i32) {
    %c0_i32 = arith.constant 0 : i32
    %c0_i32_0 = arith.constant 0 : i32
    %c0_i32_1 = arith.constant 0 : i32
    return %c0_i32, %arg1, %c0_i32_0 : i32, i32, i32
  }
  func.func @transform_1(%arg0: i32, %arg1: i32) -> (i32, i32) {
    %c0_i32 = arith.constant 0 : i32
    %c0_i32_0 = arith.constant 0 : i32
    return %arg1, %c0_i32 : i32, i32
  }
  func.func @transform_2(%arg0: i32, %arg1: i32) -> (i32, i32, i32, i32) {
    %c0_i32 = arith.constant 0 : i32
    %c0_i32_0 = arith.constant 0 : i32
    %c0_i32_1 = arith.constant 0 : i32
    %c0_i32_2 = arith.constant 0 : i32
    return %arg0, %c0_i32, %c0_i32_0, %c0_i32_1 : i32, i32, i32, i32
  }
  func.func @transform_3(%arg0: i32, %arg1: i32) -> (i32, i32, i32) {
    %c0_i32 = arith.constant 0 : i32
    %c0_i32_0 = arith.constant 0 : i32
    return %arg0, %arg1, %c0_i32 : i32, i32, i32
  }
}

module attributes {stable_mosaic.version = 11 : i64} {
  func.func @_conv_in_lrelu_kernel(%arg0: i32, %arg1: i32, %arg2: memref<16x16x8xbf16, #tpu.memory_space<vmem>>, %arg3: memref<1x1x8x256xbf16, #tpu.memory_space<vmem>>, %arg4: memref<1x128xf32, #tpu.memory_space<vmem>>, %arg5: memref<1x16x128xbf16, #tpu.memory_space<vmem>>) attributes {dimension_semantics = [#tpu.dimension_semantics<parallel>, #tpu.dimension_semantics<parallel>], iteration_bounds = array<i64: 2, 1>, scalar_prefetch = 0 : i64, scratch_operands = 0 : i64, tpu.core_type = #tpu.core_type<tc>, window_params = [{transform_indices = @transform_0, window_bounds = array<i64: 16, 16, 8>}, {transform_indices = @transform_1, window_bounds = array<i64: 1, 1, 8, 256>}, {pipeline_mode = #tpu.pipeline_mode<synchronous>, transform_indices = @transform_2, window_bounds = array<i64: 1, 128>}, {transform_indices = @transform_3, window_bounds = array<i64: 1, 16, 128>}]} {
    %cst = arith.constant 0.000000e+00 : f32
    %0 = vector.broadcast %cst : f32 to vector<16x128xf32>
    %c0 = arith.constant 0 : index
    %c0_0 = arith.constant 0 : index
    %c0_1 = arith.constant 0 : index
    %c0_2 = arith.constant 0 : index
    %1 = vector.load %arg3[%c0, %c0_0, %c0_1, %c0_2] : memref<1x1x8x256xbf16, #tpu.memory_space<vmem>>, vector<1x1x8x256xbf16>
    %2 = vector.shape_cast %1 : vector<1x1x8x256xbf16> to vector<8x256xbf16>
    %3 = vector.extract_strided_slice %2 {offsets = [0, 0], sizes = [8, 128], strides = [1, 1]} : vector<8x256xbf16> to vector<8x128xbf16>
    %c0_3 = arith.constant 0 : index
    %c0_4 = arith.constant 0 : index
    %c0_5 = arith.constant 0 : index
    %4 = vector.load %arg2[%c0_3, %c0_4, %c0_5] : memref<16x16x8xbf16, #tpu.memory_space<vmem>>, vector<1x16x8xbf16>
    %5 = vector.shape_cast %4 : vector<1x16x8xbf16> to vector<16x8xbf16>
    %cst_6 = arith.constant dense<0.000000e+00> : vector<16x128xf32>
    %6 = tpu.matmul %5, %3, %cst_6 {dimension_numbers = #tpu.dot_dimension_numbers<[1], [0], [0], [1], [0, 0, 1, 1], [], []>} : vector<16x8xbf16>, vector<8x128xbf16>, vector<16x128xf32> -> vector<16x128xf32>
    %7 = arith.addf %0, %6 : vector<16x128xf32>
    %8 = vector.extract_strided_slice %2 {offsets = [0, 1], sizes = [8, 128], strides = [1, 1]} : vector<8x256xbf16> to vector<8x128xbf16>
    %c1 = arith.constant 1 : index
    %c0_7 = arith.constant 0 : index
    %c0_8 = arith.constant 0 : index
    %9 = vector.load %arg2[%c1, %c0_7, %c0_8] : memref<16x16x8xbf16, #tpu.memory_space<vmem>>, vector<1x16x8xbf16>
    %10 = vector.shape_cast %9 : vector<1x16x8xbf16> to vector<16x8xbf16>
    %cst_9 = arith.constant dense<0.000000e+00> : vector<16x128xf32>
    %11 = tpu.matmul %10, %8, %cst_9 {dimension_numbers = #tpu.dot_dimension_numbers<[1], [0], [0], [1], [0, 0, 1, 1], [], []>} : vector<16x8xbf16>, vector<8x128xbf16>, vector<16x128xf32> -> vector<16x128xf32>
    %12 = arith.addf %7, %11 : vector<16x128xf32>
    %13 = vector.extract_strided_slice %2 {offsets = [0, 2], sizes = [8, 128], strides = [1, 1]} : vector<8x256xbf16> to vector<8x128xbf16>
    %c2 = arith.constant 2 : index
    %c0_10 = arith.constant 0 : index
    %c0_11 = arith.constant 0 : index
    %14 = vector.load %arg2[%c2, %c0_10, %c0_11] : memref<16x16x8xbf16, #tpu.memory_space<vmem>>, vector<1x16x8xbf16>
    %15 = vector.shape_cast %14 : vector<1x16x8xbf16> to vector<16x8xbf16>
    %cst_12 = arith.constant dense<0.000000e+00> : vector<16x128xf32>
    %16 = tpu.matmul %15, %13, %cst_12 {dimension_numbers = #tpu.dot_dimension_numbers<[1], [0], [0], [1], [0, 0, 1, 1], [], []>} : vector<16x8xbf16>, vector<8x128xbf16>, vector<16x128xf32> -> vector<16x128xf32>
    %17 = arith.addf %12, %16 : vector<16x128xf32>
    %18 = vector.extract_strided_slice %2 {offsets = [0, 3], sizes = [8, 128], strides = [1, 1]} : vector<8x256xbf16> to vector<8x128xbf16>
    %c3 = arith.constant 3 : index
    %c0_13 = arith.constant 0 : index
    %c0_14 = arith.constant 0 : index
    %19 = vector.load %arg2[%c3, %c0_13, %c0_14] : memref<16x16x8xbf16, #tpu.memory_space<vmem>>, vector<1x16x8xbf16>
    %20 = vector.shape_cast %19 : vector<1x16x8xbf16> to vector<16x8xbf16>
    %cst_15 = arith.constant dense<0.000000e+00> : vector<16x128xf32>
    %21 = tpu.matmul %20, %18, %cst_15 {dimension_numbers = #tpu.dot_dimension_numbers<[1], [0], [0], [1], [0, 0, 1, 1], [], []>} : vector<16x8xbf16>, vector<8x128xbf16>, vector<16x128xf32> -> vector<16x128xf32>
    %22 = arith.addf %17, %21 : vector<16x128xf32>
    %23 = vector.extract_strided_slice %2 {offsets = [0, 9], sizes = [8, 128], strides = [1, 1]} : vector<8x256xbf16> to vector<8x128xbf16>
    %c4 = arith.constant 4 : index
    %c0_16 = arith.constant 0 : index
    %c0_17 = arith.constant 0 : index
    %24 = vector.load %arg2[%c4, %c0_16, %c0_17] : memref<16x16x8xbf16, #tpu.memory_space<vmem>>, vector<1x16x8xbf16>
    %25 = vector.shape_cast %24 : vector<1x16x8xbf16> to vector<16x8xbf16>
    %cst_18 = arith.constant dense<0.000000e+00> : vector<16x128xf32>
    %26 = tpu.matmul %25, %23, %cst_18 {dimension_numbers = #tpu.dot_dimension_numbers<[1], [0], [0], [1], [0, 0, 1, 1], [], []>} : vector<16x8xbf16>, vector<8x128xbf16>, vector<16x128xf32> -> vector<16x128xf32>
    %27 = arith.addf %22, %26 : vector<16x128xf32>
    %28 = vector.extract_strided_slice %2 {offsets = [0, 10], sizes = [8, 128], strides = [1, 1]} : vector<8x256xbf16> to vector<8x128xbf16>
    %c5 = arith.constant 5 : index
    %c0_19 = arith.constant 0 : index
    %c0_20 = arith.constant 0 : index
    %29 = vector.load %arg2[%c5, %c0_19, %c0_20] : memref<16x16x8xbf16, #tpu.memory_space<vmem>>, vector<1x16x8xbf16>
    %30 = vector.shape_cast %29 : vector<1x16x8xbf16> to vector<16x8xbf16>
    %cst_21 = arith.constant dense<0.000000e+00> : vector<16x128xf32>
    %31 = tpu.matmul %30, %28, %cst_21 {dimension_numbers = #tpu.dot_dimension_numbers<[1], [0], [0], [1], [0, 0, 1, 1], [], []>} : vector<16x8xbf16>, vector<8x128xbf16>, vector<16x128xf32> -> vector<16x128xf32>
    %32 = arith.addf %27, %31 : vector<16x128xf32>
    %33 = vector.extract_strided_slice %2 {offsets = [0, 11], sizes = [8, 128], strides = [1, 1]} : vector<8x256xbf16> to vector<8x128xbf16>
    %c6 = arith.constant 6 : index
    %c0_22 = arith.constant 0 : index
    %c0_23 = arith.constant 0 : index
    %34 = vector.load %arg2[%c6, %c0_22, %c0_23] : memref<16x16x8xbf16, #tpu.memory_space<vmem>>, vector<1x16x8xbf16>
    %35 = vector.shape_cast %34 : vector<1x16x8xbf16> to vector<16x8xbf16>
    %cst_24 = arith.constant dense<0.000000e+00> : vector<16x128xf32>
    %36 = tpu.matmul %35, %33, %cst_24 {dimension_numbers = #tpu.dot_dimension_numbers<[1], [0], [0], [1], [0, 0, 1, 1], [], []>} : vector<16x8xbf16>, vector<8x128xbf16>, vector<16x128xf32> -> vector<16x128xf32>
    %37 = arith.addf %32, %36 : vector<16x128xf32>
    %38 = vector.extract_strided_slice %2 {offsets = [0, 12], sizes = [8, 128], strides = [1, 1]} : vector<8x256xbf16> to vector<8x128xbf16>
    %c7 = arith.constant 7 : index
    %c0_25 = arith.constant 0 : index
    %c0_26 = arith.constant 0 : index
    %39 = vector.load %arg2[%c7, %c0_25, %c0_26] : memref<16x16x8xbf16, #tpu.memory_space<vmem>>, vector<1x16x8xbf16>
    %40 = vector.shape_cast %39 : vector<1x16x8xbf16> to vector<16x8xbf16>
    %cst_27 = arith.constant dense<0.000000e+00> : vector<16x128xf32>
    %41 = tpu.matmul %40, %38, %cst_27 {dimension_numbers = #tpu.dot_dimension_numbers<[1], [0], [0], [1], [0, 0, 1, 1], [], []>} : vector<16x8xbf16>, vector<8x128xbf16>, vector<16x128xf32> -> vector<16x128xf32>
    %42 = arith.addf %37, %41 : vector<16x128xf32>
    %43 = vector.extract_strided_slice %2 {offsets = [0, 18], sizes = [8, 128], strides = [1, 1]} : vector<8x256xbf16> to vector<8x128xbf16>
    %c8 = arith.constant 8 : index
    %c0_28 = arith.constant 0 : index
    %c0_29 = arith.constant 0 : index
    %44 = vector.load %arg2[%c8, %c0_28, %c0_29] : memref<16x16x8xbf16, #tpu.memory_space<vmem>>, vector<1x16x8xbf16>
    %45 = vector.shape_cast %44 : vector<1x16x8xbf16> to vector<16x8xbf16>
    %cst_30 = arith.constant dense<0.000000e+00> : vector<16x128xf32>
    %46 = tpu.matmul %45, %43, %cst_30 {dimension_numbers = #tpu.dot_dimension_numbers<[1], [0], [0], [1], [0, 0, 1, 1], [], []>} : vector<16x8xbf16>, vector<8x128xbf16>, vector<16x128xf32> -> vector<16x128xf32>
    %47 = arith.addf %42, %46 : vector<16x128xf32>
    %48 = vector.extract_strided_slice %2 {offsets = [0, 19], sizes = [8, 128], strides = [1, 1]} : vector<8x256xbf16> to vector<8x128xbf16>
    %c9 = arith.constant 9 : index
    %c0_31 = arith.constant 0 : index
    %c0_32 = arith.constant 0 : index
    %49 = vector.load %arg2[%c9, %c0_31, %c0_32] : memref<16x16x8xbf16, #tpu.memory_space<vmem>>, vector<1x16x8xbf16>
    %50 = vector.shape_cast %49 : vector<1x16x8xbf16> to vector<16x8xbf16>
    %cst_33 = arith.constant dense<0.000000e+00> : vector<16x128xf32>
    %51 = tpu.matmul %50, %48, %cst_33 {dimension_numbers = #tpu.dot_dimension_numbers<[1], [0], [0], [1], [0, 0, 1, 1], [], []>} : vector<16x8xbf16>, vector<8x128xbf16>, vector<16x128xf32> -> vector<16x128xf32>
    %52 = arith.addf %47, %51 : vector<16x128xf32>
    %53 = vector.extract_strided_slice %2 {offsets = [0, 20], sizes = [8, 128], strides = [1, 1]} : vector<8x256xbf16> to vector<8x128xbf16>
    %c10 = arith.constant 10 : index
    %c0_34 = arith.constant 0 : index
    %c0_35 = arith.constant 0 : index
    %54 = vector.load %arg2[%c10, %c0_34, %c0_35] : memref<16x16x8xbf16, #tpu.memory_space<vmem>>, vector<1x16x8xbf16>
    %55 = vector.shape_cast %54 : vector<1x16x8xbf16> to vector<16x8xbf16>
    %cst_36 = arith.constant dense<0.000000e+00> : vector<16x128xf32>
    %56 = tpu.matmul %55, %53, %cst_36 {dimension_numbers = #tpu.dot_dimension_numbers<[1], [0], [0], [1], [0, 0, 1, 1], [], []>} : vector<16x8xbf16>, vector<8x128xbf16>, vector<16x128xf32> -> vector<16x128xf32>
    %57 = arith.addf %52, %56 : vector<16x128xf32>
    %58 = vector.extract_strided_slice %2 {offsets = [0, 21], sizes = [8, 128], strides = [1, 1]} : vector<8x256xbf16> to vector<8x128xbf16>
    %c11 = arith.constant 11 : index
    %c0_37 = arith.constant 0 : index
    %c0_38 = arith.constant 0 : index
    %59 = vector.load %arg2[%c11, %c0_37, %c0_38] : memref<16x16x8xbf16, #tpu.memory_space<vmem>>, vector<1x16x8xbf16>
    %60 = vector.shape_cast %59 : vector<1x16x8xbf16> to vector<16x8xbf16>
    %cst_39 = arith.constant dense<0.000000e+00> : vector<16x128xf32>
    %61 = tpu.matmul %60, %58, %cst_39 {dimension_numbers = #tpu.dot_dimension_numbers<[1], [0], [0], [1], [0, 0, 1, 1], [], []>} : vector<16x8xbf16>, vector<8x128xbf16>, vector<16x128xf32> -> vector<16x128xf32>
    %62 = arith.addf %57, %61 : vector<16x128xf32>
    %63 = vector.extract_strided_slice %2 {offsets = [0, 27], sizes = [8, 128], strides = [1, 1]} : vector<8x256xbf16> to vector<8x128xbf16>
    %c12 = arith.constant 12 : index
    %c0_40 = arith.constant 0 : index
    %c0_41 = arith.constant 0 : index
    %64 = vector.load %arg2[%c12, %c0_40, %c0_41] : memref<16x16x8xbf16, #tpu.memory_space<vmem>>, vector<1x16x8xbf16>
    %65 = vector.shape_cast %64 : vector<1x16x8xbf16> to vector<16x8xbf16>
    %cst_42 = arith.constant dense<0.000000e+00> : vector<16x128xf32>
    %66 = tpu.matmul %65, %63, %cst_42 {dimension_numbers = #tpu.dot_dimension_numbers<[1], [0], [0], [1], [0, 0, 1, 1], [], []>} : vector<16x8xbf16>, vector<8x128xbf16>, vector<16x128xf32> -> vector<16x128xf32>
    %67 = arith.addf %62, %66 : vector<16x128xf32>
    %68 = vector.extract_strided_slice %2 {offsets = [0, 28], sizes = [8, 128], strides = [1, 1]} : vector<8x256xbf16> to vector<8x128xbf16>
    %c13 = arith.constant 13 : index
    %c0_43 = arith.constant 0 : index
    %c0_44 = arith.constant 0 : index
    %69 = vector.load %arg2[%c13, %c0_43, %c0_44] : memref<16x16x8xbf16, #tpu.memory_space<vmem>>, vector<1x16x8xbf16>
    %70 = vector.shape_cast %69 : vector<1x16x8xbf16> to vector<16x8xbf16>
    %cst_45 = arith.constant dense<0.000000e+00> : vector<16x128xf32>
    %71 = tpu.matmul %70, %68, %cst_45 {dimension_numbers = #tpu.dot_dimension_numbers<[1], [0], [0], [1], [0, 0, 1, 1], [], []>} : vector<16x8xbf16>, vector<8x128xbf16>, vector<16x128xf32> -> vector<16x128xf32>
    %72 = arith.addf %67, %71 : vector<16x128xf32>
    %73 = vector.extract_strided_slice %2 {offsets = [0, 29], sizes = [8, 128], strides = [1, 1]} : vector<8x256xbf16> to vector<8x128xbf16>
    %c14 = arith.constant 14 : index
    %c0_46 = arith.constant 0 : index
    %c0_47 = arith.constant 0 : index
    %74 = vector.load %arg2[%c14, %c0_46, %c0_47] : memref<16x16x8xbf16, #tpu.memory_space<vmem>>, vector<1x16x8xbf16>
    %75 = vector.shape_cast %74 : vector<1x16x8xbf16> to vector<16x8xbf16>
    %cst_48 = arith.constant dense<0.000000e+00> : vector<16x128xf32>
    %76 = tpu.matmul %75, %73, %cst_48 {dimension_numbers = #tpu.dot_dimension_numbers<[1], [0], [0], [1], [0, 0, 1, 1], [], []>} : vector<16x8xbf16>, vector<8x128xbf16>, vector<16x128xf32> -> vector<16x128xf32>
    %77 = arith.addf %72, %76 : vector<16x128xf32>
    %78 = vector.extract_strided_slice %2 {offsets = [0, 30], sizes = [8, 128], strides = [1, 1]} : vector<8x256xbf16> to vector<8x128xbf16>
    %c15 = arith.constant 15 : index
    %c0_49 = arith.constant 0 : index
    %c0_50 = arith.constant 0 : index
    %79 = vector.load %arg2[%c15, %c0_49, %c0_50] : memref<16x16x8xbf16, #tpu.memory_space<vmem>>, vector<1x16x8xbf16>
    %80 = vector.shape_cast %79 : vector<1x16x8xbf16> to vector<16x8xbf16>
    %cst_51 = arith.constant dense<0.000000e+00> : vector<16x128xf32>
    %81 = tpu.matmul %80, %78, %cst_51 {dimension_numbers = #tpu.dot_dimension_numbers<[1], [0], [0], [1], [0, 0, 1, 1], [], []>} : vector<16x8xbf16>, vector<8x128xbf16>, vector<16x128xf32> -> vector<16x128xf32>
    %82 = arith.addf %77, %81 : vector<16x128xf32>
    %c0_52 = arith.constant 0 : index
    %c0_53 = arith.constant 0 : index
    %83 = vector.load %arg4[%c0_52, %c0_53] : memref<1x128xf32, #tpu.memory_space<vmem>>, vector<1x128xf32>
    %84 = vector.broadcast %83 : vector<1x128xf32> to vector<16x128xf32>
    %85 = arith.mulf %82, %84 : vector<16x128xf32>
    %cst_54 = arith.constant dense<0.000000e+00> : vector<16xf32>
    %86 = vector.multi_reduction <add>, %85, %cst_54 [1] : vector<16x128xf32> to vector<16xf32>
    %87 = vector.shape_cast %86 : vector<16xf32> to vector<16x1xf32>
    %cst_55 = arith.constant 0.027777778 : f32
    %88 = vector.broadcast %cst_55 : f32 to vector<16x1xf32>
    %89 = arith.mulf %87, %88 : vector<16x1xf32>
    %90 = vector.broadcast %89 : vector<16x1xf32> to vector<16x128xf32>
    %91 = arith.subf %82, %90 : vector<16x128xf32>
    %92 = vector.broadcast %83 : vector<1x128xf32> to vector<16x128xf32>
    %93 = arith.mulf %91, %92 : vector<16x128xf32>
    %94 = arith.mulf %93, %93 : vector<16x128xf32>
    %cst_56 = arith.constant dense<0.000000e+00> : vector<16xf32>
    %95 = vector.multi_reduction <add>, %94, %cst_56 [1] : vector<16x128xf32> to vector<16xf32>
    %96 = vector.shape_cast %95 : vector<16xf32> to vector<16x1xf32>
    %cst_57 = arith.constant 0.027777778 : f32
    %97 = vector.broadcast %cst_57 : f32 to vector<16x1xf32>
    %98 = arith.mulf %96, %97 : vector<16x1xf32>
    %99 = vector.broadcast %89 : vector<16x1xf32> to vector<16x128xf32>
    %100 = arith.subf %82, %99 : vector<16x128xf32>
    %cst_58 = arith.constant 9.99999974E-6 : f32
    %101 = vector.broadcast %cst_58 : f32 to vector<16x1xf32>
    %102 = arith.addf %98, %101 : vector<16x1xf32>
    %103 = math.rsqrt %102 : vector<16x1xf32>
    %104 = vector.broadcast %103 : vector<16x1xf32> to vector<16x128xf32>
    %105 = arith.mulf %100, %104 : vector<16x128xf32>
    %cst_59 = arith.constant 0.000000e+00 : f32
    %106 = vector.broadcast %cst_59 : f32 to vector<16x128xf32>
    %107 = arith.cmpf oge, %105, %106 : vector<16x128xf32>
    %cst_60 = arith.constant 2.000000e-01 : f32
    %108 = vector.broadcast %cst_60 : f32 to vector<16x128xf32>
    %109 = arith.mulf %108, %105 : vector<16x128xf32>
    %110 = arith.select %107, %105, %109 : vector<16x128xi1>, vector<16x128xf32>
    %111 = arith.truncf %110 : vector<16x128xf32> to vector<16x128xbf16>
    %c0_61 = arith.constant 0 : index
    %c0_62 = arith.constant 0 : index
    %c0_63 = arith.constant 0 : index
    %112 = vector.load %arg5[%c0_61, %c0_62, %c0_63] : memref<1x16x128xbf16, #tpu.memory_space<vmem>>, vector<1x16x128xbf16>
    %113 = vector.shape_cast %112 : vector<1x16x128xbf16> to vector<16x128xbf16>
    %114 = vector.shape_cast %111 : vector<16x128xbf16> to vector<1x16x128xbf16>
    tpu.vector_store %arg5[%c0_61, %c0_62, %c0_63], %114 {strides = array<i32>} : memref<1x16x128xbf16, #tpu.memory_space<vmem>>, vector<1x16x128xbf16>,
    return
  }
  func.func @transform_0(%arg0: i32, %arg1: i32) -> (i32, i32, i32) {
    %c0_i32 = arith.constant 0 : i32
    %c0_i32_0 = arith.constant 0 : i32
    %c0_i32_1 = arith.constant 0 : i32
    return %c0_i32, %arg1, %c0_i32_0 : i32, i32, i32
  }
  func.func @transform_1(%arg0: i32, %arg1: i32) -> (i32, i32, i32, i32) {
    %c0_i32 = arith.constant 0 : i32
    %c0_i32_0 = arith.constant 0 : i32
    %c0_i32_1 = arith.constant 0 : i32
    %c0_i32_2 = arith.constant 0 : i32
    return %arg0, %c0_i32, %c0_i32_0, %c0_i32_1 : i32, i32, i32, i32
  }
  func.func @transform_2(%arg0: i32, %arg1: i32) -> (i32, i32) {
    %c0_i32 = arith.constant 0 : i32
    %c0_i32_0 = arith.constant 0 : i32
    %c0_i32_1 = arith.constant 0 : i32
    return %c0_i32, %c0_i32_0 : i32, i32
  }
  func.func @transform_3(%arg0: i32, %arg1: i32) -> (i32, i32, i32) {
    %c0_i32 = arith.constant 0 : i32
    %c0_i32_0 = arith.constant 0 : i32
    return %arg0, %arg1, %c0_i32 : i32, i32, i32
  }
}

module attributes {stable_mosaic.version = 11 : i64} {
  func.func @_conv_bias_act_kernel(%arg0: i32, %arg1: i32, %arg2: memref<16x16x16xbf16, #tpu.memory_space<vmem>>, %arg3: memref<16x1xf32, #tpu.memory_space<vmem>>, %arg4: memref<1x1x16x256xbf16, #tpu.memory_space<vmem>>, %arg5: memref<1x16x128xf32, #tpu.memory_space<vmem>>) attributes {dimension_semantics = [#tpu.dimension_semantics<parallel>, #tpu.dimension_semantics<parallel>], iteration_bounds = array<i64: 2, 1>, scalar_prefetch = 0 : i64, scratch_operands = 0 : i64, tpu.core_type = #tpu.core_type<tc>, window_params = [{transform_indices = @transform_0, window_bounds = array<i64: 16, 16, 16>}, {transform_indices = @transform_1, window_bounds = array<i64: 16, 1>}, {transform_indices = @transform_2, window_bounds = array<i64: 1, 1, 16, 256>}, {transform_indices = @transform_3, window_bounds = array<i64: 1, 16, 128>}]} {
    %cst = arith.constant 0.000000e+00 : f32
    %0 = vector.broadcast %cst : f32 to vector<16x128xf32>
    %c0 = arith.constant 0 : index
    %c0_0 = arith.constant 0 : index
    %c0_1 = arith.constant 0 : index
    %c0_2 = arith.constant 0 : index
    %1 = vector.load %arg4[%c0, %c0_0, %c0_1, %c0_2] : memref<1x1x16x256xbf16, #tpu.memory_space<vmem>>, vector<1x1x16x256xbf16>
    %2 = vector.shape_cast %1 : vector<1x1x16x256xbf16> to vector<16x256xbf16>
    %3 = vector.extract_strided_slice %2 {offsets = [0, 0], sizes = [16, 128], strides = [1, 1]} : vector<16x256xbf16> to vector<16x128xbf16>
    %c0_3 = arith.constant 0 : index
    %c0_4 = arith.constant 0 : index
    %c0_5 = arith.constant 0 : index
    %4 = vector.load %arg2[%c0_3, %c0_4, %c0_5] : memref<16x16x16xbf16, #tpu.memory_space<vmem>>, vector<1x16x16xbf16>
    %5 = vector.shape_cast %4 : vector<1x16x16xbf16> to vector<16x16xbf16>
    %cst_6 = arith.constant dense<0.000000e+00> : vector<16x128xf32>
    %6 = tpu.matmul %5, %3, %cst_6 {dimension_numbers = #tpu.dot_dimension_numbers<[1], [0], [0], [1], [0, 0, 1, 1], [], []>} : vector<16x16xbf16>, vector<16x128xbf16>, vector<16x128xf32> -> vector<16x128xf32>
    %7 = arith.addf %0, %6 : vector<16x128xf32>
    %8 = vector.extract_strided_slice %2 {offsets = [0, 1], sizes = [16, 128], strides = [1, 1]} : vector<16x256xbf16> to vector<16x128xbf16>
    %c1 = arith.constant 1 : index
    %c0_7 = arith.constant 0 : index
    %c0_8 = arith.constant 0 : index
    %9 = vector.load %arg2[%c1, %c0_7, %c0_8] : memref<16x16x16xbf16, #tpu.memory_space<vmem>>, vector<1x16x16xbf16>
    %10 = vector.shape_cast %9 : vector<1x16x16xbf16> to vector<16x16xbf16>
    %cst_9 = arith.constant dense<0.000000e+00> : vector<16x128xf32>
    %11 = tpu.matmul %10, %8, %cst_9 {dimension_numbers = #tpu.dot_dimension_numbers<[1], [0], [0], [1], [0, 0, 1, 1], [], []>} : vector<16x16xbf16>, vector<16x128xbf16>, vector<16x128xf32> -> vector<16x128xf32>
    %12 = arith.addf %7, %11 : vector<16x128xf32>
    %13 = vector.extract_strided_slice %2 {offsets = [0, 2], sizes = [16, 128], strides = [1, 1]} : vector<16x256xbf16> to vector<16x128xbf16>
    %c2 = arith.constant 2 : index
    %c0_10 = arith.constant 0 : index
    %c0_11 = arith.constant 0 : index
    %14 = vector.load %arg2[%c2, %c0_10, %c0_11] : memref<16x16x16xbf16, #tpu.memory_space<vmem>>, vector<1x16x16xbf16>
    %15 = vector.shape_cast %14 : vector<1x16x16xbf16> to vector<16x16xbf16>
    %cst_12 = arith.constant dense<0.000000e+00> : vector<16x128xf32>
    %16 = tpu.matmul %15, %13, %cst_12 {dimension_numbers = #tpu.dot_dimension_numbers<[1], [0], [0], [1], [0, 0, 1, 1], [], []>} : vector<16x16xbf16>, vector<16x128xbf16>, vector<16x128xf32> -> vector<16x128xf32>
    %17 = arith.addf %12, %16 : vector<16x128xf32>
    %18 = vector.extract_strided_slice %2 {offsets = [0, 3], sizes = [16, 128], strides = [1, 1]} : vector<16x256xbf16> to vector<16x128xbf16>
    %c3 = arith.constant 3 : index
    %c0_13 = arith.constant 0 : index
    %c0_14 = arith.constant 0 : index
    %19 = vector.load %arg2[%c3, %c0_13, %c0_14] : memref<16x16x16xbf16, #tpu.memory_space<vmem>>, vector<1x16x16xbf16>
    %20 = vector.shape_cast %19 : vector<1x16x16xbf16> to vector<16x16xbf16>
    %cst_15 = arith.constant dense<0.000000e+00> : vector<16x128xf32>
    %21 = tpu.matmul %20, %18, %cst_15 {dimension_numbers = #tpu.dot_dimension_numbers<[1], [0], [0], [1], [0, 0, 1, 1], [], []>} : vector<16x16xbf16>, vector<16x128xbf16>, vector<16x128xf32> -> vector<16x128xf32>
    %22 = arith.addf %17, %21 : vector<16x128xf32>
    %23 = vector.extract_strided_slice %2 {offsets = [0, 6], sizes = [16, 128], strides = [1, 1]} : vector<16x256xbf16> to vector<16x128xbf16>
    %c4 = arith.constant 4 : index
    %c0_16 = arith.constant 0 : index
    %c0_17 = arith.constant 0 : index
    %24 = vector.load %arg2[%c4, %c0_16, %c0_17] : memref<16x16x16xbf16, #tpu.memory_space<vmem>>, vector<1x16x16xbf16>
    %25 = vector.shape_cast %24 : vector<1x16x16xbf16> to vector<16x16xbf16>
    %cst_18 = arith.constant dense<0.000000e+00> : vector<16x128xf32>
    %26 = tpu.matmul %25, %23, %cst_18 {dimension_numbers = #tpu.dot_dimension_numbers<[1], [0], [0], [1], [0, 0, 1, 1], [], []>} : vector<16x16xbf16>, vector<16x128xbf16>, vector<16x128xf32> -> vector<16x128xf32>
    %27 = arith.addf %22, %26 : vector<16x128xf32>
    %28 = vector.extract_strided_slice %2 {offsets = [0, 7], sizes = [16, 128], strides = [1, 1]} : vector<16x256xbf16> to vector<16x128xbf16>
    %c5 = arith.constant 5 : index
    %c0_19 = arith.constant 0 : index
    %c0_20 = arith.constant 0 : index
    %29 = vector.load %arg2[%c5, %c0_19, %c0_20] : memref<16x16x16xbf16, #tpu.memory_space<vmem>>, vector<1x16x16xbf16>
    %30 = vector.shape_cast %29 : vector<1x16x16xbf16> to vector<16x16xbf16>
    %cst_21 = arith.constant dense<0.000000e+00> : vector<16x128xf32>
    %31 = tpu.matmul %30, %28, %cst_21 {dimension_numbers = #tpu.dot_dimension_numbers<[1], [0], [0], [1], [0, 0, 1, 1], [], []>} : vector<16x16xbf16>, vector<16x128xbf16>, vector<16x128xf32> -> vector<16x128xf32>
    %32 = arith.addf %27, %31 : vector<16x128xf32>
    %33 = vector.extract_strided_slice %2 {offsets = [0, 8], sizes = [16, 128], strides = [1, 1]} : vector<16x256xbf16> to vector<16x128xbf16>
    %c6 = arith.constant 6 : index
    %c0_22 = arith.constant 0 : index
    %c0_23 = arith.constant 0 : index
    %34 = vector.load %arg2[%c6, %c0_22, %c0_23] : memref<16x16x16xbf16, #tpu.memory_space<vmem>>, vector<1x16x16xbf16>
    %35 = vector.shape_cast %34 : vector<1x16x16xbf16> to vector<16x16xbf16>
    %cst_24 = arith.constant dense<0.000000e+00> : vector<16x128xf32>
    %36 = tpu.matmul %35, %33, %cst_24 {dimension_numbers = #tpu.dot_dimension_numbers<[1], [0], [0], [1], [0, 0, 1, 1], [], []>} : vector<16x16xbf16>, vector<16x128xbf16>, vector<16x128xf32> -> vector<16x128xf32>
    %37 = arith.addf %32, %36 : vector<16x128xf32>
    %38 = vector.extract_strided_slice %2 {offsets = [0, 9], sizes = [16, 128], strides = [1, 1]} : vector<16x256xbf16> to vector<16x128xbf16>
    %c7 = arith.constant 7 : index
    %c0_25 = arith.constant 0 : index
    %c0_26 = arith.constant 0 : index
    %39 = vector.load %arg2[%c7, %c0_25, %c0_26] : memref<16x16x16xbf16, #tpu.memory_space<vmem>>, vector<1x16x16xbf16>
    %40 = vector.shape_cast %39 : vector<1x16x16xbf16> to vector<16x16xbf16>
    %cst_27 = arith.constant dense<0.000000e+00> : vector<16x128xf32>
    %41 = tpu.matmul %40, %38, %cst_27 {dimension_numbers = #tpu.dot_dimension_numbers<[1], [0], [0], [1], [0, 0, 1, 1], [], []>} : vector<16x16xbf16>, vector<16x128xbf16>, vector<16x128xf32> -> vector<16x128xf32>
    %42 = arith.addf %37, %41 : vector<16x128xf32>
    %43 = vector.extract_strided_slice %2 {offsets = [0, 12], sizes = [16, 128], strides = [1, 1]} : vector<16x256xbf16> to vector<16x128xbf16>
    %c8 = arith.constant 8 : index
    %c0_28 = arith.constant 0 : index
    %c0_29 = arith.constant 0 : index
    %44 = vector.load %arg2[%c8, %c0_28, %c0_29] : memref<16x16x16xbf16, #tpu.memory_space<vmem>>, vector<1x16x16xbf16>
    %45 = vector.shape_cast %44 : vector<1x16x16xbf16> to vector<16x16xbf16>
    %cst_30 = arith.constant dense<0.000000e+00> : vector<16x128xf32>
    %46 = tpu.matmul %45, %43, %cst_30 {dimension_numbers = #tpu.dot_dimension_numbers<[1], [0], [0], [1], [0, 0, 1, 1], [], []>} : vector<16x16xbf16>, vector<16x128xbf16>, vector<16x128xf32> -> vector<16x128xf32>
    %47 = arith.addf %42, %46 : vector<16x128xf32>
    %48 = vector.extract_strided_slice %2 {offsets = [0, 13], sizes = [16, 128], strides = [1, 1]} : vector<16x256xbf16> to vector<16x128xbf16>
    %c9 = arith.constant 9 : index
    %c0_31 = arith.constant 0 : index
    %c0_32 = arith.constant 0 : index
    %49 = vector.load %arg2[%c9, %c0_31, %c0_32] : memref<16x16x16xbf16, #tpu.memory_space<vmem>>, vector<1x16x16xbf16>
    %50 = vector.shape_cast %49 : vector<1x16x16xbf16> to vector<16x16xbf16>
    %cst_33 = arith.constant dense<0.000000e+00> : vector<16x128xf32>
    %51 = tpu.matmul %50, %48, %cst_33 {dimension_numbers = #tpu.dot_dimension_numbers<[1], [0], [0], [1], [0, 0, 1, 1], [], []>} : vector<16x16xbf16>, vector<16x128xbf16>, vector<16x128xf32> -> vector<16x128xf32>
    %52 = arith.addf %47, %51 : vector<16x128xf32>
    %53 = vector.extract_strided_slice %2 {offsets = [0, 14], sizes = [16, 128], strides = [1, 1]} : vector<16x256xbf16> to vector<16x128xbf16>
    %c10 = arith.constant 10 : index
    %c0_34 = arith.constant 0 : index
    %c0_35 = arith.constant 0 : index
    %54 = vector.load %arg2[%c10, %c0_34, %c0_35] : memref<16x16x16xbf16, #tpu.memory_space<vmem>>, vector<1x16x16xbf16>
    %55 = vector.shape_cast %54 : vector<1x16x16xbf16> to vector<16x16xbf16>
    %cst_36 = arith.constant dense<0.000000e+00> : vector<16x128xf32>
    %56 = tpu.matmul %55, %53, %cst_36 {dimension_numbers = #tpu.dot_dimension_numbers<[1], [0], [0], [1], [0, 0, 1, 1], [], []>} : vector<16x16xbf16>, vector<16x128xbf16>, vector<16x128xf32> -> vector<16x128xf32>
    %57 = arith.addf %52, %56 : vector<16x128xf32>
    %58 = vector.extract_strided_slice %2 {offsets = [0, 15], sizes = [16, 128], strides = [1, 1]} : vector<16x256xbf16> to vector<16x128xbf16>
    %c11 = arith.constant 11 : index
    %c0_37 = arith.constant 0 : index
    %c0_38 = arith.constant 0 : index
    %59 = vector.load %arg2[%c11, %c0_37, %c0_38] : memref<16x16x16xbf16, #tpu.memory_space<vmem>>, vector<1x16x16xbf16>
    %60 = vector.shape_cast %59 : vector<1x16x16xbf16> to vector<16x16xbf16>
    %cst_39 = arith.constant dense<0.000000e+00> : vector<16x128xf32>
    %61 = tpu.matmul %60, %58, %cst_39 {dimension_numbers = #tpu.dot_dimension_numbers<[1], [0], [0], [1], [0, 0, 1, 1], [], []>} : vector<16x16xbf16>, vector<16x128xbf16>, vector<16x128xf32> -> vector<16x128xf32>
    %62 = arith.addf %57, %61 : vector<16x128xf32>
    %63 = vector.extract_strided_slice %2 {offsets = [0, 18], sizes = [16, 128], strides = [1, 1]} : vector<16x256xbf16> to vector<16x128xbf16>
    %c12 = arith.constant 12 : index
    %c0_40 = arith.constant 0 : index
    %c0_41 = arith.constant 0 : index
    %64 = vector.load %arg2[%c12, %c0_40, %c0_41] : memref<16x16x16xbf16, #tpu.memory_space<vmem>>, vector<1x16x16xbf16>
    %65 = vector.shape_cast %64 : vector<1x16x16xbf16> to vector<16x16xbf16>
    %cst_42 = arith.constant dense<0.000000e+00> : vector<16x128xf32>
    %66 = tpu.matmul %65, %63, %cst_42 {dimension_numbers = #tpu.dot_dimension_numbers<[1], [0], [0], [1], [0, 0, 1, 1], [], []>} : vector<16x16xbf16>, vector<16x128xbf16>, vector<16x128xf32> -> vector<16x128xf32>
    %67 = arith.addf %62, %66 : vector<16x128xf32>
    %68 = vector.extract_strided_slice %2 {offsets = [0, 19], sizes = [16, 128], strides = [1, 1]} : vector<16x256xbf16> to vector<16x128xbf16>
    %c13 = arith.constant 13 : index
    %c0_43 = arith.constant 0 : index
    %c0_44 = arith.constant 0 : index
    %69 = vector.load %arg2[%c13, %c0_43, %c0_44] : memref<16x16x16xbf16, #tpu.memory_space<vmem>>, vector<1x16x16xbf16>
    %70 = vector.shape_cast %69 : vector<1x16x16xbf16> to vector<16x16xbf16>
    %cst_45 = arith.constant dense<0.000000e+00> : vector<16x128xf32>
    %71 = tpu.matmul %70, %68, %cst_45 {dimension_numbers = #tpu.dot_dimension_numbers<[1], [0], [0], [1], [0, 0, 1, 1], [], []>} : vector<16x16xbf16>, vector<16x128xbf16>, vector<16x128xf32> -> vector<16x128xf32>
    %72 = arith.addf %67, %71 : vector<16x128xf32>
    %73 = vector.extract_strided_slice %2 {offsets = [0, 20], sizes = [16, 128], strides = [1, 1]} : vector<16x256xbf16> to vector<16x128xbf16>
    %c14 = arith.constant 14 : index
    %c0_46 = arith.constant 0 : index
    %c0_47 = arith.constant 0 : index
    %74 = vector.load %arg2[%c14, %c0_46, %c0_47] : memref<16x16x16xbf16, #tpu.memory_space<vmem>>, vector<1x16x16xbf16>
    %75 = vector.shape_cast %74 : vector<1x16x16xbf16> to vector<16x16xbf16>
    %cst_48 = arith.constant dense<0.000000e+00> : vector<16x128xf32>
    %76 = tpu.matmul %75, %73, %cst_48 {dimension_numbers = #tpu.dot_dimension_numbers<[1], [0], [0], [1], [0, 0, 1, 1], [], []>} : vector<16x16xbf16>, vector<16x128xbf16>, vector<16x128xf32> -> vector<16x128xf32>
    %77 = arith.addf %72, %76 : vector<16x128xf32>
    %78 = vector.extract_strided_slice %2 {offsets = [0, 21], sizes = [16, 128], strides = [1, 1]} : vector<16x256xbf16> to vector<16x128xbf16>
    %c15 = arith.constant 15 : index
    %c0_49 = arith.constant 0 : index
    %c0_50 = arith.constant 0 : index
    %79 = vector.load %arg2[%c15, %c0_49, %c0_50] : memref<16x16x16xbf16, #tpu.memory_space<vmem>>, vector<1x16x16xbf16>
    %80 = vector.shape_cast %79 : vector<1x16x16xbf16> to vector<16x16xbf16>
    %cst_51 = arith.constant dense<0.000000e+00> : vector<16x128xf32>
    %81 = tpu.matmul %80, %78, %cst_51 {dimension_numbers = #tpu.dot_dimension_numbers<[1], [0], [0], [1], [0, 0, 1, 1], [], []>} : vector<16x16xbf16>, vector<16x128xbf16>, vector<16x128xf32> -> vector<16x128xf32>
    %82 = arith.addf %77, %81 : vector<16x128xf32>
    %c0_52 = arith.constant 0 : index
    %c0_53 = arith.constant 0 : index
    %83 = vector.load %arg3[%c0_52, %c0_53] : memref<16x1xf32, #tpu.memory_space<vmem>>, vector<16x1xf32>
    %84 = vector.broadcast %83 : vector<16x1xf32> to vector<16x128xf32>
    %85 = arith.addf %82, %84 : vector<16x128xf32>
    %c0_54 = arith.constant 0 : index
    %c0_55 = arith.constant 0 : index
    %c0_56 = arith.constant 0 : index
    %86 = vector.load %arg5[%c0_54, %c0_55, %c0_56] : memref<1x16x128xf32, #tpu.memory_space<vmem>>, vector<1x16x128xf32>
    %87 = vector.shape_cast %86 : vector<1x16x128xf32> to vector<16x128xf32>
    %88 = vector.shape_cast %85 : vector<16x128xf32> to vector<1x16x128xf32>
    tpu.vector_store %arg5[%c0_54, %c0_55, %c0_56], %88 {strides = array<i32>} : memref<1x16x128xf32, #tpu.memory_space<vmem>>, vector<1x16x128xf32>,
    return
  }
  func.func @transform_0(%arg0: i32, %arg1: i32) -> (i32, i32, i32) {
    %c0_i32 = arith.constant 0 : i32
    %c0_i32_0 = arith.constant 0 : i32
    %c0_i32_1 = arith.constant 0 : i32
    return %c0_i32, %arg1, %c0_i32_0 : i32, i32, i32
  }
  func.func @transform_1(%arg0: i32, %arg1: i32) -> (i32, i32) {
    %c0_i32 = arith.constant 0 : i32
    %c0_i32_0 = arith.constant 0 : i32
    return %arg1, %c0_i32 : i32, i32
  }
  func.func @transform_2(%arg0: i32, %arg1: i32) -> (i32, i32, i32, i32) {
    %c0_i32 = arith.constant 0 : i32
    %c0_i32_0 = arith.constant 0 : i32
    %c0_i32_1 = arith.constant 0 : i32
    %c0_i32_2 = arith.constant 0 : i32
    return %arg0, %c0_i32, %c0_i32_0, %c0_i32_1 : i32, i32, i32, i32
  }
  func.func @transform_3(%arg0: i32, %arg1: i32) -> (i32, i32, i32) {
    %c0_i32 = arith.constant 0 : i32
    %c0_i32_0 = arith.constant 0 : i32
    return %arg0, %arg1, %c0_i32 : i32, i32, i32
  }
}

</mosaic_0001>

<llo_original>
// kernel: discriminator_forward.3
$region0: #{discriminator_forward.3}
  #allocation0 [shape = 'u32[]', space=smem, size = 0x4, offset = 0x4, fixed_abs, tag = 'smem constant byte address 0x4 - core index']
  #allocation1 [shape = 'u32[144,128]{1,0:T(1,128)}', space=vmem, size = 0x12000, scoped, tag = 'internal scratch']
  %s0 = inlined_call_operand.vmem [shape: bf16[16,16,8], index: 0, kind: input, shape index: {}]
  %s1 = inlined_call_operand.vmem [shape: f32[16,1], index: 1, kind: input, shape index: {}]
  %s2 = inlined_call_operand.vmem [shape: bf16[2,4,8,256], index: 2, kind: input, shape index: {}]
  %s3 = inlined_call_operand.vmem [shape: bf16[2,16,128], index: 3, kind: output, shape index: {}]
  %s4 = sld [smem:[#allocation0]]
  $region45: #{discriminator_forward.3} parent=0
    _
  %s6 = ssub.s32 1, %s4
  %s7 = scalar_select 0, %s6, %s4
  loop: start=0, step=1, limit=4
  $region2: #{discriminator_forward.3} parent=0 // loop_pre_header
    _
  $region3: #{discriminator_forward.3} parent=0 // loop_header
    %s9 = sphi 0, %s13
    %p10 = scmp.ge.s32.totalorder %s9, 4
    %s16 = sphi 0, %s28
    %s17 = sphi 0, %s24
    %s18 = sphi 0, %s16
    %s19 = sphi 0, %s17
    %s20 = sphi 0, %s18
    %s21 = sphi 0, %s19
    %s31 = sphi 0, %s33
    %s34 = sphi 0, %s31
    %s35 = sphi 0, %s34
    %s51 = sphi 0, %s35
    %s57 = sphi 0, %s59
    %s60 = sphi 0, %s57
    %s61 = sphi 0, %s60
    %s77 = sphi 0, %s61
    %s83 = sphi 0, %s85
    %s86 = sphi 0, %s83
    %s87 = sphi 0, %s86
    %s103 = sphi 0, %s87
    %s111 = sphi 0, %s113
    %s114 = sphi 0, %s111
    %s115 = sphi 0, %s114
    %s131 = sphi 0, %s115
  $region4: #{discriminator_forward.3} parent=0 // loop_header_branch
    %12 = sbr.rel (%p10) target = $region8
  $region5: #{discriminator_forward.3} parent=0 // loop_body
    %s14 = ssub.s32 %s9, 1
    %s15 = ssub.s32 %s9, 2
    %s22 = sadd.s32 1, %s17
    %p23 = scmp.ge.s32.totalorder %s22, 1
    %s24 = scalar_select %p23, 0, %s22
    %s25 = sadd.s32 1, %s16
    %s26 = scalar_select %p23, %s25, %s16
    %p27 = scmp.ge.s32.totalorder %s26, 2
    %s28 = scalar_select %p27, 0, %s26
    %s29 = ssub.s32 %s17, %s24
    %p30 = scmp.eq.s32.totalorder %s29, 0
    %s32 = sadd.s32 %s31, 1
    %s33 = scalar_select %p30, %s31, %s32
    %p36 = pneg %p30
    %p37 = scmp.eq.s32.totalorder %s9, 1
    %p38 = por %p36, %p37
    %p39 = scmp.ne.s32.totalorder %s31, %s34
    %p40 = scmp.eq.s32.totalorder %s9, 0
    %p41 = por %p39, %p40
    %p42 = scmp.ne.s32.totalorder %s31, %s34
    %p43 = scmp.eq.s32.totalorder %s14, 1
    %p44 = por %p42, %p43
    %p45 = scmp.ne.s32.totalorder %s34, %s35
    %p46 = scmp.eq.s32.totalorder %s14, 0
    %p47 = por %p45, %p46
    %p48 = scmp.ne.s32.totalorder %s34, %s35
    %p49 = scmp.eq.s32.totalorder %s15, 1
    %p50 = por %p48, %p49
    %p52 = scmp.ne.s32.totalorder %s35, %s51
    %p53 = scmp.eq.s32.totalorder %s15, 0
    %p54 = por %p52, %p53
    %s55 = ssub.s32 %s17, %s24
    %p56 = scmp.eq.s32.totalorder %s55, 0
    %s58 = sadd.s32 %s57, 1
    %s59 = scalar_select %p56, %s57, %s58
    %p62 = pneg %p56
    %p63 = scmp.eq.s32.totalorder %s9, 1
    %p64 = por %p62, %p63
    %p65 = scmp.ne.s32.totalorder %s57, %s60
    %p66 = scmp.eq.s32.totalorder %s9, 0
    %p67 = por %p65, %p66
    %p68 = scmp.ne.s32.totalorder %s57, %s60
    %p69 = scmp.eq.s32.totalorder %s14, 1
    %p70 = por %p68, %p69
    %p71 = scmp.ne.s32.totalorder %s60, %s61
    %p72 = scmp.eq.s32.totalorder %s14, 0
    %p73 = por %p71, %p72
    %p74 = scmp.ne.s32.totalorder %s60, %s61
    %p75 = scmp.eq.s32.totalorder %s15, 1
    %p76 = por %p74, %p75
    %p78 = scmp.ne.s32.totalorder %s61, %s77
    %p79 = scmp.eq.s32.totalorder %s15, 0
    %p80 = por %p78, %p79
    %s81 = ssub.s32 %s16, %s28
    %p82 = scmp.eq.s32.totalorder %s81, 0
    %s84 = sadd.s32 %s83, 1
    %s85 = scalar_select %p82, %s83, %s84
    %p88 = pneg %p82
    %p89 = scmp.eq.s32.totalorder %s9, 1
    %p90 = por %p88, %p89
    %p91 = scmp.ne.s32.totalorder %s83, %s86
    %p92 = scmp.eq.s32.totalorder %s9, 0
    %p93 = por %p91, %p92
    %p94 = scmp.ne.s32.totalorder %s83, %s86
    %p95 = scmp.eq.s32.totalorder %s14, 1
    %p96 = por %p94, %p95
    %p97 = scmp.ne.s32.totalorder %s86, %s87
    %p98 = scmp.eq.s32.totalorder %s14, 0
    %p99 = por %p97, %p98
    %p100 = scmp.ne.s32.totalorder %s86, %s87
    %p101 = scmp.eq.s32.totalorder %s15, 1
    %p102 = por %p100, %p101
    %p104 = scmp.ne.s32.totalorder %s87, %s103
    %p105 = scmp.eq.s32.totalorder %s15, 0
    %p106 = por %p104, %p105
    %s107 = ssub.s32 %s16, %s28
    %s108 = ssub.s32 %s17, %s24
    %s109 = sor.u32 %s107, %s108
    %p110 = scmp.eq.s32.totalorder %s109, 0
    %s112 = sadd.s32 %s111, 1
    %s113 = scalar_select %p110, %s111, %s112
    %p116 = pneg %p110
    %p117 = scmp.eq.s32.totalorder %s9, 1
    %p118 = por %p116, %p117
    %p119 = scmp.ne.s32.totalorder %s111, %s114
    %p120 = scmp.eq.s32.totalorder %s9, 0
    %p121 = por %p119, %p120
    %p122 = scmp.ne.s32.totalorder %s111, %s114
    %p123 = scmp.eq.s32.totalorder %s14, 1
    %p124 = por %p122, %p123
    %p125 = scmp.ne.s32.totalorder %s114, %s115
    %p126 = scmp.eq.s32.totalorder %s14, 0
    %p127 = por %p125, %p126
    %p128 = scmp.ne.s32.totalorder %s114, %s115
    %p129 = scmp.eq.s32.totalorder %s15, 1
    %p130 = por %p128, %p129
    %p132 = scmp.ne.s32.totalorder %s115, %s131
    %p133 = scmp.eq.s32.totalorder %s15, 0
    %p134 = por %p132, %p133
    %p135 = scmp.le.s32.totalorder 1, %s9
    %p136 = scmp.lt.s32.totalorder %s9, 3
    %p137 = pnand %p135, %p136
    %p138 = pneg %p137
    // Predicated region
    $region9: #{discriminator_forward.3} parent=5 // pred_check
      _
    $region10: #{discriminator_forward.3} parent=5 // pred_check_branch
      %140 = sbr.rel (%p137) target = $region12
    $region11: #{discriminator_forward.3} parent=5 // pred_region
      %s141 = ssub.s32 %s9, 1
      // Predicated region
      $region13: #{discriminator_forward.3} parent=11 // pred_check
        %p142 = pneg %p47
      $region14: #{discriminator_forward.3} parent=11 // pred_check_branch
        %144 = sbr.rel (%p142) target = $region16
      $region15: #{discriminator_forward.3} parent=11 // pred_region
        %s145 = smul.u32 2, %s19
        %p146 = scmp.lt.s32.totalorder %s145, 1
        %s147 = scalar_select %p146, %s145, 1
        %s148 = smul.addr %s147, 4
        %s149 = scalar_lea.vmem %s0, %s148
        %s150 = smul.u32 2, %s19
      $region16: #{discriminator_forward.3} parent=11 // pred_fallthru
        _
      // Predicated region
      $region17: #{discriminator_forward.3} parent=11 // pred_check
        %p151 = pneg %p73
      $region18: #{discriminator_forward.3} parent=11 // pred_check_branch
        %153 = sbr.rel (%p151) target = $region20
      $region19: #{discriminator_forward.3} parent=11 // pred_region
        %s154 = smul.u32 2, %s19
        %p155 = scmp.lt.s32.totalorder %s154, 1
        %s156 = scalar_select %p155, %s154, 1
        %s157 = smul.addr %s156, 8
        %s158 = scalar_lea.vmem %s1, %s157
        %s159 = smul.u32 2, %s19
      $region20: #{discriminator_forward.3} parent=11 // pred_fallthru
        _
    $region12: #{discriminator_forward.3} parent=5 // pred_fallthru
      _
    %p160 = scmp.lt.s32.totalorder %s9, 2
    // Predicated region
    $region21: #{discriminator_forward.3} parent=5 // pred_check
      %p161 = pneg %p160
    $region22: #{discriminator_forward.3} parent=5 // pred_check_branch
      %163 = sbr.rel (%p161) target = $region24
    $region23: #{discriminator_forward.3} parent=5 // pred_region
      // Predicated region
      $region25: #{discriminator_forward.3} parent=23 // pred_check
        %p164 = pneg %p93
      $region26: #{discriminator_forward.3} parent=23 // pred_check_branch
        %166 = sbr.rel (%p164) target = $region28
      $region27: #{discriminator_forward.3} parent=23 // pred_region
        %p167 = scmp.lt.s32.totalorder %s16, 1
        %s168 = scalar_select %p167, %s16, 1
        %s169 = smul.addr %s168, 8
        %s170 = smul.addr %s169, 4
        %s171 = scalar_lea.vmem %s2, %s170
      $region28: #{discriminator_forward.3} parent=23 // pred_fallthru
        _
    $region24: #{discriminator_forward.3} parent=5 // pred_fallthru
      _
    %p172 = scmp.le.s32.totalorder 1, %s9
    %p173 = scmp.lt.s32.totalorder %s9, 3
    %p174 = pnand %p172, %p173
    %p175 = pneg %p174
    // Predicated region
    $region29: #{discriminator_forward.3} parent=5 // pred_check
      _
    $region30: #{discriminator_forward.3} parent=5 // pred_check_branch
      %177 = sbr.rel (%p174) target = $region32
    $region31: #{discriminator_forward.3} parent=5 // pred_region
      %s178 = ssub.s32 %s9, 1
      %s179 = smul.u32 2, %s19
      %p180 = scmp.lt.s32.totalorder %s179, 1
      %s181 = scalar_select %p180, %s179, 1
      %s182 = smul.addr %s181, 4
      %s183 = scalar_lea.vmem %s0, %s182
      %p184 = pneg %p47
      %p185 = pneg %p44
      %s186 = smul.u32 2, %s19
      %p187 = scmp.lt.s32.totalorder %s186, 1
      %s188 = scalar_select %p187, %s186, 1
      %s189 = smul.addr %s188, 8
      %s190 = scalar_lea.vmem %s1, %s189
      %p191 = pneg %p73
      %p192 = pneg %p70
      %p193 = scmp.lt.s32.totalorder %s18, 1
      %s194 = scalar_select %p193, %s18, 1
      %s195 = smul.addr %s194, 8
      %s196 = smul.addr %s195, 4
      %s197 = scalar_lea.vmem %s2, %s196
      %p198 = pneg %p99
      %p199 = pneg %p96
      %p200 = pneg %p127
      %p201 = pneg %p124
      %s202 = smul.u32 2, %s19
      %p203 = scmp.lt.s32.totalorder %s18, 1
      %s204 = scalar_select %p203, %s18, 1
      %p205 = scmp.lt.s32.totalorder %s202, 1
      %s206 = scalar_select %p205, %s202, 1
      %s207 = smul.addr %s204, 2
      %s208 = sadd.s32 %s206, %s207
      %s209 = smul.addr %s208, 4
      %s210 = scalar_lea.vmem %s3, %s209
      %s211 = smul.u32 2, %s19
      %p212 = scmp.lt.s32.totalorder %s211, 1
      %s213 = scalar_select %p212, %s211, 1
      %s214 = smul.addr %s213, 4
      %s215 = scalar_lea.vmem %s0, %s214
      %s216 = smul.u32 2, %s19
      %s217 = smul.u32 2, %s19
      %p218 = scmp.lt.s32.totalorder %s217, 1
      %s219 = scalar_select %p218, %s217, 1
      %s220 = smul.addr %s219, 8
      %s221 = scalar_lea.vmem %s1, %s220
      %s222 = smul.u32 2, %s19
      %p223 = scmp.lt.s32.totalorder %s18, 1
      %s224 = scalar_select %p223, %s18, 1
      %s225 = smul.addr %s224, 8
      %s226 = smul.addr %s225, 4
      %s227 = scalar_lea.vmem %s2, %s226
      %s228 = smul.u32 2, %s19
      %p229 = scmp.lt.s32.totalorder %s18, 1
      %s230 = scalar_select %p229, %s18, 1
      %p231 = scmp.lt.s32.totalorder %s228, 1
      %s232 = scalar_select %p231, %s228, 1
      %s233 = smul.addr %s230, 2
      %s234 = sadd.s32 %s232, %s233
      %s235 = smul.addr %s234, 4
      %s236 = scalar_lea.vmem %s3, %s235
      %s237 = smul.u32 2, %s19
      %v239 = vld [vmem:[%s227] sm:$0xff]
      %v240 = vld [vmem:[%s215] sm:$0xf]
      %v241 = vld [vmem:[%s215 + $0x4] sm:$0xf]
      %s242 = scalar_lea.vmem %s215, 8
      %v243 = vld [vmem:[%s242] sm:$0xf]
      %v244 = vld [vmem:[%s242 + $0x4] sm:$0xf]
      %v247 = vunpack.c.l.b16 %v243
      %v248 = vunpack.c.l.b16 %v244
      %v249 = vpack.c.b16 %v248, %v247
      %v251 = vunpack.c.l.b16 %v239
      %v252 = vunpack.c.h.b16 %v239
      %v253 = vpack.c.b16 %v251, %v251
      %v254 = vpack.c.b16 %v252, %v252
      %255 = vrot.lane.b32.xlu0 %v253, 127
      %v256 = vpop.permute.xlu0 %255
      %257 = vrot.lane.b32.xlu0 %v254, 127
      %v258 = vpop.permute.xlu0 %257
      %vm259 = vcmask 1039360
      %v260 = vsel %vm259, %v256, %v258
      %vm261 = vcmask 64512
      %v263 = vsel %vm261, %v249, 0
      %vm265 = vcmask 1043456
      %v267 = vsel %vm265, %v260, 0
      %269 = vmatprep.subr.bf16.mxu0 0
      %270 = vmatpush1.bf16.msra.mxu0 0
      %271 = vmatprep.subr.bf16.mxu0 0
      %272 = vmatpush1.bf16.msra.mxu0 0
      %273 = vmatprep.subr.bf16.mxu0 0
      %274 = vmatpush1.bf16.msra.mxu0 0
      %275 = vmatprep.subr.bf16.mxu0 0
      %276 = vmatpush1.bf16.msra.mxu0 0
      %277 = vmatprep.subr.bf16.mxu0 0
      %278 = vmatpush1.bf16.msra.mxu0 0
      %279 = vmatprep.subr.bf16.mxu0 0
      %280 = vmatpush1.bf16.msra.mxu0 0
      %281 = vmatprep.subr.bf16.mxu0 0
      %282 = vmatpush1.bf16.msra.mxu0 0
      %283 = vmatprep.subr.bf16.mxu0 0
      %284 = vmatpush1.bf16.msra.mxu0 %v267
      %285 = vmatprep.subr.bf16.mxu0 0
      %286 = vmatpush2.bf16.msra.mxu0 0
      %287 = vmatprep.subr.bf16.mxu0 0
      %288 = vmatpush2.bf16.msra.mxu0 0
      %289 = vmatprep.subr.bf16.mxu0 0
      %290 = vmatpush2.bf16.msra.mxu0 0
      %291 = vmatprep.subr.bf16.mxu0 0
      %292 = vmatpush2.bf16.msra.mxu0 0
      %293 = vmatprep.subr.bf16.mxu0 0
      %294 = vmatpush2.bf16.msra.mxu0 0
      %295 = vmatprep.subr.bf16.mxu0 0
      %296 = vmatpush2.bf16.msra.mxu0 0
      %297 = vmatprep.subr.bf16.mxu0 0
      %298 = vmatpush2.bf16.msra.mxu0 0
      %299 = vmatprep.subr.bf16.mxu0 0
      %300 = vmatpush2.bf16.msra.mxu0 0
      %301 = vmatprep.mubr.bf16.mxu0 0
      %302 = vmatmul.mubr.bf16.gmra.mxu0 %v263
      %v303 = vpop.f32.mrf.mxu0
      %v304 = vadd.f32 0.0, %v303
      %v305 = vpop.f32.mrf.mxu0
      %v306 = vpop.f32.mrf.mxu0
      %v307 = vadd.f32 0.0, %v306
      %v308 = vpop.f32.mrf.mxu0
      %309 = vdwg.mxu0
      %v312 = vunpack.c.l.b16 %v240
      %v313 = vunpack.c.l.b16 %v241
      %v314 = vpack.c.b16 %v313, %v312
      %v316 = vsel %vm261, %v314, 0
      %v319 = vsel %vm265, %v239, 0
      %321 = vmatprep.subr.bf16.mxu0 0
      %322 = vmatpush1.bf16.msra.mxu0 0
      %323 = vmatprep.subr.bf16.mxu0 0
      %324 = vmatpush1.bf16.msra.mxu0 0
      %325 = vmatprep.subr.bf16.mxu0 0
      %326 = vmatpush1.bf16.msra.mxu0 0
      %327 = vmatprep.subr.bf16.mxu0 0
      %328 = vmatpush1.bf16.msra.mxu0 0
      %329 = vmatprep.subr.bf16.mxu0 0
      %330 = vmatpush1.bf16.msra.mxu0 0
      %331 = vmatprep.subr.bf16.mxu0 0
      %332 = vmatpush1.bf16.msra.mxu0 0
      %333 = vmatprep.subr.bf16.mxu0 0
      %334 = vmatpush1.bf16.msra.mxu0 0
      %335 = vmatprep.subr.bf16.mxu0 0
      %336 = vmatpush1.bf16.msra.mxu0 %v319
      %337 = vmatprep.subr.bf16.mxu0 0
      %338 = vmatpush2.bf16.msra.mxu0 0
      %339 = vmatprep.subr.bf16.mxu0 0
      %340 = vmatpush2.bf16.msra.mxu0 0
      %341 = vmatprep.subr.bf16.mxu0 0
      %342 = vmatpush2.bf16.msra.mxu0 0
      %343 = vmatprep.subr.bf16.mxu0 0
      %344 = vmatpush2.bf16.msra.mxu0 0
      %345 = vmatprep.subr.bf16.mxu0 0
      %346 = vmatpush2.bf16.msra.mxu0 0
      %347 = vmatprep.subr.bf16.mxu0 0
      %348 = vmatpush2.bf16.msra.mxu0 0
      %349 = vmatprep.subr.bf16.mxu0 0
      %350 = vmatpush2.bf16.msra.mxu0 0
      %351 = vmatprep.subr.bf16.mxu0 0
      %352 = vmatpush2.bf16.msra.mxu0 0
      %353 = vmatprep.mubr.bf16.mxu0 0
      %354 = vmatmul.mubr.bf16.gmra.mxu0 %v316
      %v355 = vpop.f32.mrf.mxu0
      %v356 = vadd.f32 %v304, %v355
      %v357 = vpop.f32.mrf.mxu0
      %v358 = vpop.f32.mrf.mxu0
      %v359 = vadd.f32 %v307, %v358
      %v360 = vpop.f32.mrf.mxu0
      %361 = vdwg.mxu0
      %s362 = scalar_lea.vmem %s215, 16
      %v363 = vld [vmem:[%s362] sm:$0xf]
      %v364 = vld [vmem:[%s362 + $0x4] sm:$0xf]
      %v367 = vunpack.c.l.b16 %v363
      %v368 = vunpack.c.l.b16 %v364
      %v369 = vpack.c.b16 %v368, %v367
      %370 = vrot.lane.b32.xlu0 %v253, 118
      %v371 = vpop.permute.xlu0 %370
      %372 = vrot.lane.b32.xlu0 %v254, 118
      %v373 = vpop.permute.xlu0 %372
      %vm374 = vcmask 965632
      %v375 = vsel %vm374, %v371, %v373
      %v377 = vsel %vm261, %v369, 0
      %v380 = vsel %vm265, %v375, 0
      %382 = vmatprep.subr.bf16.mxu0 0
      %383 = vmatpush1.bf16.msra.mxu0 0
      %384 = vmatprep.subr.bf16.mxu0 0
      %385 = vmatpush1.bf16.msra.mxu0 0
      %386 = vmatprep.subr.bf16.mxu0 0
      %387 = vmatpush1.bf16.msra.mxu0 0
      %388 = vmatprep.subr.bf16.mxu0 0
      %389 = vmatpush1.bf16.msra.mxu0 0
      %390 = vmatprep.subr.bf16.mxu0 0
      %391 = vmatpush1.bf16.msra.mxu0 0
      %392 = vmatprep.subr.bf16.mxu0 0
      %393 = vmatpush1.bf16.msra.mxu0 0
      %394 = vmatprep.subr.bf16.mxu0 0
      %395 = vmatpush1.bf16.msra.mxu0 0
      %396 = vmatprep.subr.bf16.mxu0 0
      %397 = vmatpush1.bf16.msra.mxu0 %v380
      %398 = vmatprep.subr.bf16.mxu0 0
      %399 = vmatpush2.bf16.msra.mxu0 0
      %400 = vmatprep.subr.bf16.mxu0 0
      %401 = vmatpush2.bf16.msra.mxu0 0
      %402 = vmatprep.subr.bf16.mxu0 0
      %403 = vmatpush2.bf16.msra.mxu0 0
      %404 = vmatprep.subr.bf16.mxu0 0
      %405 = vmatpush2.bf16.msra.mxu0 0
      %406 = vmatprep.subr.bf16.mxu0 0
      %407 = vmatpush2.bf16.msra.mxu0 0
      %408 = vmatprep.subr.bf16.mxu0 0
      %409 = vmatpush2.bf16.msra.mxu0 0
      %410 = vmatprep.subr.bf16.mxu0 0
      %411 = vmatpush2.bf16.msra.mxu0 0
      %412 = vmatprep.subr.bf16.mxu0 0
      %413 = vmatpush2.bf16.msra.mxu0 0
      %414 = vmatprep.mubr.bf16.mxu0 0
      %415 = vmatmul.mubr.bf16.gmra.mxu0 %v377
      %v416 = vpop.f32.mrf.mxu0
      %v417 = vadd.f32 0.0, %v416
      %v418 = vpop.f32.mrf.mxu0
      %v419 = vpop.f32.mrf.mxu0
      %v420 = vadd.f32 0.0, %v419
      %v421 = vpop.f32.mrf.mxu0
      %422 = vdwg.mxu0
      %v423 = vadd.f32 %v356, %v417
      %v424 = vadd.f32 %v359, %v420
      %s425 = scalar_lea.vmem %s215, 24
      %v426 = vld [vmem:[%s425] sm:$0xf]
      %v427 = vld [vmem:[%s425 + $0x4] sm:$0xf]
      %v430 = vunpack.c.l.b16 %v426
      %v431 = vunpack.c.l.b16 %v427
      %v432 = vpack.c.b16 %v431, %v430
      %433 = vrot.lane.b32.xlu0 %v253, 117
      %v434 = vpop.permute.xlu0 %433
      %435 = vrot.lane.b32.xlu0 %v254, 117
      %v436 = vpop.permute.xlu0 %435
      %vm437 = vcmask 957440
      %v438 = vsel %vm437, %v434, %v436
      %v440 = vsel %vm261, %v432, 0
      %v443 = vsel %vm265, %v438, 0
      %445 = vmatprep.subr.bf16.mxu0 0
      %446 = vmatpush1.bf16.msra.mxu0 0
      %447 = vmatprep.subr.bf16.mxu0 0
      %448 = vmatpush1.bf16.msra.mxu0 0
      %449 = vmatprep.subr.bf16.mxu0 0
      %450 = vmatpush1.bf16.msra.mxu0 0
      %451 = vmatprep.subr.bf16.mxu0 0
      %452 = vmatpush1.bf16.msra.mxu0 0
      %453 = vmatprep.subr.bf16.mxu0 0
      %454 = vmatpush1.bf16.msra.mxu0 0
      %455 = vmatprep.subr.bf16.mxu0 0
      %456 = vmatpush1.bf16.msra.mxu0 0
      %457 = vmatprep.subr.bf16.mxu0 0
      %458 = vmatpush1.bf16.msra.mxu0 0
      %459 = vmatprep.subr.bf16.mxu0 0
      %460 = vmatpush1.bf16.msra.mxu0 %v443
      %461 = vmatprep.subr.bf16.mxu0 0
      %462 = vmatpush2.bf16.msra.mxu0 0
      %463 = vmatprep.subr.bf16.mxu0 0
      %464 = vmatpush2.bf16.msra.mxu0 0
      %465 = vmatprep.subr.bf16.mxu0 0
      %466 = vmatpush2.bf16.msra.mxu0 0
      %467 = vmatprep.subr.bf16.mxu0 0
      %468 = vmatpush2.bf16.msra.mxu0 0
      %469 = vmatprep.subr.bf16.mxu0 0
      %470 = vmatpush2.bf16.msra.mxu0 0
      %471 = vmatprep.subr.bf16.mxu0 0
      %472 = vmatpush2.bf16.msra.mxu0 0
      %473 = vmatprep.subr.bf16.mxu0 0
      %474 = vmatpush2.bf16.msra.mxu0 0
      %475 = vmatprep.subr.bf16.mxu0 0
      %476 = vmatpush2.bf16.msra.mxu0 0
      %477 = vmatprep.mubr.bf16.mxu0 0
      %478 = vmatmul.mubr.bf16.gmra.mxu0 %v440
      %v479 = vpop.f32.mrf.mxu0
      %v480 = vadd.f32 0.0, %v479
      %v481 = vpop.f32.mrf.mxu0
      %v482 = vpop.f32.mrf.mxu0
      %v483 = vadd.f32 0.0, %v482
      %v484 = vpop.f32.mrf.mxu0
      %485 = vdwg.mxu0
      %v486 = vadd.f32 %v423, %v480
      %v487 = vadd.f32 %v424, %v483
      %s488 = scalar_lea.vmem %s227, 8
      %v489 = vld [vmem:[%s488] sm:$0xff]
      %s490 = scalar_lea.vmem %s215, 32
      %v491 = vld [vmem:[%s490] sm:$0xf]
      %v492 = vld [vmem:[%s490 + $0x4] sm:$0xf]
      %v495 = vunpack.c.l.b16 %v491
      %v496 = vunpack.c.l.b16 %v492
      %v497 = vpack.c.b16 %v496, %v495
      %v499 = vsel %vm261, %v497, 0
      %v502 = vsel %vm265, %v489, 0
      %504 = vmatprep.subr.bf16.mxu0 0
      %505 = vmatpush1.bf16.msra.mxu0 0
      %506 = vmatprep.subr.bf16.mxu0 0
      %507 = vmatpush1.bf16.msra.mxu0 0
      %508 = vmatprep.subr.bf16.mxu0 0
      %509 = vmatpush1.bf16.msra.mxu0 0
      %510 = vmatprep.subr.bf16.mxu0 0
      %511 = vmatpush1.bf16.msra.mxu0 0
      %512 = vmatprep.subr.bf16.mxu0 0
      %513 = vmatpush1.bf16.msra.mxu0 0
      %514 = vmatprep.subr.bf16.mxu0 0
      %515 = vmatpush1.bf16.msra.mxu0 0
      %516 = vmatprep.subr.bf16.mxu0 0
      %517 = vmatpush1.bf16.msra.mxu0 0
      %518 = vmatprep.subr.bf16.mxu0 0
      %519 = vmatpush1.bf16.msra.mxu0 %v502
      %520 = vmatprep.subr.bf16.mxu0 0
      %521 = vmatpush2.bf16.msra.mxu0 0
      %522 = vmatprep.subr.bf16.mxu0 0
      %523 = vmatpush2.bf16.msra.mxu0 0
      %524 = vmatprep.subr.bf16.mxu0 0
      %525 = vmatpush2.bf16.msra.mxu0 0
      %526 = vmatprep.subr.bf16.mxu0 0
      %527 = vmatpush2.bf16.msra.mxu0 0
      %528 = vmatprep.subr.bf16.mxu0 0
      %529 = vmatpush2.bf16.msra.mxu0 0
      %530 = vmatprep.subr.bf16.mxu0 0
      %531 = vmatpush2.bf16.msra.mxu0 0
      %532 = vmatprep.subr.bf16.mxu0 0
      %533 = vmatpush2.bf16.msra.mxu0 0
      %534 = vmatprep.subr.bf16.mxu0 0
      %535 = vmatpush2.bf16.msra.mxu0 0
      %536 = vmatprep.mubr.bf16.mxu0 0
      %537 = vmatmul.mubr.bf16.gmra.mxu0 %v499
      %v538 = vpop.f32.mrf.mxu0
      %v539 = vadd.f32 0.0, %v538
      %v540 = vpop.f32.mrf.mxu0
      %v541 = vpop.f32.mrf.mxu0
      %v542 = vadd.f32 0.0, %v541
      %v543 = vpop.f32.mrf.mxu0
      %544 = vdwg.mxu0
      %v545 = vadd.f32 %v486, %v539
      %v546 = vadd.f32 %v487, %v542
      %s547 = scalar_lea.vmem %s215, 40
      %v548 = vld [vmem:[%s547] sm:$0xf]
      %v549 = vld [vmem:[%s547 + $0x4] sm:$0xf]
      %v552 = vunpack.c.l.b16 %v548
      %v553 = vunpack.c.l.b16 %v549
      %v554 = vpack.c.b16 %v553, %v552
      %v556 = vunpack.c.l.b16 %v489
      %v557 = vunpack.c.h.b16 %v489
      %v558 = vpack.c.b16 %v556, %v556
      %v559 = vpack.c.b16 %v557, %v557
      %560 = vrot.lane.b32.xlu0 %v558, 127
      %v561 = vpop.permute.xlu0 %560
      %562 = vrot.lane.b32.xlu0 %v559, 127
      %v563 = vpop.permute.xlu0 %562
      %v564 = vsel %vm259, %v561, %v563
      %v566 = vsel %vm261, %v554, 0
      %v569 = vsel %vm265, %v564, 0
      %571 = vmatprep.subr.bf16.mxu0 0
      %572 = vmatpush1.bf16.msra.mxu0 0
      %573 = vmatprep.subr.bf16.mxu0 0
      %574 = vmatpush1.bf16.msra.mxu0 0
      %575 = vmatprep.subr.bf16.mxu0 0
      %576 = vmatpush1.bf16.msra.mxu0 0
      %577 = vmatprep.subr.bf16.mxu0 0
      %578 = vmatpush1.bf16.msra.mxu0 0
      %579 = vmatprep.subr.bf16.mxu0 0
      %580 = vmatpush1.bf16.msra.mxu0 0
      %581 = vmatprep.subr.bf16.mxu0 0
      %582 = vmatpush1.bf16.msra.mxu0 0
      %583 = vmatprep.subr.bf16.mxu0 0
      %584 = vmatpush1.bf16.msra.mxu0 0
      %585 = vmatprep.subr.bf16.mxu0 0
      %586 = vmatpush1.bf16.msra.mxu0 %v569
      %587 = vmatprep.subr.bf16.mxu0 0
      %588 = vmatpush2.bf16.msra.mxu0 0
      %589 = vmatprep.subr.bf16.mxu0 0
      %590 = vmatpush2.bf16.msra.mxu0 0
      %591 = vmatprep.subr.bf16.mxu0 0
      %592 = vmatpush2.bf16.msra.mxu0 0
      %593 = vmatprep.subr.bf16.mxu0 0
      %594 = vmatpush2.bf16.msra.mxu0 0
      %595 = vmatprep.subr.bf16.mxu0 0
      %596 = vmatpush2.bf16.msra.mxu0 0
      %597 = vmatprep.subr.bf16.mxu0 0
      %598 = vmatpush2.bf16.msra.mxu0 0
      %599 = vmatprep.subr.bf16.mxu0 0
      %600 = vmatpush2.bf16.msra.mxu0 0
      %601 = vmatprep.subr.bf16.mxu0 0
      %602 = vmatpush2.bf16.msra.mxu0 0
      %603 = vmatprep.mubr.bf16.mxu0 0
      %604 = vmatmul.mubr.bf16.gmra.mxu0 %v566
      %v605 = vpop.f32.mrf.mxu0
      %v606 = vadd.f32 0.0, %v605
      %v607 = vpop.f32.mrf.mxu0
      %v608 = vpop.f32.mrf.mxu0
      %v609 = vadd.f32 0.0, %v608
      %v610 = vpop.f32.mrf.mxu0
      %611 = vdwg.mxu0
      %v612 = vadd.f32 %v545, %v606
      %v613 = vadd.f32 %v546, %v609
      %s614 = scalar_lea.vmem %s215, 48
      %v615 = vld [vmem:[%s614] sm:$0xf]
      %v616 = vld [vmem:[%s614 + $0x4] sm:$0xf]
      %v619 = vunpack.c.l.b16 %v615
      %v620 = vunpack.c.l.b16 %v616
      %v621 = vpack.c.b16 %v620, %v619
      %622 = vrot.lane.b32.xlu0 %v558, 118
      %v623 = vpop.permute.xlu0 %622
      %624 = vrot.lane.b32.xlu0 %v559, 118
      %v625 = vpop.permute.xlu0 %624
      %v626 = vsel %vm374, %v623, %v625
      %v628 = vsel %vm261, %v621, 0
      %v631 = vsel %vm265, %v626, 0
      %633 = vmatprep.subr.bf16.mxu0 0
      %634 = vmatpush1.bf16.msra.mxu0 0
      %635 = vmatprep.subr.bf16.mxu0 0
      %636 = vmatpush1.bf16.msra.mxu0 0
      %637 = vmatprep.subr.bf16.mxu0 0
      %638 = vmatpush1.bf16.msra.mxu0 0
      %639 = vmatprep.subr.bf16.mxu0 0
      %640 = vmatpush1.bf16.msra.mxu0 0
      %641 = vmatprep.subr.bf16.mxu0 0
      %642 = vmatpush1.bf16.msra.mxu0 0
      %643 = vmatprep.subr.bf16.mxu0 0
      %644 = vmatpush1.bf16.msra.mxu0 0
      %645 = vmatprep.subr.bf16.mxu0 0
      %646 = vmatpush1.bf16.msra.mxu0 0
      %647 = vmatprep.subr.bf16.mxu0 0
      %648 = vmatpush1.bf16.msra.mxu0 %v631
      %649 = vmatprep.subr.bf16.mxu0 0
      %650 = vmatpush2.bf16.msra.mxu0 0
      %651 = vmatprep.subr.bf16.mxu0 0
      %652 = vmatpush2.bf16.msra.mxu0 0
      %653 = vmatprep.subr.bf16.mxu0 0
      %654 = vmatpush2.bf16.msra.mxu0 0
      %655 = vmatprep.subr.bf16.mxu0 0
      %656 = vmatpush2.bf16.msra.mxu0 0
      %657 = vmatprep.subr.bf16.mxu0 0
      %658 = vmatpush2.bf16.msra.mxu0 0
      %659 = vmatprep.subr.bf16.mxu0 0
      %660 = vmatpush2.bf16.msra.mxu0 0
      %661 = vmatprep.subr.bf16.mxu0 0
      %662 = vmatpush2.bf16.msra.mxu0 0
      %663 = vmatprep.subr.bf16.mxu0 0
      %664 = vmatpush2.bf16.msra.mxu0 0
      %665 = vmatprep.mubr.bf16.mxu0 0
      %666 = vmatmul.mubr.bf16.gmra.mxu0 %v628
      %v667 = vpop.f32.mrf.mxu0
      %v668 = vadd.f32 0.0, %v667
      %v669 = vpop.f32.mrf.mxu0
      %v670 = vpop.f32.mrf.mxu0
      %v671 = vadd.f32 0.0, %v670
      %v672 = vpop.f32.mrf.mxu0
      %673 = vdwg.mxu0
      %v674 = vadd.f32 %v612, %v668
      %v675 = vadd.f32 %v613, %v671
      %s676 = scalar_lea.vmem %s215, 56
      %v677 = vld [vmem:[%s676] sm:$0xf]
      %v678 = vld [vmem:[%s676 + $0x4] sm:$0xf]
      %v681 = vunpack.c.l.b16 %v677
      %v682 = vunpack.c.l.b16 %v678
      %v683 = vpack.c.b16 %v682, %v681
      %684 = vrot.lane.b32.xlu0 %v558, 117
      %v685 = vpop.permute.xlu0 %684
      %686 = vrot.lane.b32.xlu0 %v559, 117
      %v687 = vpop.permute.xlu0 %686
      %v688 = vsel %vm437, %v685, %v687
      %v690 = vsel %vm261, %v683, 0
      %v693 = vsel %vm265, %v688, 0
      %695 = vmatprep.subr.bf16.mxu0 0
      %696 = vmatpush1.bf16.msra.mxu0 0
      %697 = vmatprep.subr.bf16.mxu0 0
      %698 = vmatpush1.bf16.msra.mxu0 0
      %699 = vmatprep.subr.bf16.mxu0 0
      %700 = vmatpush1.bf16.msra.mxu0 0
      %701 = vmatprep.subr.bf16.mxu0 0
      %702 = vmatpush1.bf16.msra.mxu0 0
      %703 = vmatprep.subr.bf16.mxu0 0
      %704 = vmatpush1.bf16.msra.mxu0 0
      %705 = vmatprep.subr.bf16.mxu0 0
      %706 = vmatpush1.bf16.msra.mxu0 0
      %707 = vmatprep.subr.bf16.mxu0 0
      %708 = vmatpush1.bf16.msra.mxu0 0
      %709 = vmatprep.subr.bf16.mxu0 0
      %710 = vmatpush1.bf16.msra.mxu0 %v693
      %711 = vmatprep.subr.bf16.mxu0 0
      %712 = vmatpush2.bf16.msra.mxu0 0
      %713 = vmatprep.subr.bf16.mxu0 0
      %714 = vmatpush2.bf16.msra.mxu0 0
      %715 = vmatprep.subr.bf16.mxu0 0
      %716 = vmatpush2.bf16.msra.mxu0 0
      %717 = vmatprep.subr.bf16.mxu0 0
      %718 = vmatpush2.bf16.msra.mxu0 0
      %719 = vmatprep.subr.bf16.mxu0 0
      %720 = vmatpush2.bf16.msra.mxu0 0
      %721 = vmatprep.subr.bf16.mxu0 0
      %722 = vmatpush2.bf16.msra.mxu0 0
      %723 = vmatprep.subr.bf16.mxu0 0
      %724 = vmatpush2.bf16.msra.mxu0 0
      %725 = vmatprep.subr.bf16.mxu0 0
      %726 = vmatpush2.bf16.msra.mxu0 0
      %727 = vmatprep.mubr.bf16.mxu0 0
      %728 = vmatmul.mubr.bf16.gmra.mxu0 %v690
      %v729 = vpop.f32.mrf.mxu0
      %v730 = vadd.f32 0.0, %v729
      %v731 = vpop.f32.mrf.mxu0
      %v732 = vpop.f32.mrf.mxu0
      %v733 = vadd.f32 0.0, %v732
      %v734 = vpop.f32.mrf.mxu0
      %735 = vdwg.mxu0
      %v736 = vadd.f32 %v674, %v730
      %v737 = vadd.f32 %v675, %v733
      %s738 = scalar_lea.vmem %s227, 16
      %v739 = vld [vmem:[%s738] sm:$0xff]
      %s740 = scalar_lea.vmem %s215, 64
      %v741 = vld [vmem:[%s740] sm:$0xf]
      %v742 = vld [vmem:[%s740 + $0x4] sm:$0xf]
      %v745 = vunpack.c.l.b16 %v741
      %v746 = vunpack.c.l.b16 %v742
      %v747 = vpack.c.b16 %v746, %v745
      %v749 = vsel %vm261, %v747, 0
      %v752 = vsel %vm265, %v739, 0
      %754 = vmatprep.subr.bf16.mxu0 0
      %755 = vmatpush1.bf16.msra.mxu0 0
      %756 = vmatprep.subr.bf16.mxu0 0
      %757 = vmatpush1.bf16.msra.mxu0 0
      %758 = vmatprep.subr.bf16.mxu0 0
      %759 = vmatpush1.bf16.msra.mxu0 0
      %760 = vmatprep.subr.bf16.mxu0 0
      %761 = vmatpush1.bf16.msra.mxu0 0
      %762 = vmatprep.subr.bf16.mxu0 0
      %763 = vmatpush1.bf16.msra.mxu0 0
      %764 = vmatprep.subr.bf16.mxu0 0
      %765 = vmatpush1.bf16.msra.mxu0 0
      %766 = vmatprep.subr.bf16.mxu0 0
      %767 = vmatpush1.bf16.msra.mxu0 0
      %768 = vmatprep.subr.bf16.mxu0 0
      %769 = vmatpush1.bf16.msra.mxu0 %v752
      %770 = vmatprep.subr.bf16.mxu0 0
      %771 = vmatpush2.bf16.msra.mxu0 0
      %772 = vmatprep.subr.bf16.mxu0 0
      %773 = vmatpush2.bf16.msra.mxu0 0
      %774 = vmatprep.subr.bf16.mxu0 0
      %775 = vmatpush2.bf16.msra.mxu0 0
      %776 = vmatprep.subr.bf16.mxu0 0
      %777 = vmatpush2.bf16.msra.mxu0 0
      %778 = vmatprep.subr.bf16.mxu0 0
      %779 = vmatpush2.bf16.msra.mxu0 0
      %780 = vmatprep.subr.bf16.mxu0 0
      %781 = vmatpush2.bf16.msra.mxu0 0
      %782 = vmatprep.subr.bf16.mxu0 0
      %783 = vmatpush2.bf16.msra.mxu0 0
      %784 = vmatprep.subr.bf16.mxu0 0
      %785 = vmatpush2.bf16.msra.mxu0 0
      %786 = vmatprep.mubr.bf16.mxu0 0
      %787 = vmatmul.mubr.bf16.gmra.mxu0 %v749
      %v788 = vpop.f32.mrf.mxu0
      %v789 = vadd.f32 0.0, %v788
      %v790 = vpop.f32.mrf.mxu0
      %v791 = vpop.f32.mrf.mxu0
      %v792 = vadd.f32 0.0, %v791
      %v793 = vpop.f32.mrf.mxu0
      %794 = vdwg.mxu0
      %v795 = vadd.f32 %v736, %v789
      %v796 = vadd.f32 %v737, %v792
      %s797 = scalar_lea.vmem %s215, 72
      %v798 = vld [vmem:[%s797] sm:$0xf]
      %v799 = vld [vmem:[%s797 + $0x4] sm:$0xf]
      %v802 = vunpack.c.l.b16 %v798
      %v803 = vunpack.c.l.b16 %v799
      %v804 = vpack.c.b16 %v803, %v802
      %v806 = vunpack.c.l.b16 %v739
      %v807 = vunpack.c.h.b16 %v739
      %v808 = vpack.c.b16 %v806, %v806
      %v809 = vpack.c.b16 %v807, %v807
      %810 = vrot.lane.b32.xlu0 %v808, 127
      %v811 = vpop.permute.xlu0 %810
      %812 = vrot.lane.b32.xlu0 %v809, 127
      %v813 = vpop.permute.xlu0 %812
      %v814 = vsel %vm259, %v811, %v813
      %v816 = vsel %vm261, %v804, 0
      %v819 = vsel %vm265, %v814, 0
      %821 = vmatprep.subr.bf16.mxu0 0
      %822 = vmatpush1.bf16.msra.mxu0 0
      %823 = vmatprep.subr.bf16.mxu0 0
      %824 = vmatpush1.bf16.msra.mxu0 0
      %825 = vmatprep.subr.bf16.mxu0 0
      %826 = vmatpush1.bf16.msra.mxu0 0
      %827 = vmatprep.subr.bf16.mxu0 0
      %828 = vmatpush1.bf16.msra.mxu0 0
      %829 = vmatprep.subr.bf16.mxu0 0
      %830 = vmatpush1.bf16.msra.mxu0 0
      %831 = vmatprep.subr.bf16.mxu0 0
      %832 = vmatpush1.bf16.msra.mxu0 0
      %833 = vmatprep.subr.bf16.mxu0 0
      %834 = vmatpush1.bf16.msra.mxu0 0
      %835 = vmatprep.subr.bf16.mxu0 0
      %836 = vmatpush1.bf16.msra.mxu0 %v819
      %837 = vmatprep.subr.bf16.mxu0 0
      %838 = vmatpush2.bf16.msra.mxu0 0
      %839 = vmatprep.subr.bf16.mxu0 0
      %840 = vmatpush2.bf16.msra.mxu0 0
      %841 = vmatprep.subr.bf16.mxu0 0
      %842 = vmatpush2.bf16.msra.mxu0 0
      %843 = vmatprep.subr.bf16.mxu0 0
      %844 = vmatpush2.bf16.msra.mxu0 0
      %845 = vmatprep.subr.bf16.mxu0 0
      %846 = vmatpush2.bf16.msra.mxu0 0
      %847 = vmatprep.subr.bf16.mxu0 0
      %848 = vmatpush2.bf16.msra.mxu0 0
      %849 = vmatprep.subr.bf16.mxu0 0
      %850 = vmatpush2.bf16.msra.mxu0 0
      %851 = vmatprep.subr.bf16.mxu0 0
      %852 = vmatpush2.bf16.msra.mxu0 0
      %853 = vmatprep.mubr.bf16.mxu0 0
      %854 = vmatmul.mubr.bf16.gmra.mxu0 %v816
      %v855 = vpop.f32.mrf.mxu0
      %v856 = vadd.f32 0.0, %v855
      %v857 = vpop.f32.mrf.mxu0
      %v858 = vpop.f32.mrf.mxu0
      %v859 = vadd.f32 0.0, %v858
      %v860 = vpop.f32.mrf.mxu0
      %861 = vdwg.mxu0
      %v862 = vadd.f32 %v795, %v856
      %v863 = vadd.f32 %v796, %v859
      %s864 = scalar_lea.vmem %s215, 80
      %v865 = vld [vmem:[%s864] sm:$0xf]
      %v866 = vld [vmem:[%s864 + $0x4] sm:$0xf]
      %v869 = vunpack.c.l.b16 %v865
      %v870 = vunpack.c.l.b16 %v866
      %v871 = vpack.c.b16 %v870, %v869
      %872 = vrot.lane.b32.xlu0 %v808, 118
      %v873 = vpop.permute.xlu0 %872
      %874 = vrot.lane.b32.xlu0 %v809, 118
      %v875 = vpop.permute.xlu0 %874
      %v876 = vsel %vm374, %v873, %v875
      %v878 = vsel %vm261, %v871, 0
      %v881 = vsel %vm265, %v876, 0
      %883 = vmatprep.subr.bf16.mxu0 0
      %884 = vmatpush1.bf16.msra.mxu0 0
      %885 = vmatprep.subr.bf16.mxu0 0
      %886 = vmatpush1.bf16.msra.mxu0 0
      %887 = vmatprep.subr.bf16.mxu0 0
      %888 = vmatpush1.bf16.msra.mxu0 0
      %889 = vmatprep.subr.bf16.mxu0 0
      %890 = vmatpush1.bf16.msra.mxu0 0
      %891 = vmatprep.subr.bf16.mxu0 0
      %892 = vmatpush1.bf16.msra.mxu0 0
      %893 = vmatprep.subr.bf16.mxu0 0
      %894 = vmatpush1.bf16.msra.mxu0 0
      %895 = vmatprep.subr.bf16.mxu0 0
      %896 = vmatpush1.bf16.msra.mxu0 0
      %897 = vmatprep.subr.bf16.mxu0 0
      %898 = vmatpush1.bf16.msra.mxu0 %v881
      %899 = vmatprep.subr.bf16.mxu0 0
      %900 = vmatpush2.bf16.msra.mxu0 0
      %901 = vmatprep.subr.bf16.mxu0 0
      %902 = vmatpush2.bf16.msra.mxu0 0
      %903 = vmatprep.subr.bf16.mxu0 0
      %904 = vmatpush2.bf16.msra.mxu0 0
      %905 = vmatprep.subr.bf16.mxu0 0
      %906 = vmatpush2.bf16.msra.mxu0 0
      %907 = vmatprep.subr.bf16.mxu0 0
      %908 = vmatpush2.bf16.msra.mxu0 0
      %909 = vmatprep.subr.bf16.mxu0 0
      %910 = vmatpush2.bf16.msra.mxu0 0
      %911 = vmatprep.subr.bf16.mxu0 0
      %912 = vmatpush2.bf16.msra.mxu0 0
      %913 = vmatprep.subr.bf16.mxu0 0
      %914 = vmatpush2.bf16.msra.mxu0 0
      %915 = vmatprep.mubr.bf16.mxu0 0
      %916 = vmatmul.mubr.bf16.gmra.mxu0 %v878
      %v917 = vpop.f32.mrf.mxu0
      %v918 = vadd.f32 0.0, %v917
      %v919 = vpop.f32.mrf.mxu0
      %v920 = vpop.f32.mrf.mxu0
      %v921 = vadd.f32 0.0, %v920
      %v922 = vpop.f32.mrf.mxu0
      %923 = vdwg.mxu0
      %v924 = vadd.f32 %v862, %v918
      %v925 = vadd.f32 %v863, %v921
      %s926 = scalar_lea.vmem %s215, 88
      %v927 = vld [vmem:[%s926] sm:$0xf]
      %v928 = vld [vmem:[%s926 + $0x4] sm:$0xf]
      %v931 = vunpack.c.l.b16 %v927
      %v932 = vunpack.c.l.b16 %v928
      %v933 = vpack.c.b16 %v932, %v931
      %934 = vrot.lane.b32.xlu0 %v808, 117
      %v935 = vpop.permute.xlu0 %934
      %936 = vrot.lane.b32.xlu0 %v809, 117
      %v937 = vpop.permute.xlu0 %936
      %v938 = vsel %vm437, %v935, %v937
      %v940 = vsel %vm261, %v933, 0
      %v943 = vsel %vm265, %v938, 0
      %945 = vmatprep.subr.bf16.mxu0 0
      %946 = vmatpush1.bf16.msra.mxu0 0
      %947 = vmatprep.subr.bf16.mxu0 0
      %948 = vmatpush1.bf16.msra.mxu0 0
      %949 = vmatprep.subr.bf16.mxu0 0
      %950 = vmatpush1.bf16.msra.mxu0 0
      %951 = vmatprep.subr.bf16.mxu0 0
      %952 = vmatpush1.bf16.msra.mxu0 0
      %953 = vmatprep.subr.bf16.mxu0 0
      %954 = vmatpush1.bf16.msra.mxu0 0
      %955 = vmatprep.subr.bf16.mxu0 0
      %956 = vmatpush1.bf16.msra.mxu0 0
      %957 = vmatprep.subr.bf16.mxu0 0
      %958 = vmatpush1.bf16.msra.mxu0 0
      %959 = vmatprep.subr.bf16.mxu0 0
      %960 = vmatpush1.bf16.msra.mxu0 %v943
      %961 = vmatprep.subr.bf16.mxu0 0
      %962 = vmatpush2.bf16.msra.mxu0 0
      %963 = vmatprep.subr.bf16.mxu0 0
      %964 = vmatpush2.bf16.msra.mxu0 0
      %965 = vmatprep.subr.bf16.mxu0 0
      %966 = vmatpush2.bf16.msra.mxu0 0
      %967 = vmatprep.subr.bf16.mxu0 0
      %968 = vmatpush2.bf16.msra.mxu0 0
      %969 = vmatprep.subr.bf16.mxu0 0
      %970 = vmatpush2.bf16.msra.mxu0 0
      %971 = vmatprep.subr.bf16.mxu0 0
      %972 = vmatpush2.bf16.msra.mxu0 0
      %973 = vmatprep.subr.bf16.mxu0 0
      %974 = vmatpush2.bf16.msra.mxu0 0
      %975 = vmatprep.subr.bf16.mxu0 0
      %976 = vmatpush2.bf16.msra.mxu0 0
      %977 = vmatprep.mubr.bf16.mxu0 0
      %978 = vmatmul.mubr.bf16.gmra.mxu0 %v940
      %v979 = vpop.f32.mrf.mxu0
      %v980 = vadd.f32 0.0, %v979
      %v981 = vpop.f32.mrf.mxu0
      %v982 = vpop.f32.mrf.mxu0
      %v983 = vadd.f32 0.0, %v982
      %v984 = vpop.f32.mrf.mxu0
      %985 = vdwg.mxu0
      %v986 = vadd.f32 %v924, %v980
      %v987 = vadd.f32 %v925, %v983
      %s988 = scalar_lea.vmem %s227, 24
      %v989 = vld [vmem:[%s988] sm:$0xff]
      %s990 = scalar_lea.vmem %s215, 96
      %v991 = vld [vmem:[%s990] sm:$0xf]
      %v992 = vld [vmem:[%s990 + $0x4] sm:$0xf]
      %v995 = vunpack.c.l.b16 %v991
      %v996 = vunpack.c.l.b16 %v992
      %v997 = vpack.c.b16 %v996, %v995
      %v999 = vsel %vm261, %v997, 0
      %v1002 = vsel %vm265, %v989, 0
      %1004 = vmatprep.subr.bf16.mxu0 0
      %1005 = vmatpush1.bf16.msra.mxu0 0
      %1006 = vmatprep.subr.bf16.mxu0 0
      %1007 = vmatpush1.bf16.msra.mxu0 0
      %1008 = vmatprep.subr.bf16.mxu0 0
      %1009 = vmatpush1.bf16.msra.mxu0 0
      %1010 = vmatprep.subr.bf16.mxu0 0
      %1011 = vmatpush1.bf16.msra.mxu0 0
      %1012 = vmatprep.subr.bf16.mxu0 0
      %1013 = vmatpush1.bf16.msra.mxu0 0
      %1014 = vmatprep.subr.bf16.mxu0 0
      %1015 = vmatpush1.bf16.msra.mxu0 0
      %1016 = vmatprep.subr.bf16.mxu0 0
      %1017 = vmatpush1.bf16.msra.mxu0 0
      %1018 = vmatprep.subr.bf16.mxu0 0
      %1019 = vmatpush1.bf16.msra.mxu0 %v1002
      %1020 = vmatprep.subr.bf16.mxu0 0
      %1021 = vmatpush2.bf16.msra.mxu0 0
      %1022 = vmatprep.subr.bf16.mxu0 0
      %1023 = vmatpush2.bf16.msra.mxu0 0
      %1024 = vmatprep.subr.bf16.mxu0 0
      %1025 = vmatpush2.bf16.msra.mxu0 0
      %1026 = vmatprep.subr.bf16.mxu0 0
      %1027 = vmatpush2.bf16.msra.mxu0 0
      %1028 = vmatprep.subr.bf16.mxu0 0
      %1029 = vmatpush2.bf16.msra.mxu0 0
      %1030 = vmatprep.subr.bf16.mxu0 0
      %1031 = vmatpush2.bf16.msra.mxu0 0
      %1032 = vmatprep.subr.bf16.mxu0 0
      %1033 = vmatpush2.bf16.msra.mxu0 0
      %1034 = vmatprep.subr.bf16.mxu0 0
      %1035 = vmatpush2.bf16.msra.mxu0 0
      %1036 = vmatprep.mubr.bf16.mxu0 0
      %1037 = vmatmul.mubr.bf16.gmra.mxu0 %v999
      %v1038 = vpop.f32.mrf.mxu0
      %v1039 = vadd.f32 0.0, %v1038
      %v1040 = vpop.f32.mrf.mxu0
      %v1041 = vpop.f32.mrf.mxu0
      %v1042 = vadd.f32 0.0, %v1041
      %v1043 = vpop.f32.mrf.mxu0
      %1044 = vdwg.mxu0
      %v1045 = vadd.f32 %v986, %v1039
      %v1046 = vadd.f32 %v987, %v1042
      %s1047 = scalar_lea.vmem %s215, 104
      %v1048 = vld [vmem:[%s1047] sm:$0xf]
      %v1049 = vld [vmem:[%s1047 + $0x4] sm:$0xf]
      %v1052 = vunpack.c.l.b16 %v1048
      %v1053 = vunpack.c.l.b16 %v1049
      %v1054 = vpack.c.b16 %v1053, %v1052
      %v1056 = vunpack.c.l.b16 %v989
      %v1057 = vunpack.c.h.b16 %v989
      %v1058 = vpack.c.b16 %v1056, %v1056
      %v1059 = vpack.c.b16 %v1057, %v1057
      %1060 = vrot.lane.b32.xlu0 %v1058, 127
      %v1061 = vpop.permute.xlu0 %1060
      %1062 = vrot.lane.b32.xlu0 %v1059, 127
      %v1063 = vpop.permute.xlu0 %1062
      %v1064 = vsel %vm259, %v1061, %v1063
      %v1066 = vsel %vm261, %v1054, 0
      %v1069 = vsel %vm265, %v1064, 0
      %1071 = vmatprep.subr.bf16.mxu0 0
      %1072 = vmatpush1.bf16.msra.mxu0 0
      %1073 = vmatprep.subr.bf16.mxu0 0
      %1074 = vmatpush1.bf16.msra.mxu0 0
      %1075 = vmatprep.subr.bf16.mxu0 0
      %1076 = vmatpush1.bf16.msra.mxu0 0
      %1077 = vmatprep.subr.bf16.mxu0 0
      %1078 = vmatpush1.bf16.msra.mxu0 0
      %1079 = vmatprep.subr.bf16.mxu0 0
      %1080 = vmatpush1.bf16.msra.mxu0 0
      %1081 = vmatprep.subr.bf16.mxu0 0
      %1082 = vmatpush1.bf16.msra.mxu0 0
      %1083 = vmatprep.subr.bf16.mxu0 0
      %1084 = vmatpush1.bf16.msra.mxu0 0
      %1085 = vmatprep.subr.bf16.mxu0 0
      %1086 = vmatpush1.bf16.msra.mxu0 %v1069
      %1087 = vmatprep.subr.bf16.mxu0 0
      %1088 = vmatpush2.bf16.msra.mxu0 0
      %1089 = vmatprep.subr.bf16.mxu0 0
      %1090 = vmatpush2.bf16.msra.mxu0 0
      %1091 = vmatprep.subr.bf16.mxu0 0
      %1092 = vmatpush2.bf16.msra.mxu0 0
      %1093 = vmatprep.subr.bf16.mxu0 0
      %1094 = vmatpush2.bf16.msra.mxu0 0
      %1095 = vmatprep.subr.bf16.mxu0 0
      %1096 = vmatpush2.bf16.msra.mxu0 0
      %1097 = vmatprep.subr.bf16.mxu0 0
      %1098 = vmatpush2.bf16.msra.mxu0 0
      %1099 = vmatprep.subr.bf16.mxu0 0
      %1100 = vmatpush2.bf16.msra.mxu0 0
      %1101 = vmatprep.subr.bf16.mxu0 0
      %1102 = vmatpush2.bf16.msra.mxu0 0
      %1103 = vmatprep.mubr.bf16.mxu0 0
      %1104 = vmatmul.mubr.bf16.gmra.mxu0 %v1066
      %v1105 = vpop.f32.mrf.mxu0
      %v1106 = vadd.f32 0.0, %v1105
      %v1107 = vpop.f32.mrf.mxu0
      %v1108 = vpop.f32.mrf.mxu0
      %v1109 = vadd.f32 0.0, %v1108
      %v1110 = vpop.f32.mrf.mxu0
      %1111 = vdwg.mxu0
      %v1112 = vadd.f32 %v1045, %v1106
      %v1113 = vadd.f32 %v1046, %v1109
      %s1114 = scalar_lea.vmem %s215, 112
      %v1115 = vld [vmem:[%s1114] sm:$0xf]
      %v1116 = vld [vmem:[%s1114 + $0x4] sm:$0xf]
      %v1119 = vunpack.c.l.b16 %v1115
      %v1120 = vunpack.c.l.b16 %v1116
      %v1121 = vpack.c.b16 %v1120, %v1119
      %1122 = vrot.lane.b32.xlu0 %v1058, 118
      %v1123 = vpop.permute.xlu0 %1122
      %1124 = vrot.lane.b32.xlu0 %v1059, 118
      %v1125 = vpop.permute.xlu0 %1124
      %v1126 = vsel %vm374, %v1123, %v1125
      %v1128 = vsel %vm261, %v1121, 0
      %v1131 = vsel %vm265, %v1126, 0
      %1133 = vmatprep.subr.bf16.mxu0 0
      %1134 = vmatpush1.bf16.msra.mxu0 0
      %1135 = vmatprep.subr.bf16.mxu0 0
      %1136 = vmatpush1.bf16.msra.mxu0 0
      %1137 = vmatprep.subr.bf16.mxu0 0
      %1138 = vmatpush1.bf16.msra.mxu0 0
      %1139 = vmatprep.subr.bf16.mxu0 0
      %1140 = vmatpush1.bf16.msra.mxu0 0
      %1141 = vmatprep.subr.bf16.mxu0 0
      %1142 = vmatpush1.bf16.msra.mxu0 0
      %1143 = vmatprep.subr.bf16.mxu0 0
      %1144 = vmatpush1.bf16.msra.mxu0 0
      %1145 = vmatprep.subr.bf16.mxu0 0
      %1146 = vmatpush1.bf16.msra.mxu0 0
      %1147 = vmatprep.subr.bf16.mxu0 0
      %1148 = vmatpush1.bf16.msra.mxu0 %v1131
      %1149 = vmatprep.subr.bf16.mxu0 0
      %1150 = vmatpush2.bf16.msra.mxu0 0
      %1151 = vmatprep.subr.bf16.mxu0 0
      %1152 = vmatpush2.bf16.msra.mxu0 0
      %1153 = vmatprep.subr.bf16.mxu0 0
      %1154 = vmatpush2.bf16.msra.mxu0 0
      %1155 = vmatprep.subr.bf16.mxu0 0
      %1156 = vmatpush2.bf16.msra.mxu0 0
      %1157 = vmatprep.subr.bf16.mxu0 0
      %1158 = vmatpush2.bf16.msra.mxu0 0
      %1159 = vmatprep.subr.bf16.mxu0 0
      %1160 = vmatpush2.bf16.msra.mxu0 0
      %1161 = vmatprep.subr.bf16.mxu0 0
      %1162 = vmatpush2.bf16.msra.mxu0 0
      %1163 = vmatprep.subr.bf16.mxu0 0
      %1164 = vmatpush2.bf16.msra.mxu0 0
      %1165 = vmatprep.mubr.bf16.mxu0 0
      %1166 = vmatmul.mubr.bf16.gmra.mxu0 %v1128
      %v1167 = vpop.f32.mrf.mxu0
      %v1168 = vadd.f32 0.0, %v1167
      %v1169 = vpop.f32.mrf.mxu0
      %v1170 = vpop.f32.mrf.mxu0
      %v1171 = vadd.f32 0.0, %v1170
      %v1172 = vpop.f32.mrf.mxu0
      %1173 = vdwg.mxu0
      %v1174 = vadd.f32 %v1112, %v1168
      %v1175 = vadd.f32 %v1113, %v1171
      %s1176 = scalar_lea.vmem %s215, 120
      %v1177 = vld [vmem:[%s1176] sm:$0xf]
      %v1178 = vld [vmem:[%s1176 + $0x4] sm:$0xf]
      %v1181 = vunpack.c.l.b16 %v1177
      %v1182 = vunpack.c.l.b16 %v1178
      %v1183 = vpack.c.b16 %v1182, %v1181
      %1184 = vrot.lane.b32.xlu0 %v1058, 117
      %v1185 = vpop.permute.xlu0 %1184
      %1186 = vrot.lane.b32.xlu0 %v1059, 117
      %v1187 = vpop.permute.xlu0 %1186
      %v1188 = vsel %vm437, %v1185, %v1187
      %v1190 = vsel %vm261, %v1183, 0
      %v1193 = vsel %vm265, %v1188, 0
      %1195 = vmatprep.subr.bf16.mxu0 0
      %1196 = vmatpush1.bf16.msra.mxu0 0
      %1197 = vmatprep.subr.bf16.mxu0 0
      %1198 = vmatpush1.bf16.msra.mxu0 0
      %1199 = vmatprep.subr.bf16.mxu0 0
      %1200 = vmatpush1.bf16.msra.mxu0 0
      %1201 = vmatprep.subr.bf16.mxu0 0
      %1202 = vmatpush1.bf16.msra.mxu0 0
      %1203 = vmatprep.subr.bf16.mxu0 0
      %1204 = vmatpush1.bf16.msra.mxu0 0
      %1205 = vmatprep.subr.bf16.mxu0 0
      %1206 = vmatpush1.bf16.msra.mxu0 0
      %1207 = vmatprep.subr.bf16.mxu0 0
      %1208 = vmatpush1.bf16.msra.mxu0 0
      %1209 = vmatprep.subr.bf16.mxu0 0
      %1210 = vmatpush1.bf16.msra.mxu0 %v1193
      %1211 = vmatprep.subr.bf16.mxu0 0
      %1212 = vmatpush2.bf16.msra.mxu0 0
      %1213 = vmatprep.subr.bf16.mxu0 0
      %1214 = vmatpush2.bf16.msra.mxu0 0
      %1215 = vmatprep.subr.bf16.mxu0 0
      %1216 = vmatpush2.bf16.msra.mxu0 0
      %1217 = vmatprep.subr.bf16.mxu0 0
      %1218 = vmatpush2.bf16.msra.mxu0 0
      %1219 = vmatprep.subr.bf16.mxu0 0
      %1220 = vmatpush2.bf16.msra.mxu0 0
      %1221 = vmatprep.subr.bf16.mxu0 0
      %1222 = vmatpush2.bf16.msra.mxu0 0
      %1223 = vmatprep.subr.bf16.mxu0 0
      %1224 = vmatpush2.bf16.msra.mxu0 0
      %1225 = vmatprep.subr.bf16.mxu0 0
      %1226 = vmatpush2.bf16.msra.mxu0 0
      %1227 = vmatprep.mubr.bf16.mxu0 0
      %1228 = vmatmul.mubr.bf16.gmra.mxu0 %v1190
      %v1229 = vpop.f32.mrf.mxu0
      %v1230 = vadd.f32 0.0, %v1229
      %v1231 = vpop.f32.mrf.mxu0
      %v1232 = vpop.f32.mrf.mxu0
      %v1233 = vadd.f32 0.0, %v1232
      %v1234 = vpop.f32.mrf.mxu0
      %1235 = vdwg.mxu0
      %v1236 = vadd.f32 %v1174, %v1230
      %v1237 = vadd.f32 %v1175, %v1233
      %v1238 = vld [vmem:[%s221] sm:$0xff]
      %v1239 = vld [vmem:[%s221 + $0x8] sm:$0xff]
      %1241 = vset.pattern.permute.xlu0 0
      %1242 = vperm.xlu0 %1241, %v1238
      %v1243 = vpop.permute.xlu0 %1242
      %1246 = vset.pattern.permute.xlu0 0
      %1247 = vperm.xlu0 %1246, %v1239
      %v1248 = vpop.permute.xlu0 %1247
      %v1250 = vadd.f32 %v1236, %v1243
      %v1251 = vadd.f32 %v1237, %v1248
      %vm1252 = vcmp.ge.f32.partialorder %v1250, 0.0
      %vm1253 = vcmp.ge.f32.partialorder %v1251, 0.0
      %v1254 = vmul.f32 %v1250, 0.2
      %v1255 = vmul.f32 %v1251, 0.2
      %v1256 = vsel %vm1252, %v1250, %v1254
      %v1257 = vsel %vm1253, %v1251, %v1255
      %v1258 = vpack.c.bf16 %v1257, %v1256
      %v1260 = vunpack.c.l.b16 %v1258
      %v1261 = vunpack.c.h.b16 %v1258
      %v1262 = vpack.c.b16 %v1260, %v1260
      %v1263 = vpack.c.b16 %v1261, %v1261
      %1266 = vst [vmem:[%s236] sm:$0xf] %v1262
      %1267 = vst [vmem:[%s236 + $0x4] sm:$0xf] %v1263
      %s1268 = smul.u32 2, %s19
      %p1269 = scmp.lt.s32.totalorder %s18, 1
      %s1270 = scalar_select %p1269, %s18, 1
      %p1271 = scmp.lt.s32.totalorder %s1268, 1
      %s1272 = scalar_select %p1271, %s1268, 1
      %s1273 = smul.addr %s1270, 2
      %s1274 = sadd.s32 %s1272, %s1273
      %s1275 = smul.addr %s1274, 4
      %s1276 = scalar_lea.vmem %s3, %s1275
      // Predicated region
      $region33: #{discriminator_forward.3} parent=31 // pred_check
        %p1277 = pneg %p124
      $region34: #{discriminator_forward.3} parent=31 // pred_check_branch
        %1279 = sbr.rel (%p1277) target = $region36
      $region35: #{discriminator_forward.3} parent=31 // pred_region
        %s1280 = smul.u32 2, %s19
      $region36: #{discriminator_forward.3} parent=31 // pred_fallthru
        _
    $region32: #{discriminator_forward.3} parent=5 // pred_fallthru
      _
    %p1281 = scmp.le.s32.totalorder 2, %s9
    // Predicated region
    $region37: #{discriminator_forward.3} parent=5 // pred_check
      %p1282 = pneg %p1281
    $region38: #{discriminator_forward.3} parent=5 // pred_check_branch
      %1284 = sbr.rel (%p1282) target = $region40
    $region39: #{discriminator_forward.3} parent=5 // pred_region
      %s1285 = ssub.s32 %s9, 2
      // Predicated region
      $region41: #{discriminator_forward.3} parent=39 // pred_check
        %p1286 = pneg %p130
      $region42: #{discriminator_forward.3} parent=39 // pred_check_branch
        %1288 = sbr.rel (%p1286) target = $region44
      $region43: #{discriminator_forward.3} parent=39 // pred_region
        %s1289 = smul.u32 2, %s21
        %p1290 = scmp.lt.s32.totalorder %s20, 1
        %s1291 = scalar_select %p1290, %s20, 1
        %p1292 = scmp.lt.s32.totalorder %s1289, 1
        %s1293 = scalar_select %p1292, %s1289, 1
        %s1294 = smul.addr %s1291, 2
        %s1295 = sadd.s32 %s1293, %s1294
        %s1296 = smul.addr %s1295, 4
        %s1297 = scalar_lea.vmem %s3, %s1296
      $region44: #{discriminator_forward.3} parent=39 // pred_fallthru
        _
    $region40: #{discriminator_forward.3} parent=5 // pred_fallthru
      _
  $region6: #{discriminator_forward.3} parent=0 // loop_footer
    %s13 = sadd.s32 1, %s9
  $region7: #{discriminator_forward.3} parent=0 // loop_footer_branch
    %8 = sbr.rel target = $region3
  $region8: #{discriminator_forward.3} parent=0 // loop_exit
    _

// kernel: discriminator_forward.5
$region0: #{discriminator_forward.5}
  #allocation0 [shape = 'u32[]', space=smem, size = 0x4, offset = 0x4, fixed_abs, tag = 'smem constant byte address 0x4 - core index']
  #allocation1 [shape = 'u32[144,128]{1,0:T(1,128)}', space=vmem, size = 0x12000, scoped, tag = 'internal scratch']
  %s0 = inlined_call_operand.vmem [shape: bf16[16,16,16], index: 0, kind: input, shape index: {}]
  %s1 = inlined_call_operand.vmem [shape: f32[16,1], index: 1, kind: input, shape index: {}]
  %s2 = inlined_call_operand.vmem [shape: bf16[2,1,16,256], index: 2, kind: input, shape index: {}]
  %s3 = inlined_call_operand.vmem [shape: f32[2,16,128], index: 3, kind: output, shape index: {}]
  %s4 = sld [smem:[#allocation0]]
  $region45: #{discriminator_forward.5} parent=0
    _
  %s6 = ssub.s32 1, %s4
  %s7 = scalar_select 0, %s6, %s4
  loop: start=0, step=1, limit=4
  $region2: #{discriminator_forward.5} parent=0 // loop_pre_header
    _
  $region3: #{discriminator_forward.5} parent=0 // loop_header
    %s9 = sphi 0, %s13
    %p10 = scmp.ge.s32.totalorder %s9, 4
    %s16 = sphi 0, %s28
    %s17 = sphi 0, %s24
    %s18 = sphi 0, %s16
    %s19 = sphi 0, %s17
    %s20 = sphi 0, %s18
    %s21 = sphi 0, %s19
    %s31 = sphi 0, %s33
    %s34 = sphi 0, %s31
    %s35 = sphi 0, %s34
    %s51 = sphi 0, %s35
    %s57 = sphi 0, %s59
    %s60 = sphi 0, %s57
    %s61 = sphi 0, %s60
    %s77 = sphi 0, %s61
    %s83 = sphi 0, %s85
    %s86 = sphi 0, %s83
    %s87 = sphi 0, %s86
    %s103 = sphi 0, %s87
    %s111 = sphi 0, %s113
    %s114 = sphi 0, %s111
    %s115 = sphi 0, %s114
    %s131 = sphi 0, %s115
  $region4: #{discriminator_forward.5} parent=0 // loop_header_branch
    %12 = sbr.rel (%p10) target = $region8
  $region5: #{discriminator_forward.5} parent=0 // loop_body
    %s14 = ssub.s32 %s9, 1
    %s15 = ssub.s32 %s9, 2
    %s22 = sadd.s32 1, %s17
    %p23 = scmp.ge.s32.totalorder %s22, 1
    %s24 = scalar_select %p23, 0, %s22
    %s25 = sadd.s32 1, %s16
    %s26 = scalar_select %p23, %s25, %s16
    %p27 = scmp.ge.s32.totalorder %s26, 2
    %s28 = scalar_select %p27, 0, %s26
    %s29 = ssub.s32 %s17, %s24
    %p30 = scmp.eq.s32.totalorder %s29, 0
    %s32 = sadd.s32 %s31, 1
    %s33 = scalar_select %p30, %s31, %s32
    %p36 = pneg %p30
    %p37 = scmp.eq.s32.totalorder %s9, 1
    %p38 = por %p36, %p37
    %p39 = scmp.ne.s32.totalorder %s31, %s34
    %p40 = scmp.eq.s32.totalorder %s9, 0
    %p41 = por %p39, %p40
    %p42 = scmp.ne.s32.totalorder %s31, %s34
    %p43 = scmp.eq.s32.totalorder %s14, 1
    %p44 = por %p42, %p43
    %p45 = scmp.ne.s32.totalorder %s34, %s35
    %p46 = scmp.eq.s32.totalorder %s14, 0
    %p47 = por %p45, %p46
    %p48 = scmp.ne.s32.totalorder %s34, %s35
    %p49 = scmp.eq.s32.totalorder %s15, 1
    %p50 = por %p48, %p49
    %p52 = scmp.ne.s32.totalorder %s35, %s51
    %p53 = scmp.eq.s32.totalorder %s15, 0
    %p54 = por %p52, %p53
    %s55 = ssub.s32 %s17, %s24
    %p56 = scmp.eq.s32.totalorder %s55, 0
    %s58 = sadd.s32 %s57, 1
    %s59 = scalar_select %p56, %s57, %s58
    %p62 = pneg %p56
    %p63 = scmp.eq.s32.totalorder %s9, 1
    %p64 = por %p62, %p63
    %p65 = scmp.ne.s32.totalorder %s57, %s60
    %p66 = scmp.eq.s32.totalorder %s9, 0
    %p67 = por %p65, %p66
    %p68 = scmp.ne.s32.totalorder %s57, %s60
    %p69 = scmp.eq.s32.totalorder %s14, 1
    %p70 = por %p68, %p69
    %p71 = scmp.ne.s32.totalorder %s60, %s61
    %p72 = scmp.eq.s32.totalorder %s14, 0
    %p73 = por %p71, %p72
    %p74 = scmp.ne.s32.totalorder %s60, %s61
    %p75 = scmp.eq.s32.totalorder %s15, 1
    %p76 = por %p74, %p75
    %p78 = scmp.ne.s32.totalorder %s61, %s77
    %p79 = scmp.eq.s32.totalorder %s15, 0
    %p80 = por %p78, %p79
    %s81 = ssub.s32 %s16, %s28
    %p82 = scmp.eq.s32.totalorder %s81, 0
    %s84 = sadd.s32 %s83, 1
    %s85 = scalar_select %p82, %s83, %s84
    %p88 = pneg %p82
    %p89 = scmp.eq.s32.totalorder %s9, 1
    %p90 = por %p88, %p89
    %p91 = scmp.ne.s32.totalorder %s83, %s86
    %p92 = scmp.eq.s32.totalorder %s9, 0
    %p93 = por %p91, %p92
    %p94 = scmp.ne.s32.totalorder %s83, %s86
    %p95 = scmp.eq.s32.totalorder %s14, 1
    %p96 = por %p94, %p95
    %p97 = scmp.ne.s32.totalorder %s86, %s87
    %p98 = scmp.eq.s32.totalorder %s14, 0
    %p99 = por %p97, %p98
    %p100 = scmp.ne.s32.totalorder %s86, %s87
    %p101 = scmp.eq.s32.totalorder %s15, 1
    %p102 = por %p100, %p101
    %p104 = scmp.ne.s32.totalorder %s87, %s103
    %p105 = scmp.eq.s32.totalorder %s15, 0
    %p106 = por %p104, %p105
    %s107 = ssub.s32 %s16, %s28
    %s108 = ssub.s32 %s17, %s24
    %s109 = sor.u32 %s107, %s108
    %p110 = scmp.eq.s32.totalorder %s109, 0
    %s112 = sadd.s32 %s111, 1
    %s113 = scalar_select %p110, %s111, %s112
    %p116 = pneg %p110
    %p117 = scmp.eq.s32.totalorder %s9, 1
    %p118 = por %p116, %p117
    %p119 = scmp.ne.s32.totalorder %s111, %s114
    %p120 = scmp.eq.s32.totalorder %s9, 0
    %p121 = por %p119, %p120
    %p122 = scmp.ne.s32.totalorder %s111, %s114
    %p123 = scmp.eq.s32.totalorder %s14, 1
    %p124 = por %p122, %p123
    %p125 = scmp.ne.s32.totalorder %s114, %s115
    %p126 = scmp.eq.s32.totalorder %s14, 0
    %p127 = por %p125, %p126
    %p128 = scmp.ne.s32.totalorder %s114, %s115
    %p129 = scmp.eq.s32.totalorder %s15, 1
    %p130 = por %p128, %p129
    %p132 = scmp.ne.s32.totalorder %s115, %s131
    %p133 = scmp.eq.s32.totalorder %s15, 0
    %p134 = por %p132, %p133
    %p135 = scmp.le.s32.totalorder 1, %s9
    %p136 = scmp.lt.s32.totalorder %s9, 3
    %p137 = pnand %p135, %p136
    %p138 = pneg %p137
    // Predicated region
    $region9: #{discriminator_forward.5} parent=5 // pred_check
      _
    $region10: #{discriminator_forward.5} parent=5 // pred_check_branch
      %140 = sbr.rel (%p137) target = $region12
    $region11: #{discriminator_forward.5} parent=5 // pred_region
      %s141 = ssub.s32 %s9, 1
      // Predicated region
      $region13: #{discriminator_forward.5} parent=11 // pred_check
        %p142 = pneg %p47
      $region14: #{discriminator_forward.5} parent=11 // pred_check_branch
        %144 = sbr.rel (%p142) target = $region16
      $region15: #{discriminator_forward.5} parent=11 // pred_region
        %s145 = smul.u32 2, %s19
        %p146 = scmp.lt.s32.totalorder %s145, 1
        %s147 = scalar_select %p146, %s145, 1
        %s148 = smul.addr %s147, 4
        %s149 = scalar_lea.vmem %s0, %s148
        %s150 = smul.u32 2, %s19
      $region16: #{discriminator_forward.5} parent=11 // pred_fallthru
        _
      // Predicated region
      $region17: #{discriminator_forward.5} parent=11 // pred_check
        %p151 = pneg %p73
      $region18: #{discriminator_forward.5} parent=11 // pred_check_branch
        %153 = sbr.rel (%p151) target = $region20
      $region19: #{discriminator_forward.5} parent=11 // pred_region
        %s154 = smul.u32 2, %s19
        %p155 = scmp.lt.s32.totalorder %s154, 1
        %s156 = scalar_select %p155, %s154, 1
        %s157 = smul.addr %s156, 8
        %s158 = scalar_lea.vmem %s1, %s157
        %s159 = smul.u32 2, %s19
      $region20: #{discriminator_forward.5} parent=11 // pred_fallthru
        _
    $region12: #{discriminator_forward.5} parent=5 // pred_fallthru
      _
    %p160 = scmp.lt.s32.totalorder %s9, 2
    // Predicated region
    $region21: #{discriminator_forward.5} parent=5 // pred_check
      %p161 = pneg %p160
    $region22: #{discriminator_forward.5} parent=5 // pred_check_branch
      %163 = sbr.rel (%p161) target = $region24
    $region23: #{discriminator_forward.5} parent=5 // pred_region
      // Predicated region
      $region25: #{discriminator_forward.5} parent=23 // pred_check
        %p164 = pneg %p93
      $region26: #{discriminator_forward.5} parent=23 // pred_check_branch
        %166 = sbr.rel (%p164) target = $region28
      $region27: #{discriminator_forward.5} parent=23 // pred_region
        %p167 = scmp.lt.s32.totalorder %s16, 1
        %s168 = scalar_select %p167, %s16, 1
        %s169 = smul.addr %s168, 4
        %s170 = smul.addr %s169, 4
        %s171 = scalar_lea.vmem %s2, %s170
      $region28: #{discriminator_forward.5} parent=23 // pred_fallthru
        _
    $region24: #{discriminator_forward.5} parent=5 // pred_fallthru
      _
    %p172 = scmp.le.s32.totalorder 1, %s9
    %p173 = scmp.lt.s32.totalorder %s9, 3
    %p174 = pnand %p172, %p173
    %p175 = pneg %p174
    // Predicated region
    $region29: #{discriminator_forward.5} parent=5 // pred_check
      _
    $region30: #{discriminator_forward.5} parent=5 // pred_check_branch
      %177 = sbr.rel (%p174) target = $region32
    $region31: #{discriminator_forward.5} parent=5 // pred_region
      %s178 = ssub.s32 %s9, 1
      %s179 = smul.u32 2, %s19
      %p180 = scmp.lt.s32.totalorder %s179, 1
      %s181 = scalar_select %p180, %s179, 1
      %s182 = smul.addr %s181, 4
      %s183 = scalar_lea.vmem %s0, %s182
      %p184 = pneg %p47
      %p185 = pneg %p44
      %s186 = smul.u32 2, %s19
      %p187 = scmp.lt.s32.totalorder %s186, 1
      %s188 = scalar_select %p187, %s186, 1
      %s189 = smul.addr %s188, 8
      %s190 = scalar_lea.vmem %s1, %s189
      %p191 = pneg %p73
      %p192 = pneg %p70
      %p193 = scmp.lt.s32.totalorder %s18, 1
      %s194 = scalar_select %p193, %s18, 1
      %s195 = smul.addr %s194, 4
      %s196 = smul.addr %s195, 4
      %s197 = scalar_lea.vmem %s2, %s196
      %p198 = pneg %p99
      %p199 = pneg %p96
      %p200 = pneg %p127
      %p201 = pneg %p124
      %s202 = smul.u32 2, %s19
      %p203 = scmp.lt.s32.totalorder %s18, 1
      %s204 = scalar_select %p203, %s18, 1
      %p205 = scmp.lt.s32.totalorder %s202, 1
      %s206 = scalar_select %p205, %s202, 1
      %s207 = smul.addr %s204, 2
      %s208 = sadd.s32 %s206, %s207
      %s209 = smul.addr %s208, 8
      %s210 = scalar_lea.vmem %s3, %s209
      %s211 = smul.u32 2, %s19
      %p212 = scmp.lt.s32.totalorder %s211, 1
      %s213 = scalar_select %p212, %s211, 1
      %s214 = smul.addr %s213, 4
      %s215 = scalar_lea.vmem %s0, %s214
      %s216 = smul.u32 2, %s19
      %s217 = smul.u32 2, %s19
      %p218 = scmp.lt.s32.totalorder %s217, 1
      %s219 = scalar_select %p218, %s217, 1
      %s220 = smul.addr %s219, 8
      %s221 = scalar_lea.vmem %s1, %s220
      %s222 = smul.u32 2, %s19
      %p223 = scmp.lt.s32.totalorder %s18, 1
      %s224 = scalar_select %p223, %s18, 1
      %s225 = smul.addr %s224, 4
      %s226 = smul.addr %s225, 4
      %s227 = scalar_lea.vmem %s2, %s226
      %s228 = smul.u32 2, %s19
      %p229 = scmp.lt.s32.totalorder %s18, 1
      %s230 = scalar_select %p229, %s18, 1
      %p231 = scmp.lt.s32.totalorder %s228, 1
      %s232 = scalar_select %p231, %s228, 1
      %s233 = smul.addr %s230, 2
      %s234 = sadd.s32 %s232, %s233
      %s235 = smul.addr %s234, 8
      %s236 = scalar_lea.vmem %s3, %s235
      %s237 = smul.u32 2, %s19
      %v239 = vld [vmem:[%s227] sm:$0xff]
      %v240 = vld [vmem:[%s227 + $0x8] sm:$0xff]
      %v241 = vld [vmem:[%s215] sm:$0xf]
      %v242 = vld [vmem:[%s215 + $0x4] sm:$0xf]
      %s243 = scalar_lea.vmem %s215, 8
      %v244 = vld [vmem:[%s243] sm:$0xf]
      %v245 = vld [vmem:[%s243 + $0x4] sm:$0xf]
      %v248 = vunpack.c.l.b16 %v244
      %v249 = vunpack.c.l.b16 %v245
      %v250 = vpack.c.b16 %v249, %v248
      %v253 = vunpack.c.l.b16 %v239
      %v254 = vunpack.c.h.b16 %v239
      %v255 = vunpack.c.l.b16 %v240
      %v256 = vunpack.c.h.b16 %v240
      %v257 = vpack.c.b16 %v255, %v253
      %v258 = vpack.c.b16 %v256, %v254
      %259 = vrot.lane.b32.xlu0 %v257, 127
      %v260 = vpop.permute.xlu0 %259
      %261 = vrot.lane.b32.xlu0 %v258, 127
      %v262 = vpop.permute.xlu0 %261
      %vm263 = vcmask 1039360
      %v264 = vsel %vm263, %v260, %v262
      %vm266 = vcmask 130048
      %v268 = vsel %vm266, %v250, 0
      %270 = vmatprep.subr.bf16.mxu0 0
      %271 = vmatpush1.bf16.msra.mxu0 0
      %272 = vmatprep.subr.bf16.mxu0 0
      %273 = vmatpush1.bf16.msra.mxu0 0
      %274 = vmatprep.subr.bf16.mxu0 0
      %275 = vmatpush1.bf16.msra.mxu0 0
      %276 = vmatprep.subr.bf16.mxu0 0
      %277 = vmatpush1.bf16.msra.mxu0 0
      %278 = vmatprep.subr.bf16.mxu0 0
      %279 = vmatpush1.bf16.msra.mxu0 0
      %280 = vmatprep.subr.bf16.mxu0 0
      %281 = vmatpush1.bf16.msra.mxu0 0
      %282 = vmatprep.subr.bf16.mxu0 0
      %283 = vmatpush1.bf16.msra.mxu0 0
      %284 = vmatprep.subr.bf16.mxu0 0
      %285 = vmatpush1.bf16.msra.mxu0 %v264
      %286 = vmatprep.subr.bf16.mxu0 0
      %287 = vmatpush2.bf16.msra.mxu0 0
      %288 = vmatprep.subr.bf16.mxu0 0
      %289 = vmatpush2.bf16.msra.mxu0 0
      %290 = vmatprep.subr.bf16.mxu0 0
      %291 = vmatpush2.bf16.msra.mxu0 0
      %292 = vmatprep.subr.bf16.mxu0 0
      %293 = vmatpush2.bf16.msra.mxu0 0
      %294 = vmatprep.subr.bf16.mxu0 0
      %295 = vmatpush2.bf16.msra.mxu0 0
      %296 = vmatprep.subr.bf16.mxu0 0
      %297 = vmatpush2.bf16.msra.mxu0 0
      %298 = vmatprep.subr.bf16.mxu0 0
      %299 = vmatpush2.bf16.msra.mxu0 0
      %300 = vmatprep.subr.bf16.mxu0 0
      %301 = vmatpush2.bf16.msra.mxu0 0
      %302 = vmatprep.mubr.bf16.mxu0 0
      %303 = vmatmul.mubr.bf16.gmra.mxu0 %v268
      %v304 = vpop.f32.mrf.mxu0
      %v305 = vadd.f32 0.0, %v304
      %v306 = vpop.f32.mrf.mxu0
      %v307 = vpop.f32.mrf.mxu0
      %v308 = vadd.f32 0.0, %v307
      %v309 = vpop.f32.mrf.mxu0
      %310 = vdwg.mxu0
      %v313 = vunpack.c.l.b16 %v241
      %v314 = vunpack.c.l.b16 %v242
      %v315 = vpack.c.b16 %v314, %v313
      %v318 = vsel %vm266, %v315, 0
      %320 = vmatprep.subr.bf16.mxu0 0
      %321 = vmatpush1.bf16.msra.mxu0 0
      %322 = vmatprep.subr.bf16.mxu0 0
      %323 = vmatpush1.bf16.msra.mxu0 0
      %324 = vmatprep.subr.bf16.mxu0 0
      %325 = vmatpush1.bf16.msra.mxu0 0
      %326 = vmatprep.subr.bf16.mxu0 0
      %327 = vmatpush1.bf16.msra.mxu0 0
      %328 = vmatprep.subr.bf16.mxu0 0
      %329 = vmatpush1.bf16.msra.mxu0 0
      %330 = vmatprep.subr.bf16.mxu0 0
      %331 = vmatpush1.bf16.msra.mxu0 0
      %332 = vmatprep.subr.bf16.mxu0 0
      %333 = vmatpush1.bf16.msra.mxu0 0
      %334 = vmatprep.subr.bf16.mxu0 0
      %335 = vmatpush1.bf16.msra.mxu0 %v257
      %336 = vmatprep.subr.bf16.mxu0 0
      %337 = vmatpush2.bf16.msra.mxu0 0
      %338 = vmatprep.subr.bf16.mxu0 0
      %339 = vmatpush2.bf16.msra.mxu0 0
      %340 = vmatprep.subr.bf16.mxu0 0
      %341 = vmatpush2.bf16.msra.mxu0 0
      %342 = vmatprep.subr.bf16.mxu0 0
      %343 = vmatpush2.bf16.msra.mxu0 0
      %344 = vmatprep.subr.bf16.mxu0 0
      %345 = vmatpush2.bf16.msra.mxu0 0
      %346 = vmatprep.subr.bf16.mxu0 0
      %347 = vmatpush2.bf16.msra.mxu0 0
      %348 = vmatprep.subr.bf16.mxu0 0
      %349 = vmatpush2.bf16.msra.mxu0 0
      %350 = vmatprep.subr.bf16.mxu0 0
      %351 = vmatpush2.bf16.msra.mxu0 0
      %352 = vmatprep.mubr.bf16.mxu0 0
      %353 = vmatmul.mubr.bf16.gmra.mxu0 %v318
      %v354 = vpop.f32.mrf.mxu0
      %v355 = vadd.f32 %v305, %v354
      %v356 = vpop.f32.mrf.mxu0
      %v357 = vpop.f32.mrf.mxu0
      %v358 = vadd.f32 %v308, %v357
      %v359 = vpop.f32.mrf.mxu0
      %360 = vdwg.mxu0
      %s361 = scalar_lea.vmem %s215, 16
      %v362 = vld [vmem:[%s361] sm:$0xf]
      %v363 = vld [vmem:[%s361 + $0x4] sm:$0xf]
      %v366 = vunpack.c.l.b16 %v362
      %v367 = vunpack.c.l.b16 %v363
      %v368 = vpack.c.b16 %v367, %v366
      %369 = vrot.lane.b32.xlu0 %v257, 126
      %v370 = vpop.permute.xlu0 %369
      %371 = vrot.lane.b32.xlu0 %v258, 126
      %v372 = vpop.permute.xlu0 %371
      %vm373 = vcmask 1031168
      %v374 = vsel %vm373, %v370, %v372
      %v377 = vsel %vm266, %v368, 0
      %379 = vmatprep.subr.bf16.mxu0 0
      %380 = vmatpush1.bf16.msra.mxu0 0
      %381 = vmatprep.subr.bf16.mxu0 0
      %382 = vmatpush1.bf16.msra.mxu0 0
      %383 = vmatprep.subr.bf16.mxu0 0
      %384 = vmatpush1.bf16.msra.mxu0 0
      %385 = vmatprep.subr.bf16.mxu0 0
      %386 = vmatpush1.bf16.msra.mxu0 0
      %387 = vmatprep.subr.bf16.mxu0 0
      %388 = vmatpush1.bf16.msra.mxu0 0
      %389 = vmatprep.subr.bf16.mxu0 0
      %390 = vmatpush1.bf16.msra.mxu0 0
      %391 = vmatprep.subr.bf16.mxu0 0
      %392 = vmatpush1.bf16.msra.mxu0 0
      %393 = vmatprep.subr.bf16.mxu0 0
      %394 = vmatpush1.bf16.msra.mxu0 %v374
      %395 = vmatprep.subr.bf16.mxu0 0
      %396 = vmatpush2.bf16.msra.mxu0 0
      %397 = vmatprep.subr.bf16.mxu0 0
      %398 = vmatpush2.bf16.msra.mxu0 0
      %399 = vmatprep.subr.bf16.mxu0 0
      %400 = vmatpush2.bf16.msra.mxu0 0
      %401 = vmatprep.subr.bf16.mxu0 0
      %402 = vmatpush2.bf16.msra.mxu0 0
      %403 = vmatprep.subr.bf16.mxu0 0
      %404 = vmatpush2.bf16.msra.mxu0 0
      %405 = vmatprep.subr.bf16.mxu0 0
      %406 = vmatpush2.bf16.msra.mxu0 0
      %407 = vmatprep.subr.bf16.mxu0 0
      %408 = vmatpush2.bf16.msra.mxu0 0
      %409 = vmatprep.subr.bf16.mxu0 0
      %410 = vmatpush2.bf16.msra.mxu0 0
      %411 = vmatprep.mubr.bf16.mxu0 0
      %412 = vmatmul.mubr.bf16.gmra.mxu0 %v377
      %v413 = vpop.f32.mrf.mxu0
      %v414 = vadd.f32 0.0, %v413
      %v415 = vpop.f32.mrf.mxu0
      %v416 = vpop.f32.mrf.mxu0
      %v417 = vadd.f32 0.0, %v416
      %v418 = vpop.f32.mrf.mxu0
      %419 = vdwg.mxu0
      %v420 = vadd.f32 %v355, %v414
      %v421 = vadd.f32 %v358, %v417
      %s422 = scalar_lea.vmem %s215, 24
      %v423 = vld [vmem:[%s422] sm:$0xf]
      %v424 = vld [vmem:[%s422 + $0x4] sm:$0xf]
      %v427 = vunpack.c.l.b16 %v423
      %v428 = vunpack.c.l.b16 %v424
      %v429 = vpack.c.b16 %v428, %v427
      %430 = vrot.lane.b32.xlu0 %v257, 125
      %v431 = vpop.permute.xlu0 %430
      %432 = vrot.lane.b32.xlu0 %v258, 125
      %v433 = vpop.permute.xlu0 %432
      %vm434 = vcmask 1022976
      %v435 = vsel %vm434, %v431, %v433
      %v438 = vsel %vm266, %v429, 0
      %440 = vmatprep.subr.bf16.mxu0 0
      %441 = vmatpush1.bf16.msra.mxu0 0
      %442 = vmatprep.subr.bf16.mxu0 0
      %443 = vmatpush1.bf16.msra.mxu0 0
      %444 = vmatprep.subr.bf16.mxu0 0
      %445 = vmatpush1.bf16.msra.mxu0 0
      %446 = vmatprep.subr.bf16.mxu0 0
      %447 = vmatpush1.bf16.msra.mxu0 0
      %448 = vmatprep.subr.bf16.mxu0 0
      %449 = vmatpush1.bf16.msra.mxu0 0
      %450 = vmatprep.subr.bf16.mxu0 0
      %451 = vmatpush1.bf16.msra.mxu0 0
      %452 = vmatprep.subr.bf16.mxu0 0
      %453 = vmatpush1.bf16.msra.mxu0 0
      %454 = vmatprep.subr.bf16.mxu0 0
      %455 = vmatpush1.bf16.msra.mxu0 %v435
      %456 = vmatprep.subr.bf16.mxu0 0
      %457 = vmatpush2.bf16.msra.mxu0 0
      %458 = vmatprep.subr.bf16.mxu0 0
      %459 = vmatpush2.bf16.msra.mxu0 0
      %460 = vmatprep.subr.bf16.mxu0 0
      %461 = vmatpush2.bf16.msra.mxu0 0
      %462 = vmatprep.subr.bf16.mxu0 0
      %463 = vmatpush2.bf16.msra.mxu0 0
      %464 = vmatprep.subr.bf16.mxu0 0
      %465 = vmatpush2.bf16.msra.mxu0 0
      %466 = vmatprep.subr.bf16.mxu0 0
      %467 = vmatpush2.bf16.msra.mxu0 0
      %468 = vmatprep.subr.bf16.mxu0 0
      %469 = vmatpush2.bf16.msra.mxu0 0
      %470 = vmatprep.subr.bf16.mxu0 0
      %471 = vmatpush2.bf16.msra.mxu0 0
      %472 = vmatprep.mubr.bf16.mxu0 0
      %473 = vmatmul.mubr.bf16.gmra.mxu0 %v438
      %v474 = vpop.f32.mrf.mxu0
      %v475 = vadd.f32 0.0, %v474
      %v476 = vpop.f32.mrf.mxu0
      %v477 = vpop.f32.mrf.mxu0
      %v478 = vadd.f32 0.0, %v477
      %v479 = vpop.f32.mrf.mxu0
      %480 = vdwg.mxu0
      %v481 = vadd.f32 %v420, %v475
      %v482 = vadd.f32 %v421, %v478
      %s483 = scalar_lea.vmem %s215, 32
      %v484 = vld [vmem:[%s483] sm:$0xf]
      %v485 = vld [vmem:[%s483 + $0x4] sm:$0xf]
      %v488 = vunpack.c.l.b16 %v484
      %v489 = vunpack.c.l.b16 %v485
      %v490 = vpack.c.b16 %v489, %v488
      %491 = vrot.lane.b32.xlu0 %v257, 122
      %v492 = vpop.permute.xlu0 %491
      %493 = vrot.lane.b32.xlu0 %v258, 122
      %v494 = vpop.permute.xlu0 %493
      %vm495 = vcmask 998400
      %v496 = vsel %vm495, %v492, %v494
      %v499 = vsel %vm266, %v490, 0
      %501 = vmatprep.subr.bf16.mxu0 0
      %502 = vmatpush1.bf16.msra.mxu0 0
      %503 = vmatprep.subr.bf16.mxu0 0
      %504 = vmatpush1.bf16.msra.mxu0 0
      %505 = vmatprep.subr.bf16.mxu0 0
      %506 = vmatpush1.bf16.msra.mxu0 0
      %507 = vmatprep.subr.bf16.mxu0 0
      %508 = vmatpush1.bf16.msra.mxu0 0
      %509 = vmatprep.subr.bf16.mxu0 0
      %510 = vmatpush1.bf16.msra.mxu0 0
      %511 = vmatprep.subr.bf16.mxu0 0
      %512 = vmatpush1.bf16.msra.mxu0 0
      %513 = vmatprep.subr.bf16.mxu0 0
      %514 = vmatpush1.bf16.msra.mxu0 0
      %515 = vmatprep.subr.bf16.mxu0 0
      %516 = vmatpush1.bf16.msra.mxu0 %v496
      %517 = vmatprep.subr.bf16.mxu0 0
      %518 = vmatpush2.bf16.msra.mxu0 0
      %519 = vmatprep.subr.bf16.mxu0 0
      %520 = vmatpush2.bf16.msra.mxu0 0
      %521 = vmatprep.subr.bf16.mxu0 0
      %522 = vmatpush2.bf16.msra.mxu0 0
      %523 = vmatprep.subr.bf16.mxu0 0
      %524 = vmatpush2.bf16.msra.mxu0 0
      %525 = vmatprep.subr.bf16.mxu0 0
      %526 = vmatpush2.bf16.msra.mxu0 0
      %527 = vmatprep.subr.bf16.mxu0 0
      %528 = vmatpush2.bf16.msra.mxu0 0
      %529 = vmatprep.subr.bf16.mxu0 0
      %530 = vmatpush2.bf16.msra.mxu0 0
      %531 = vmatprep.subr.bf16.mxu0 0
      %532 = vmatpush2.bf16.msra.mxu0 0
      %533 = vmatprep.mubr.bf16.mxu0 0
      %534 = vmatmul.mubr.bf16.gmra.mxu0 %v499
      %v535 = vpop.f32.mrf.mxu0
      %v536 = vadd.f32 0.0, %v535
      %v537 = vpop.f32.mrf.mxu0
      %v538 = vpop.f32.mrf.mxu0
      %v539 = vadd.f32 0.0, %v538
      %v540 = vpop.f32.mrf.mxu0
      %541 = vdwg.mxu0
      %v542 = vadd.f32 %v481, %v536
      %v543 = vadd.f32 %v482, %v539
      %s544 = scalar_lea.vmem %s215, 40
      %v545 = vld [vmem:[%s544] sm:$0xf]
      %v546 = vld [vmem:[%s544 + $0x4] sm:$0xf]
      %v549 = vunpack.c.l.b16 %v545
      %v550 = vunpack.c.l.b16 %v546
      %v551 = vpack.c.b16 %v550, %v549
      %552 = vrot.lane.b32.xlu0 %v257, 121
      %v553 = vpop.permute.xlu0 %552
      %554 = vrot.lane.b32.xlu0 %v258, 121
      %v555 = vpop.permute.xlu0 %554
      %vm556 = vcmask 990208
      %v557 = vsel %vm556, %v553, %v555
      %v560 = vsel %vm266, %v551, 0
      %562 = vmatprep.subr.bf16.mxu0 0
      %563 = vmatpush1.bf16.msra.mxu0 0
      %564 = vmatprep.subr.bf16.mxu0 0
      %565 = vmatpush1.bf16.msra.mxu0 0
      %566 = vmatprep.subr.bf16.mxu0 0
      %567 = vmatpush1.bf16.msra.mxu0 0
      %568 = vmatprep.subr.bf16.mxu0 0
      %569 = vmatpush1.bf16.msra.mxu0 0
      %570 = vmatprep.subr.bf16.mxu0 0
      %571 = vmatpush1.bf16.msra.mxu0 0
      %572 = vmatprep.subr.bf16.mxu0 0
      %573 = vmatpush1.bf16.msra.mxu0 0
      %574 = vmatprep.subr.bf16.mxu0 0
      %575 = vmatpush1.bf16.msra.mxu0 0
      %576 = vmatprep.subr.bf16.mxu0 0
      %577 = vmatpush1.bf16.msra.mxu0 %v557
      %578 = vmatprep.subr.bf16.mxu0 0
      %579 = vmatpush2.bf16.msra.mxu0 0
      %580 = vmatprep.subr.bf16.mxu0 0
      %581 = vmatpush2.bf16.msra.mxu0 0
      %582 = vmatprep.subr.bf16.mxu0 0
      %583 = vmatpush2.bf16.msra.mxu0 0
      %584 = vmatprep.subr.bf16.mxu0 0
      %585 = vmatpush2.bf16.msra.mxu0 0
      %586 = vmatprep.subr.bf16.mxu0 0
      %587 = vmatpush2.bf16.msra.mxu0 0
      %588 = vmatprep.subr.bf16.mxu0 0
      %589 = vmatpush2.bf16.msra.mxu0 0
      %590 = vmatprep.subr.bf16.mxu0 0
      %591 = vmatpush2.bf16.msra.mxu0 0
      %592 = vmatprep.subr.bf16.mxu0 0
      %593 = vmatpush2.bf16.msra.mxu0 0
      %594 = vmatprep.mubr.bf16.mxu0 0
      %595 = vmatmul.mubr.bf16.gmra.mxu0 %v560
      %v596 = vpop.f32.mrf.mxu0
      %v597 = vadd.f32 0.0, %v596
      %v598 = vpop.f32.mrf.mxu0
      %v599 = vpop.f32.mrf.mxu0
      %v600 = vadd.f32 0.0, %v599
      %v601 = vpop.f32.mrf.mxu0
      %602 = vdwg.mxu0
      %v603 = vadd.f32 %v542, %v597
      %v604 = vadd.f32 %v543, %v600
      %s605 = scalar_lea.vmem %s215, 48
      %v606 = vld [vmem:[%s605] sm:$0xf]
      %v607 = vld [vmem:[%s605 + $0x4] sm:$0xf]
      %v610 = vunpack.c.l.b16 %v606
      %v611 = vunpack.c.l.b16 %v607
      %v612 = vpack.c.b16 %v611, %v610
      %613 = vrot.lane.b32.xlu0 %v257, 120
      %v614 = vpop.permute.xlu0 %613
      %615 = vrot.lane.b32.xlu0 %v258, 120
      %v616 = vpop.permute.xlu0 %615
      %vm617 = vcmask 982016
      %v618 = vsel %vm617, %v614, %v616
      %v621 = vsel %vm266, %v612, 0
      %623 = vmatprep.subr.bf16.mxu0 0
      %624 = vmatpush1.bf16.msra.mxu0 0
      %625 = vmatprep.subr.bf16.mxu0 0
      %626 = vmatpush1.bf16.msra.mxu0 0
      %627 = vmatprep.subr.bf16.mxu0 0
      %628 = vmatpush1.bf16.msra.mxu0 0
      %629 = vmatprep.subr.bf16.mxu0 0
      %630 = vmatpush1.bf16.msra.mxu0 0
      %631 = vmatprep.subr.bf16.mxu0 0
      %632 = vmatpush1.bf16.msra.mxu0 0
      %633 = vmatprep.subr.bf16.mxu0 0
      %634 = vmatpush1.bf16.msra.mxu0 0
      %635 = vmatprep.subr.bf16.mxu0 0
      %636 = vmatpush1.bf16.msra.mxu0 0
      %637 = vmatprep.subr.bf16.mxu0 0
      %638 = vmatpush1.bf16.msra.mxu0 %v618
      %639 = vmatprep.subr.bf16.mxu0 0
      %640 = vmatpush2.bf16.msra.mxu0 0
      %641 = vmatprep.subr.bf16.mxu0 0
      %642 = vmatpush2.bf16.msra.mxu0 0
      %643 = vmatprep.subr.bf16.mxu0 0
      %644 = vmatpush2.bf16.msra.mxu0 0
      %645 = vmatprep.subr.bf16.mxu0 0
      %646 = vmatpush2.bf16.msra.mxu0 0
      %647 = vmatprep.subr.bf16.mxu0 0
      %648 = vmatpush2.bf16.msra.mxu0 0
      %649 = vmatprep.subr.bf16.mxu0 0
      %650 = vmatpush2.bf16.msra.mxu0 0
      %651 = vmatprep.subr.bf16.mxu0 0
      %652 = vmatpush2.bf16.msra.mxu0 0
      %653 = vmatprep.subr.bf16.mxu0 0
      %654 = vmatpush2.bf16.msra.mxu0 0
      %655 = vmatprep.mubr.bf16.mxu0 0
      %656 = vmatmul.mubr.bf16.gmra.mxu0 %v621
      %v657 = vpop.f32.mrf.mxu0
      %v658 = vadd.f32 0.0, %v657
      %v659 = vpop.f32.mrf.mxu0
      %v660 = vpop.f32.mrf.mxu0
      %v661 = vadd.f32 0.0, %v660
      %v662 = vpop.f32.mrf.mxu0
      %663 = vdwg.mxu0
      %v664 = vadd.f32 %v603, %v658
      %v665 = vadd.f32 %v604, %v661
      %s666 = scalar_lea.vmem %s215, 56
      %v667 = vld [vmem:[%s666] sm:$0xf]
      %v668 = vld [vmem:[%s666 + $0x4] sm:$0xf]
      %v671 = vunpack.c.l.b16 %v667
      %v672 = vunpack.c.l.b16 %v668
      %v673 = vpack.c.b16 %v672, %v671
      %674 = vrot.lane.b32.xlu0 %v257, 119
      %v675 = vpop.permute.xlu0 %674
      %676 = vrot.lane.b32.xlu0 %v258, 119
      %v677 = vpop.permute.xlu0 %676
      %vm678 = vcmask 973824
      %v679 = vsel %vm678, %v675, %v677
      %v682 = vsel %vm266, %v673, 0
      %684 = vmatprep.subr.bf16.mxu0 0
      %685 = vmatpush1.bf16.msra.mxu0 0
      %686 = vmatprep.subr.bf16.mxu0 0
      %687 = vmatpush1.bf16.msra.mxu0 0
      %688 = vmatprep.subr.bf16.mxu0 0
      %689 = vmatpush1.bf16.msra.mxu0 0
      %690 = vmatprep.subr.bf16.mxu0 0
      %691 = vmatpush1.bf16.msra.mxu0 0
      %692 = vmatprep.subr.bf16.mxu0 0
      %693 = vmatpush1.bf16.msra.mxu0 0
      %694 = vmatprep.subr.bf16.mxu0 0
      %695 = vmatpush1.bf16.msra.mxu0 0
      %696 = vmatprep.subr.bf16.mxu0 0
      %697 = vmatpush1.bf16.msra.mxu0 0
      %698 = vmatprep.subr.bf16.mxu0 0
      %699 = vmatpush1.bf16.msra.mxu0 %v679
      %700 = vmatprep.subr.bf16.mxu0 0
      %701 = vmatpush2.bf16.msra.mxu0 0
      %702 = vmatprep.subr.bf16.mxu0 0
      %703 = vmatpush2.bf16.msra.mxu0 0
      %704 = vmatprep.subr.bf16.mxu0 0
      %705 = vmatpush2.bf16.msra.mxu0 0
      %706 = vmatprep.subr.bf16.mxu0 0
      %707 = vmatpush2.bf16.msra.mxu0 0
      %708 = vmatprep.subr.bf16.mxu0 0
      %709 = vmatpush2.bf16.msra.mxu0 0
      %710 = vmatprep.subr.bf16.mxu0 0
      %711 = vmatpush2.bf16.msra.mxu0 0
      %712 = vmatprep.subr.bf16.mxu0 0
      %713 = vmatpush2.bf16.msra.mxu0 0
      %714 = vmatprep.subr.bf16.mxu0 0
      %715 = vmatpush2.bf16.msra.mxu0 0
      %716 = vmatprep.mubr.bf16.mxu0 0
      %717 = vmatmul.mubr.bf16.gmra.mxu0 %v682
      %v718 = vpop.f32.mrf.mxu0
      %v719 = vadd.f32 0.0, %v718
      %v720 = vpop.f32.mrf.mxu0
      %v721 = vpop.f32.mrf.mxu0
      %v722 = vadd.f32 0.0, %v721
      %v723 = vpop.f32.mrf.mxu0
      %724 = vdwg.mxu0
      %v725 = vadd.f32 %v664, %v719
      %v726 = vadd.f32 %v665, %v722
      %s727 = scalar_lea.vmem %s215, 64
      %v728 = vld [vmem:[%s727] sm:$0xf]
      %v729 = vld [vmem:[%s727 + $0x4] sm:$0xf]
      %v732 = vunpack.c.l.b16 %v728
      %v733 = vunpack.c.l.b16 %v729
      %v734 = vpack.c.b16 %v733, %v732
      %735 = vrot.lane.b32.xlu0 %v257, 116
      %v736 = vpop.permute.xlu0 %735
      %737 = vrot.lane.b32.xlu0 %v258, 116
      %v738 = vpop.permute.xlu0 %737
      %vm739 = vcmask 949248
      %v740 = vsel %vm739, %v736, %v738
      %v743 = vsel %vm266, %v734, 0
      %745 = vmatprep.subr.bf16.mxu0 0
      %746 = vmatpush1.bf16.msra.mxu0 0
      %747 = vmatprep.subr.bf16.mxu0 0
      %748 = vmatpush1.bf16.msra.mxu0 0
      %749 = vmatprep.subr.bf16.mxu0 0
      %750 = vmatpush1.bf16.msra.mxu0 0
      %751 = vmatprep.subr.bf16.mxu0 0
      %752 = vmatpush1.bf16.msra.mxu0 0
      %753 = vmatprep.subr.bf16.mxu0 0
      %754 = vmatpush1.bf16.msra.mxu0 0
      %755 = vmatprep.subr.bf16.mxu0 0
      %756 = vmatpush1.bf16.msra.mxu0 0
      %757 = vmatprep.subr.bf16.mxu0 0
      %758 = vmatpush1.bf16.msra.mxu0 0
      %759 = vmatprep.subr.bf16.mxu0 0
      %760 = vmatpush1.bf16.msra.mxu0 %v740
      %761 = vmatprep.subr.bf16.mxu0 0
      %762 = vmatpush2.bf16.msra.mxu0 0
      %763 = vmatprep.subr.bf16.mxu0 0
      %764 = vmatpush2.bf16.msra.mxu0 0
      %765 = vmatprep.subr.bf16.mxu0 0
      %766 = vmatpush2.bf16.msra.mxu0 0
      %767 = vmatprep.subr.bf16.mxu0 0
      %768 = vmatpush2.bf16.msra.mxu0 0
      %769 = vmatprep.subr.bf16.mxu0 0
      %770 = vmatpush2.bf16.msra.mxu0 0
      %771 = vmatprep.subr.bf16.mxu0 0
      %772 = vmatpush2.bf16.msra.mxu0 0
      %773 = vmatprep.subr.bf16.mxu0 0
      %774 = vmatpush2.bf16.msra.mxu0 0
      %775 = vmatprep.subr.bf16.mxu0 0
      %776 = vmatpush2.bf16.msra.mxu0 0
      %777 = vmatprep.mubr.bf16.mxu0 0
      %778 = vmatmul.mubr.bf16.gmra.mxu0 %v743
      %v779 = vpop.f32.mrf.mxu0
      %v780 = vadd.f32 0.0, %v779
      %v781 = vpop.f32.mrf.mxu0
      %v782 = vpop.f32.mrf.mxu0
      %v783 = vadd.f32 0.0, %v782
      %v784 = vpop.f32.mrf.mxu0
      %785 = vdwg.mxu0
      %v786 = vadd.f32 %v725, %v780
      %v787 = vadd.f32 %v726, %v783
      %s788 = scalar_lea.vmem %s215, 72
      %v789 = vld [vmem:[%s788] sm:$0xf]
      %v790 = vld [vmem:[%s788 + $0x4] sm:$0xf]
      %v793 = vunpack.c.l.b16 %v789
      %v794 = vunpack.c.l.b16 %v790
      %v795 = vpack.c.b16 %v794, %v793
      %796 = vrot.lane.b32.xlu0 %v257, 115
      %v797 = vpop.permute.xlu0 %796
      %798 = vrot.lane.b32.xlu0 %v258, 115
      %v799 = vpop.permute.xlu0 %798
      %vm800 = vcmask 941056
      %v801 = vsel %vm800, %v797, %v799
      %v804 = vsel %vm266, %v795, 0
      %806 = vmatprep.subr.bf16.mxu0 0
      %807 = vmatpush1.bf16.msra.mxu0 0
      %808 = vmatprep.subr.bf16.mxu0 0
      %809 = vmatpush1.bf16.msra.mxu0 0
      %810 = vmatprep.subr.bf16.mxu0 0
      %811 = vmatpush1.bf16.msra.mxu0 0
      %812 = vmatprep.subr.bf16.mxu0 0
      %813 = vmatpush1.bf16.msra.mxu0 0
      %814 = vmatprep.subr.bf16.mxu0 0
      %815 = vmatpush1.bf16.msra.mxu0 0
      %816 = vmatprep.subr.bf16.mxu0 0
      %817 = vmatpush1.bf16.msra.mxu0 0
      %818 = vmatprep.subr.bf16.mxu0 0
      %819 = vmatpush1.bf16.msra.mxu0 0
      %820 = vmatprep.subr.bf16.mxu0 0
      %821 = vmatpush1.bf16.msra.mxu0 %v801
      %822 = vmatprep.subr.bf16.mxu0 0
      %823 = vmatpush2.bf16.msra.mxu0 0
      %824 = vmatprep.subr.bf16.mxu0 0
      %825 = vmatpush2.bf16.msra.mxu0 0
      %826 = vmatprep.subr.bf16.mxu0 0
      %827 = vmatpush2.bf16.msra.mxu0 0
      %828 = vmatprep.subr.bf16.mxu0 0
      %829 = vmatpush2.bf16.msra.mxu0 0
      %830 = vmatprep.subr.bf16.mxu0 0
      %831 = vmatpush2.bf16.msra.mxu0 0
      %832 = vmatprep.subr.bf16.mxu0 0
      %833 = vmatpush2.bf16.msra.mxu0 0
      %834 = vmatprep.subr.bf16.mxu0 0
      %835 = vmatpush2.bf16.msra.mxu0 0
      %836 = vmatprep.subr.bf16.mxu0 0
      %837 = vmatpush2.bf16.msra.mxu0 0
      %838 = vmatprep.mubr.bf16.mxu0 0
      %839 = vmatmul.mubr.bf16.gmra.mxu0 %v804
      %v840 = vpop.f32.mrf.mxu0
      %v841 = vadd.f32 0.0, %v840
      %v842 = vpop.f32.mrf.mxu0
      %v843 = vpop.f32.mrf.mxu0
      %v844 = vadd.f32 0.0, %v843
      %v845 = vpop.f32.mrf.mxu0
      %846 = vdwg.mxu0
      %v847 = vadd.f32 %v786, %v841
      %v848 = vadd.f32 %v787, %v844
      %s849 = scalar_lea.vmem %s215, 80
      %v850 = vld [vmem:[%s849] sm:$0xf]
      %v851 = vld [vmem:[%s849 + $0x4] sm:$0xf]
      %v854 = vunpack.c.l.b16 %v850
      %v855 = vunpack.c.l.b16 %v851
      %v856 = vpack.c.b16 %v855, %v854
      %857 = vrot.lane.b32.xlu0 %v257, 114
      %v858 = vpop.permute.xlu0 %857
      %859 = vrot.lane.b32.xlu0 %v258, 114
      %v860 = vpop.permute.xlu0 %859
      %vm861 = vcmask 932864
      %v862 = vsel %vm861, %v858, %v860
      %v865 = vsel %vm266, %v856, 0
      %867 = vmatprep.subr.bf16.mxu0 0
      %868 = vmatpush1.bf16.msra.mxu0 0
      %869 = vmatprep.subr.bf16.mxu0 0
      %870 = vmatpush1.bf16.msra.mxu0 0
      %871 = vmatprep.subr.bf16.mxu0 0
      %872 = vmatpush1.bf16.msra.mxu0 0
      %873 = vmatprep.subr.bf16.mxu0 0
      %874 = vmatpush1.bf16.msra.mxu0 0
      %875 = vmatprep.subr.bf16.mxu0 0
      %876 = vmatpush1.bf16.msra.mxu0 0
      %877 = vmatprep.subr.bf16.mxu0 0
      %878 = vmatpush1.bf16.msra.mxu0 0
      %879 = vmatprep.subr.bf16.mxu0 0
      %880 = vmatpush1.bf16.msra.mxu0 0
      %881 = vmatprep.subr.bf16.mxu0 0
      %882 = vmatpush1.bf16.msra.mxu0 %v862
      %883 = vmatprep.subr.bf16.mxu0 0
      %884 = vmatpush2.bf16.msra.mxu0 0
      %885 = vmatprep.subr.bf16.mxu0 0
      %886 = vmatpush2.bf16.msra.mxu0 0
      %887 = vmatprep.subr.bf16.mxu0 0
      %888 = vmatpush2.bf16.msra.mxu0 0
      %889 = vmatprep.subr.bf16.mxu0 0
      %890 = vmatpush2.bf16.msra.mxu0 0
      %891 = vmatprep.subr.bf16.mxu0 0
      %892 = vmatpush2.bf16.msra.mxu0 0
      %893 = vmatprep.subr.bf16.mxu0 0
      %894 = vmatpush2.bf16.msra.mxu0 0
      %895 = vmatprep.subr.bf16.mxu0 0
      %896 = vmatpush2.bf16.msra.mxu0 0
      %897 = vmatprep.subr.bf16.mxu0 0
      %898 = vmatpush2.bf16.msra.mxu0 0
      %899 = vmatprep.mubr.bf16.mxu0 0
      %900 = vmatmul.mubr.bf16.gmra.mxu0 %v865
      %v901 = vpop.f32.mrf.mxu0
      %v902 = vadd.f32 0.0, %v901
      %v903 = vpop.f32.mrf.mxu0
      %v904 = vpop.f32.mrf.mxu0
      %v905 = vadd.f32 0.0, %v904
      %v906 = vpop.f32.mrf.mxu0
      %907 = vdwg.mxu0
      %v908 = vadd.f32 %v847, %v902
      %v909 = vadd.f32 %v848, %v905
      %s910 = scalar_lea.vmem %s215, 88
      %v911 = vld [vmem:[%s910] sm:$0xf]
      %v912 = vld [vmem:[%s910 + $0x4] sm:$0xf]
      %v915 = vunpack.c.l.b16 %v911
      %v916 = vunpack.c.l.b16 %v912
      %v917 = vpack.c.b16 %v916, %v915
      %918 = vrot.lane.b32.xlu0 %v257, 113
      %v919 = vpop.permute.xlu0 %918
      %920 = vrot.lane.b32.xlu0 %v258, 113
      %v921 = vpop.permute.xlu0 %920
      %vm922 = vcmask 924672
      %v923 = vsel %vm922, %v919, %v921
      %v926 = vsel %vm266, %v917, 0
      %928 = vmatprep.subr.bf16.mxu0 0
      %929 = vmatpush1.bf16.msra.mxu0 0
      %930 = vmatprep.subr.bf16.mxu0 0
      %931 = vmatpush1.bf16.msra.mxu0 0
      %932 = vmatprep.subr.bf16.mxu0 0
      %933 = vmatpush1.bf16.msra.mxu0 0
      %934 = vmatprep.subr.bf16.mxu0 0
      %935 = vmatpush1.bf16.msra.mxu0 0
      %936 = vmatprep.subr.bf16.mxu0 0
      %937 = vmatpush1.bf16.msra.mxu0 0
      %938 = vmatprep.subr.bf16.mxu0 0
      %939 = vmatpush1.bf16.msra.mxu0 0
      %940 = vmatprep.subr.bf16.mxu0 0
      %941 = vmatpush1.bf16.msra.mxu0 0
      %942 = vmatprep.subr.bf16.mxu0 0
      %943 = vmatpush1.bf16.msra.mxu0 %v923
      %944 = vmatprep.subr.bf16.mxu0 0
      %945 = vmatpush2.bf16.msra.mxu0 0
      %946 = vmatprep.subr.bf16.mxu0 0
      %947 = vmatpush2.bf16.msra.mxu0 0
      %948 = vmatprep.subr.bf16.mxu0 0
      %949 = vmatpush2.bf16.msra.mxu0 0
      %950 = vmatprep.subr.bf16.mxu0 0
      %951 = vmatpush2.bf16.msra.mxu0 0
      %952 = vmatprep.subr.bf16.mxu0 0
      %953 = vmatpush2.bf16.msra.mxu0 0
      %954 = vmatprep.subr.bf16.mxu0 0
      %955 = vmatpush2.bf16.msra.mxu0 0
      %956 = vmatprep.subr.bf16.mxu0 0
      %957 = vmatpush2.bf16.msra.mxu0 0
      %958 = vmatprep.subr.bf16.mxu0 0
      %959 = vmatpush2.bf16.msra.mxu0 0
      %960 = vmatprep.mubr.bf16.mxu0 0
      %961 = vmatmul.mubr.bf16.gmra.mxu0 %v926
      %v962 = vpop.f32.mrf.mxu0
      %v963 = vadd.f32 0.0, %v962
      %v964 = vpop.f32.mrf.mxu0
      %v965 = vpop.f32.mrf.mxu0
      %v966 = vadd.f32 0.0, %v965
      %v967 = vpop.f32.mrf.mxu0
      %968 = vdwg.mxu0
      %v969 = vadd.f32 %v908, %v963
      %v970 = vadd.f32 %v909, %v966
      %s971 = scalar_lea.vmem %s215, 96
      %v972 = vld [vmem:[%s971] sm:$0xf]
      %v973 = vld [vmem:[%s971 + $0x4] sm:$0xf]
      %v976 = vunpack.c.l.b16 %v972
      %v977 = vunpack.c.l.b16 %v973
      %v978 = vpack.c.b16 %v977, %v976
      %979 = vrot.lane.b32.xlu0 %v257, 110
      %v980 = vpop.permute.xlu0 %979
      %981 = vrot.lane.b32.xlu0 %v258, 110
      %v982 = vpop.permute.xlu0 %981
      %vm983 = vcmask 900096
      %v984 = vsel %vm983, %v980, %v982
      %v987 = vsel %vm266, %v978, 0
      %989 = vmatprep.subr.bf16.mxu0 0
      %990 = vmatpush1.bf16.msra.mxu0 0
      %991 = vmatprep.subr.bf16.mxu0 0
      %992 = vmatpush1.bf16.msra.mxu0 0
      %993 = vmatprep.subr.bf16.mxu0 0
      %994 = vmatpush1.bf16.msra.mxu0 0
      %995 = vmatprep.subr.bf16.mxu0 0
      %996 = vmatpush1.bf16.msra.mxu0 0
      %997 = vmatprep.subr.bf16.mxu0 0
      %998 = vmatpush1.bf16.msra.mxu0 0
      %999 = vmatprep.subr.bf16.mxu0 0
      %1000 = vmatpush1.bf16.msra.mxu0 0
      %1001 = vmatprep.subr.bf16.mxu0 0
      %1002 = vmatpush1.bf16.msra.mxu0 0
      %1003 = vmatprep.subr.bf16.mxu0 0
      %1004 = vmatpush1.bf16.msra.mxu0 %v984
      %1005 = vmatprep.subr.bf16.mxu0 0
      %1006 = vmatpush2.bf16.msra.mxu0 0
      %1007 = vmatprep.subr.bf16.mxu0 0
      %1008 = vmatpush2.bf16.msra.mxu0 0
      %1009 = vmatprep.subr.bf16.mxu0 0
      %1010 = vmatpush2.bf16.msra.mxu0 0
      %1011 = vmatprep.subr.bf16.mxu0 0
      %1012 = vmatpush2.bf16.msra.mxu0 0
      %1013 = vmatprep.subr.bf16.mxu0 0
      %1014 = vmatpush2.bf16.msra.mxu0 0
      %1015 = vmatprep.subr.bf16.mxu0 0
      %1016 = vmatpush2.bf16.msra.mxu0 0
      %1017 = vmatprep.subr.bf16.mxu0 0
      %1018 = vmatpush2.bf16.msra.mxu0 0
      %1019 = vmatprep.subr.bf16.mxu0 0
      %1020 = vmatpush2.bf16.msra.mxu0 0
      %1021 = vmatprep.mubr.bf16.mxu0 0
      %1022 = vmatmul.mubr.bf16.gmra.mxu0 %v987
      %v1023 = vpop.f32.mrf.mxu0
      %v1024 = vadd.f32 0.0, %v1023
      %v1025 = vpop.f32.mrf.mxu0
      %v1026 = vpop.f32.mrf.mxu0
      %v1027 = vadd.f32 0.0, %v1026
      %v1028 = vpop.f32.mrf.mxu0
      %1029 = vdwg.mxu0
      %v1030 = vadd.f32 %v969, %v1024
      %v1031 = vadd.f32 %v970, %v1027
      %s1032 = scalar_lea.vmem %s215, 104
      %v1033 = vld [vmem:[%s1032] sm:$0xf]
      %v1034 = vld [vmem:[%s1032 + $0x4] sm:$0xf]
      %v1037 = vunpack.c.l.b16 %v1033
      %v1038 = vunpack.c.l.b16 %v1034
      %v1039 = vpack.c.b16 %v1038, %v1037
      %1040 = vrot.lane.b32.xlu0 %v257, 109
      %v1041 = vpop.permute.xlu0 %1040
      %1042 = vrot.lane.b32.xlu0 %v258, 109
      %v1043 = vpop.permute.xlu0 %1042
      %vm1044 = vcmask 891904
      %v1045 = vsel %vm1044, %v1041, %v1043
      %v1048 = vsel %vm266, %v1039, 0
      %1050 = vmatprep.subr.bf16.mxu0 0
      %1051 = vmatpush1.bf16.msra.mxu0 0
      %1052 = vmatprep.subr.bf16.mxu0 0
      %1053 = vmatpush1.bf16.msra.mxu0 0
      %1054 = vmatprep.subr.bf16.mxu0 0
      %1055 = vmatpush1.bf16.msra.mxu0 0
      %1056 = vmatprep.subr.bf16.mxu0 0
      %1057 = vmatpush1.bf16.msra.mxu0 0
      %1058 = vmatprep.subr.bf16.mxu0 0
      %1059 = vmatpush1.bf16.msra.mxu0 0
      %1060 = vmatprep.subr.bf16.mxu0 0
      %1061 = vmatpush1.bf16.msra.mxu0 0
      %1062 = vmatprep.subr.bf16.mxu0 0
      %1063 = vmatpush1.bf16.msra.mxu0 0
      %1064 = vmatprep.subr.bf16.mxu0 0
      %1065 = vmatpush1.bf16.msra.mxu0 %v1045
      %1066 = vmatprep.subr.bf16.mxu0 0
      %1067 = vmatpush2.bf16.msra.mxu0 0
      %1068 = vmatprep.subr.bf16.mxu0 0
      %1069 = vmatpush2.bf16.msra.mxu0 0
      %1070 = vmatprep.subr.bf16.mxu0 0
      %1071 = vmatpush2.bf16.msra.mxu0 0
      %1072 = vmatprep.subr.bf16.mxu0 0
      %1073 = vmatpush2.bf16.msra.mxu0 0
      %1074 = vmatprep.subr.bf16.mxu0 0
      %1075 = vmatpush2.bf16.msra.mxu0 0
      %1076 = vmatprep.subr.bf16.mxu0 0
      %1077 = vmatpush2.bf16.msra.mxu0 0
      %1078 = vmatprep.subr.bf16.mxu0 0
      %1079 = vmatpush2.bf16.msra.mxu0 0
      %1080 = vmatprep.subr.bf16.mxu0 0
      %1081 = vmatpush2.bf16.msra.mxu0 0
      %1082 = vmatprep.mubr.bf16.mxu0 0
      %1083 = vmatmul.mubr.bf16.gmra.mxu0 %v1048
      %v1084 = vpop.f32.mrf.mxu0
      %v1085 = vadd.f32 0.0, %v1084
      %v1086 = vpop.f32.mrf.mxu0
      %v1087 = vpop.f32.mrf.mxu0
      %v1088 = vadd.f32 0.0, %v1087
      %v1089 = vpop.f32.mrf.mxu0
      %1090 = vdwg.mxu0
      %v1091 = vadd.f32 %v1030, %v1085
      %v1092 = vadd.f32 %v1031, %v1088
      %s1093 = scalar_lea.vmem %s215, 112
      %v1094 = vld [vmem:[%s1093] sm:$0xf]
      %v1095 = vld [vmem:[%s1093 + $0x4] sm:$0xf]
      %v1098 = vunpack.c.l.b16 %v1094
      %v1099 = vunpack.c.l.b16 %v1095
      %v1100 = vpack.c.b16 %v1099, %v1098
      %1101 = vrot.lane.b32.xlu0 %v257, 108
      %v1102 = vpop.permute.xlu0 %1101
      %1103 = vrot.lane.b32.xlu0 %v258, 108
      %v1104 = vpop.permute.xlu0 %1103
      %vm1105 = vcmask 883712
      %v1106 = vsel %vm1105, %v1102, %v1104
      %v1109 = vsel %vm266, %v1100, 0
      %1111 = vmatprep.subr.bf16.mxu0 0
      %1112 = vmatpush1.bf16.msra.mxu0 0
      %1113 = vmatprep.subr.bf16.mxu0 0
      %1114 = vmatpush1.bf16.msra.mxu0 0
      %1115 = vmatprep.subr.bf16.mxu0 0
      %1116 = vmatpush1.bf16.msra.mxu0 0
      %1117 = vmatprep.subr.bf16.mxu0 0
      %1118 = vmatpush1.bf16.msra.mxu0 0
      %1119 = vmatprep.subr.bf16.mxu0 0
      %1120 = vmatpush1.bf16.msra.mxu0 0
      %1121 = vmatprep.subr.bf16.mxu0 0
      %1122 = vmatpush1.bf16.msra.mxu0 0
      %1123 = vmatprep.subr.bf16.mxu0 0
      %1124 = vmatpush1.bf16.msra.mxu0 0
      %1125 = vmatprep.subr.bf16.mxu0 0
      %1126 = vmatpush1.bf16.msra.mxu0 %v1106
      %1127 = vmatprep.subr.bf16.mxu0 0
      %1128 = vmatpush2.bf16.msra.mxu0 0
      %1129 = vmatprep.subr.bf16.mxu0 0
      %1130 = vmatpush2.bf16.msra.mxu0 0
      %1131 = vmatprep.subr.bf16.mxu0 0
      %1132 = vmatpush2.bf16.msra.mxu0 0
      %1133 = vmatprep.subr.bf16.mxu0 0
      %1134 = vmatpush2.bf16.msra.mxu0 0
      %1135 = vmatprep.subr.bf16.mxu0 0
      %1136 = vmatpush2.bf16.msra.mxu0 0
      %1137 = vmatprep.subr.bf16.mxu0 0
      %1138 = vmatpush2.bf16.msra.mxu0 0
      %1139 = vmatprep.subr.bf16.mxu0 0
      %1140 = vmatpush2.bf16.msra.mxu0 0
      %1141 = vmatprep.subr.bf16.mxu0 0
      %1142 = vmatpush2.bf16.msra.mxu0 0
      %1143 = vmatprep.mubr.bf16.mxu0 0
      %1144 = vmatmul.mubr.bf16.gmra.mxu0 %v1109
      %v1145 = vpop.f32.mrf.mxu0
      %v1146 = vadd.f32 0.0, %v1145
      %v1147 = vpop.f32.mrf.mxu0
      %v1148 = vpop.f32.mrf.mxu0
      %v1149 = vadd.f32 0.0, %v1148
      %v1150 = vpop.f32.mrf.mxu0
      %1151 = vdwg.mxu0
      %v1152 = vadd.f32 %v1091, %v1146
      %v1153 = vadd.f32 %v1092, %v1149
      %s1154 = scalar_lea.vmem %s215, 120
      %v1155 = vld [vmem:[%s1154] sm:$0xf]
      %v1156 = vld [vmem:[%s1154 + $0x4] sm:$0xf]
      %v1159 = vunpack.c.l.b16 %v1155
      %v1160 = vunpack.c.l.b16 %v1156
      %v1161 = vpack.c.b16 %v1160, %v1159
      %1162 = vrot.lane.b32.xlu0 %v257, 107
      %v1163 = vpop.permute.xlu0 %1162
      %1164 = vrot.lane.b32.xlu0 %v258, 107
      %v1165 = vpop.permute.xlu0 %1164
      %vm1166 = vcmask 875520
      %v1167 = vsel %vm1166, %v1163, %v1165
      %v1170 = vsel %vm266, %v1161, 0
      %1172 = vmatprep.subr.bf16.mxu0 0
      %1173 = vmatpush1.bf16.msra.mxu0 0
      %1174 = vmatprep.subr.bf16.mxu0 0
      %1175 = vmatpush1.bf16.msra.mxu0 0
      %1176 = vmatprep.subr.bf16.mxu0 0
      %1177 = vmatpush1.bf16.msra.mxu0 0
      %1178 = vmatprep.subr.bf16.mxu0 0
      %1179 = vmatpush1.bf16.msra.mxu0 0
      %1180 = vmatprep.subr.bf16.mxu0 0
      %1181 = vmatpush1.bf16.msra.mxu0 0
      %1182 = vmatprep.subr.bf16.mxu0 0
      %1183 = vmatpush1.bf16.msra.mxu0 0
      %1184 = vmatprep.subr.bf16.mxu0 0
      %1185 = vmatpush1.bf16.msra.mxu0 0
      %1186 = vmatprep.subr.bf16.mxu0 0
      %1187 = vmatpush1.bf16.msra.mxu0 %v1167
      %1188 = vmatprep.subr.bf16.mxu0 0
      %1189 = vmatpush2.bf16.msra.mxu0 0
      %1190 = vmatprep.subr.bf16.mxu0 0
      %1191 = vmatpush2.bf16.msra.mxu0 0
      %1192 = vmatprep.subr.bf16.mxu0 0
      %1193 = vmatpush2.bf16.msra.mxu0 0
      %1194 = vmatprep.subr.bf16.mxu0 0
      %1195 = vmatpush2.bf16.msra.mxu0 0
      %1196 = vmatprep.subr.bf16.mxu0 0
      %1197 = vmatpush2.bf16.msra.mxu0 0
      %1198 = vmatprep.subr.bf16.mxu0 0
      %1199 = vmatpush2.bf16.msra.mxu0 0
      %1200 = vmatprep.subr.bf16.mxu0 0
      %1201 = vmatpush2.bf16.msra.mxu0 0
      %1202 = vmatprep.subr.bf16.mxu0 0
      %1203 = vmatpush2.bf16.msra.mxu0 0
      %1204 = vmatprep.mubr.bf16.mxu0 0
      %1205 = vmatmul.mubr.bf16.gmra.mxu0 %v1170
      %v1206 = vpop.f32.mrf.mxu0
      %v1207 = vadd.f32 0.0, %v1206
      %v1208 = vpop.f32.mrf.mxu0
      %v1209 = vpop.f32.mrf.mxu0
      %v1210 = vadd.f32 0.0, %v1209
      %v1211 = vpop.f32.mrf.mxu0
      %1212 = vdwg.mxu0
      %v1213 = vadd.f32 %v1152, %v1207
      %v1214 = vadd.f32 %v1153, %v1210
      %v1215 = vld [vmem:[%s221] sm:$0xff]
      %v1216 = vld [vmem:[%s221 + $0x8] sm:$0xff]
      %1218 = vset.pattern.permute.xlu0 0
      %1219 = vperm.xlu0 %1218, %v1215
      %v1220 = vpop.permute.xlu0 %1219
      %1223 = vset.pattern.permute.xlu0 0
      %1224 = vperm.xlu0 %1223, %v1216
      %v1225 = vpop.permute.xlu0 %1224
      %v1227 = vadd.f32 %v1213, %v1220
      %v1228 = vadd.f32 %v1214, %v1225
      %1229 = vst [vmem:[%s236] sm:$0xff] %v1227
      %1230 = vst [vmem:[%s236 + $0x8] sm:$0xff] %v1228
      %s1231 = smul.u32 2, %s19
      %p1232 = scmp.lt.s32.totalorder %s18, 1
      %s1233 = scalar_select %p1232, %s18, 1
      %p1234 = scmp.lt.s32.totalorder %s1231, 1
      %s1235 = scalar_select %p1234, %s1231, 1
      %s1236 = smul.addr %s1233, 2
      %s1237 = sadd.s32 %s1235, %s1236
      %s1238 = smul.addr %s1237, 8
      %s1239 = scalar_lea.vmem %s3, %s1238
      // Predicated region
      $region33: #{discriminator_forward.5} parent=31 // pred_check
        %p1240 = pneg %p124
      $region34: #{discriminator_forward.5} parent=31 // pred_check_branch
        %1242 = sbr.rel (%p1240) target = $region36
      $region35: #{discriminator_forward.5} parent=31 // pred_region
        %s1243 = smul.u32 2, %s19
      $region36: #{discriminator_forward.5} parent=31 // pred_fallthru
        _
    $region32: #{discriminator_forward.5} parent=5 // pred_fallthru
      _
    %p1244 = scmp.le.s32.totalorder 2, %s9
    // Predicated region
    $region37: #{discriminator_forward.5} parent=5 // pred_check
      %p1245 = pneg %p1244
    $region38: #{discriminator_forward.5} parent=5 // pred_check_branch
      %1247 = sbr.rel (%p1245) target = $region40
    $region39: #{discriminator_forward.5} parent=5 // pred_region
      %s1248 = ssub.s32 %s9, 2
      // Predicated region
      $region41: #{discriminator_forward.5} parent=39 // pred_check
        %p1249 = pneg %p130
      $region42: #{discriminator_forward.5} parent=39 // pred_check_branch
        %1251 = sbr.rel (%p1249) target = $region44
      $region43: #{discriminator_forward.5} parent=39 // pred_region
        %s1252 = smul.u32 2, %s21
        %p1253 = scmp.lt.s32.totalorder %s20, 1
        %s1254 = scalar_select %p1253, %s20, 1
        %p1255 = scmp.lt.s32.totalorder %s1252, 1
        %s1256 = scalar_select %p1255, %s1252, 1
        %s1257 = smul.addr %s1254, 2
        %s1258 = sadd.s32 %s1256, %s1257
        %s1259 = smul.addr %s1258, 8
        %s1260 = scalar_lea.vmem %s3, %s1259
      $region44: #{discriminator_forward.5} parent=39 // pred_fallthru
        _
    $region40: #{discriminator_forward.5} parent=5 // pred_fallthru
      _
  $region6: #{discriminator_forward.5} parent=0 // loop_footer
    %s13 = sadd.s32 1, %s9
  $region7: #{discriminator_forward.5} parent=0 // loop_footer_branch
    %8 = sbr.rel target = $region3
  $region8: #{discriminator_forward.5} parent=0 // loop_exit
    _

// kernel: discriminator_forward.4
$region0: #{discriminator_forward.4}
  #allocation0 [shape = 'u32[]', space=smem, size = 0x4, offset = 0x4, fixed_abs, tag = 'smem constant byte address 0x4 - core index']
  #allocation1 [shape = 'u32[144,128]{1,0:T(1,128)}', space=vmem, size = 0x12000, scoped, tag = 'internal scratch']
  %s0 = inlined_call_operand.vmem [shape: bf16[16,16,8], index: 0, kind: input, shape index: {}]
  %s1 = inlined_call_operand.vmem [shape: bf16[2,1,8,256], index: 1, kind: input, shape index: {}]
  %s2 = inlined_call_operand.vmem [shape: f32[1,128], index: 2, kind: input, shape index: {}]
  %s3 = inlined_call_operand.vmem [shape: bf16[2,16,128], index: 3, kind: output, shape index: {}]
  %s4 = sld [smem:[#allocation0]]
  $region45: #{discriminator_forward.4} parent=0
    _
  %s6 = ssub.s32 1, %s4
  %s7 = scalar_select 0, %s6, %s4
  loop: start=0, step=1, limit=4
  $region2: #{discriminator_forward.4} parent=0 // loop_pre_header
    _
  $region3: #{discriminator_forward.4} parent=0 // loop_header
    %s9 = sphi 0, %s13
    %p10 = scmp.ge.s32.totalorder %s9, 4
    %s16 = sphi 0, %s28
    %s17 = sphi 0, %s24
    %s18 = sphi 0, %s16
    %s19 = sphi 0, %s17
    %s20 = sphi 0, %s18
    %s21 = sphi 0, %s19
    %s31 = sphi 0, %s33
    %s34 = sphi 0, %s31
    %s35 = sphi 0, %s34
    %s51 = sphi 0, %s35
    %s57 = sphi 0, %s59
    %s60 = sphi 0, %s57
    %s61 = sphi 0, %s60
    %s77 = sphi 0, %s61
    %s81 = sphi 0, %s81
    %s83 = sphi 0, %s81
    %s84 = sphi 0, %s83
    %s98 = sphi 0, %s84
    %s106 = sphi 0, %s108
    %s109 = sphi 0, %s106
    %s110 = sphi 0, %s109
    %s126 = sphi 0, %s110
  $region4: #{discriminator_forward.4} parent=0 // loop_header_branch
    %12 = sbr.rel (%p10) target = $region8
  $region5: #{discriminator_forward.4} parent=0 // loop_body
    %s14 = ssub.s32 %s9, 1
    %s15 = ssub.s32 %s9, 2
    %s22 = sadd.s32 1, %s17
    %p23 = scmp.ge.s32.totalorder %s22, 1
    %s24 = scalar_select %p23, 0, %s22
    %s25 = sadd.s32 1, %s16
    %s26 = scalar_select %p23, %s25, %s16
    %p27 = scmp.ge.s32.totalorder %s26, 2
    %s28 = scalar_select %p27, 0, %s26
    %s29 = ssub.s32 %s17, %s24
    %p30 = scmp.eq.s32.totalorder %s29, 0
    %s32 = sadd.s32 %s31, 1
    %s33 = scalar_select %p30, %s31, %s32
    %p36 = pneg %p30
    %p37 = scmp.eq.s32.totalorder %s9, 1
    %p38 = por %p36, %p37
    %p39 = scmp.ne.s32.totalorder %s31, %s34
    %p40 = scmp.eq.s32.totalorder %s9, 0
    %p41 = por %p39, %p40
    %p42 = scmp.ne.s32.totalorder %s31, %s34
    %p43 = scmp.eq.s32.totalorder %s14, 1
    %p44 = por %p42, %p43
    %p45 = scmp.ne.s32.totalorder %s34, %s35
    %p46 = scmp.eq.s32.totalorder %s14, 0
    %p47 = por %p45, %p46
    %p48 = scmp.ne.s32.totalorder %s34, %s35
    %p49 = scmp.eq.s32.totalorder %s15, 1
    %p50 = por %p48, %p49
    %p52 = scmp.ne.s32.totalorder %s35, %s51
    %p53 = scmp.eq.s32.totalorder %s15, 0
    %p54 = por %p52, %p53
    %s55 = ssub.s32 %s16, %s28
    %p56 = scmp.eq.s32.totalorder %s55, 0
    %s58 = sadd.s32 %s57, 1
    %s59 = scalar_select %p56, %s57, %s58
    %p62 = pneg %p56
    %p63 = scmp.eq.s32.totalorder %s9, 1
    %p64 = por %p62, %p63
    %p65 = scmp.ne.s32.totalorder %s57, %s60
    %p66 = scmp.eq.s32.totalorder %s9, 0
    %p67 = por %p65, %p66
    %p68 = scmp.ne.s32.totalorder %s57, %s60
    %p69 = scmp.eq.s32.totalorder %s14, 1
    %p70 = por %p68, %p69
    %p71 = scmp.ne.s32.totalorder %s60, %s61
    %p72 = scmp.eq.s32.totalorder %s14, 0
    %p73 = por %p71, %p72
    %p74 = scmp.ne.s32.totalorder %s60, %s61
    %p75 = scmp.eq.s32.totalorder %s15, 1
    %p76 = por %p74, %p75
    %p78 = scmp.ne.s32.totalorder %s61, %s77
    %p79 = scmp.eq.s32.totalorder %s15, 0
    %p80 = por %p78, %p79
    %s82 = sadd.s32 %s81, 1
    %p85 = scmp.eq.s32.totalorder %s9, 1
    %p86 = scmp.ne.s32.totalorder %s81, %s83
    %p87 = scmp.eq.s32.totalorder %s9, 0
    %p88 = por %p86, %p87
    %p89 = scmp.ne.s32.totalorder %s81, %s83
    %p90 = scmp.eq.s32.totalorder %s14, 1
    %p91 = por %p89, %p90
    %p92 = scmp.ne.s32.totalorder %s83, %s84
    %p93 = scmp.eq.s32.totalorder %s14, 0
    %p94 = por %p92, %p93
    %p95 = scmp.ne.s32.totalorder %s83, %s84
    %p96 = scmp.eq.s32.totalorder %s15, 1
    %p97 = por %p95, %p96
    %p99 = scmp.ne.s32.totalorder %s84, %s98
    %p100 = scmp.eq.s32.totalorder %s15, 0
    %p101 = por %p99, %p100
    %s102 = ssub.s32 %s16, %s28
    %s103 = ssub.s32 %s17, %s24
    %s104 = sor.u32 %s102, %s103
    %p105 = scmp.eq.s32.totalorder %s104, 0
    %s107 = sadd.s32 %s106, 1
    %s108 = scalar_select %p105, %s106, %s107
    %p111 = pneg %p105
    %p112 = scmp.eq.s32.totalorder %s9, 1
    %p113 = por %p111, %p112
    %p114 = scmp.ne.s32.totalorder %s106, %s109
    %p115 = scmp.eq.s32.totalorder %s9, 0
    %p116 = por %p114, %p115
    %p117 = scmp.ne.s32.totalorder %s106, %s109
    %p118 = scmp.eq.s32.totalorder %s14, 1
    %p119 = por %p117, %p118
    %p120 = scmp.ne.s32.totalorder %s109, %s110
    %p121 = scmp.eq.s32.totalorder %s14, 0
    %p122 = por %p120, %p121
    %p123 = scmp.ne.s32.totalorder %s109, %s110
    %p124 = scmp.eq.s32.totalorder %s15, 1
    %p125 = por %p123, %p124
    %p127 = scmp.ne.s32.totalorder %s110, %s126
    %p128 = scmp.eq.s32.totalorder %s15, 0
    %p129 = por %p127, %p128
    %p130 = scmp.le.s32.totalorder 1, %s9
    %p131 = scmp.lt.s32.totalorder %s9, 3
    %p132 = pnand %p130, %p131
    %p133 = pneg %p132
    // Predicated region
    $region9: #{discriminator_forward.4} parent=5 // pred_check
      _
    $region10: #{discriminator_forward.4} parent=5 // pred_check_branch
      %135 = sbr.rel (%p132) target = $region12
    $region11: #{discriminator_forward.4} parent=5 // pred_region
      %s136 = ssub.s32 %s9, 1
      // Predicated region
      $region13: #{discriminator_forward.4} parent=11 // pred_check
        %p137 = pneg %p47
      $region14: #{discriminator_forward.4} parent=11 // pred_check_branch
        %139 = sbr.rel (%p137) target = $region16
      $region15: #{discriminator_forward.4} parent=11 // pred_region
        %s140 = smul.u32 2, %s19
        %p141 = scmp.lt.s32.totalorder %s140, 1
        %s142 = scalar_select %p141, %s140, 1
        %s143 = smul.addr %s142, 4
        %s144 = scalar_lea.vmem %s0, %s143
        %s145 = smul.u32 2, %s19
      $region16: #{discriminator_forward.4} parent=11 // pred_fallthru
        _
      // Predicated region
      $region17: #{discriminator_forward.4} parent=11 // pred_check
        %p146 = pneg %p94
      $region18: #{discriminator_forward.4} parent=11 // pred_check_branch
        %148 = sbr.rel (%p146) target = $region20
      $region19: #{discriminator_forward.4} parent=11 // pred_region
        _
      $region20: #{discriminator_forward.4} parent=11 // pred_fallthru
        _
    $region12: #{discriminator_forward.4} parent=5 // pred_fallthru
      _
    %p149 = scmp.lt.s32.totalorder %s9, 2
    // Predicated region
    $region21: #{discriminator_forward.4} parent=5 // pred_check
      %p150 = pneg %p149
    $region22: #{discriminator_forward.4} parent=5 // pred_check_branch
      %152 = sbr.rel (%p150) target = $region24
    $region23: #{discriminator_forward.4} parent=5 // pred_region
      // Predicated region
      $region25: #{discriminator_forward.4} parent=23 // pred_check
        %p153 = pneg %p67
      $region26: #{discriminator_forward.4} parent=23 // pred_check_branch
        %155 = sbr.rel (%p153) target = $region28
      $region27: #{discriminator_forward.4} parent=23 // pred_region
        %p156 = scmp.lt.s32.totalorder %s16, 1
        %s157 = scalar_select %p156, %s16, 1
        %s158 = smul.addr %s157, 2
        %s159 = smul.addr %s158, 4
        %s160 = scalar_lea.vmem %s1, %s159
      $region28: #{discriminator_forward.4} parent=23 // pred_fallthru
        _
    $region24: #{discriminator_forward.4} parent=5 // pred_fallthru
      _
    %p161 = scmp.le.s32.totalorder 1, %s9
    %p162 = scmp.lt.s32.totalorder %s9, 3
    %p163 = pnand %p161, %p162
    %p164 = pneg %p163
    // Predicated region
    $region29: #{discriminator_forward.4} parent=5 // pred_check
      _
    $region30: #{discriminator_forward.4} parent=5 // pred_check_branch
      %166 = sbr.rel (%p163) target = $region32
    $region31: #{discriminator_forward.4} parent=5 // pred_region
      %s167 = ssub.s32 %s9, 1
      %s168 = smul.u32 2, %s19
      %p169 = scmp.lt.s32.totalorder %s168, 1
      %s170 = scalar_select %p169, %s168, 1
      %s171 = smul.addr %s170, 4
      %s172 = scalar_lea.vmem %s0, %s171
      %p173 = pneg %p47
      %p174 = pneg %p44
      %p175 = scmp.lt.s32.totalorder %s18, 1
      %s176 = scalar_select %p175, %s18, 1
      %s177 = smul.addr %s176, 2
      %s178 = smul.addr %s177, 4
      %s179 = scalar_lea.vmem %s1, %s178
      %p180 = pneg %p73
      %p181 = pneg %p70
      %p182 = pneg %p94
      %p183 = pneg %p91
      %p184 = pneg %p122
      %p185 = pneg %p119
      %s186 = smul.u32 2, %s19
      %p187 = scmp.lt.s32.totalorder %s18, 1
      %s188 = scalar_select %p187, %s18, 1
      %p189 = scmp.lt.s32.totalorder %s186, 1
      %s190 = scalar_select %p189, %s186, 1
      %s191 = smul.addr %s188, 2
      %s192 = sadd.s32 %s190, %s191
      %s193 = smul.addr %s192, 4
      %s194 = scalar_lea.vmem %s3, %s193
      %s195 = smul.u32 2, %s19
      %p196 = scmp.lt.s32.totalorder %s195, 1
      %s197 = scalar_select %p196, %s195, 1
      %s198 = smul.addr %s197, 4
      %s199 = scalar_lea.vmem %s0, %s198
      %s200 = smul.u32 2, %s19
      %p201 = scmp.lt.s32.totalorder %s18, 1
      %s202 = scalar_select %p201, %s18, 1
      %s203 = smul.addr %s202, 2
      %s204 = smul.addr %s203, 4
      %s205 = scalar_lea.vmem %s1, %s204
      %s206 = smul.u32 2, %s19
      %p207 = scmp.lt.s32.totalorder %s18, 1
      %s208 = scalar_select %p207, %s18, 1
      %p209 = scmp.lt.s32.totalorder %s206, 1
      %s210 = scalar_select %p209, %s206, 1
      %s211 = smul.addr %s208, 2
      %s212 = sadd.s32 %s210, %s211
      %s213 = smul.addr %s212, 4
      %s214 = scalar_lea.vmem %s3, %s213
      %s215 = smul.u32 2, %s19
      %v217 = vld [vmem:[%s205] sm:$0xff]
      %v218 = vld [vmem:[%s199] sm:$0xf]
      %v219 = vld [vmem:[%s199 + $0x4] sm:$0xf]
      %s220 = scalar_lea.vmem %s199, 8
      %v221 = vld [vmem:[%s220] sm:$0xf]
      %v222 = vld [vmem:[%s220 + $0x4] sm:$0xf]
      %v225 = vunpack.c.l.b16 %v221
      %v226 = vunpack.c.l.b16 %v222
      %v227 = vpack.c.b16 %v226, %v225
      %v229 = vunpack.c.l.b16 %v217
      %v230 = vunpack.c.h.b16 %v217
      %v231 = vpack.c.b16 %v229, %v229
      %v232 = vpack.c.b16 %v230, %v230
      %233 = vrot.lane.b32.xlu0 %v231, 127
      %v234 = vpop.permute.xlu0 %233
      %235 = vrot.lane.b32.xlu0 %v232, 127
      %v236 = vpop.permute.xlu0 %235
      %vm237 = vcmask 1039360
      %v238 = vsel %vm237, %v234, %v236
      %vm239 = vcmask 64512
      %v241 = vsel %vm239, %v227, 0
      %vm243 = vcmask 1043456
      %v245 = vsel %vm243, %v238, 0
      %247 = vmatprep.subr.bf16.mxu0 0
      %248 = vmatpush1.bf16.msra.mxu0 0
      %249 = vmatprep.subr.bf16.mxu0 0
      %250 = vmatpush1.bf16.msra.mxu0 0
      %251 = vmatprep.subr.bf16.mxu0 0
      %252 = vmatpush1.bf16.msra.mxu0 0
      %253 = vmatprep.subr.bf16.mxu0 0
      %254 = vmatpush1.bf16.msra.mxu0 0
      %255 = vmatprep.subr.bf16.mxu0 0
      %256 = vmatpush1.bf16.msra.mxu0 0
      %257 = vmatprep.subr.bf16.mxu0 0
      %258 = vmatpush1.bf16.msra.mxu0 0
      %259 = vmatprep.subr.bf16.mxu0 0
      %260 = vmatpush1.bf16.msra.mxu0 0
      %261 = vmatprep.subr.bf16.mxu0 0
      %262 = vmatpush1.bf16.msra.mxu0 %v245
      %263 = vmatprep.subr.bf16.mxu0 0
      %264 = vmatpush2.bf16.msra.mxu0 0
      %265 = vmatprep.subr.bf16.mxu0 0
      %266 = vmatpush2.bf16.msra.mxu0 0
      %267 = vmatprep.subr.bf16.mxu0 0
      %268 = vmatpush2.bf16.msra.mxu0 0
      %269 = vmatprep.subr.bf16.mxu0 0
      %270 = vmatpush2.bf16.msra.mxu0 0
      %271 = vmatprep.subr.bf16.mxu0 0
      %272 = vmatpush2.bf16.msra.mxu0 0
      %273 = vmatprep.subr.bf16.mxu0 0
      %274 = vmatpush2.bf16.msra.mxu0 0
      %275 = vmatprep.subr.bf16.mxu0 0
      %276 = vmatpush2.bf16.msra.mxu0 0
      %277 = vmatprep.subr.bf16.mxu0 0
      %278 = vmatpush2.bf16.msra.mxu0 0
      %279 = vmatprep.mubr.bf16.mxu0 0
      %280 = vmatmul.mubr.bf16.gmra.mxu0 %v241
      %v281 = vpop.f32.mrf.mxu0
      %v282 = vadd.f32 0.0, %v281
      %v283 = vpop.f32.mrf.mxu0
      %v284 = vpop.f32.mrf.mxu0
      %v285 = vadd.f32 0.0, %v284
      %v286 = vpop.f32.mrf.mxu0
      %287 = vdwg.mxu0
      %v290 = vunpack.c.l.b16 %v218
      %v291 = vunpack.c.l.b16 %v219
      %v292 = vpack.c.b16 %v291, %v290
      %v294 = vsel %vm239, %v292, 0
      %v297 = vsel %vm243, %v217, 0
      %299 = vmatprep.subr.bf16.mxu0 0
      %300 = vmatpush1.bf16.msra.mxu0 0
      %301 = vmatprep.subr.bf16.mxu0 0
      %302 = vmatpush1.bf16.msra.mxu0 0
      %303 = vmatprep.subr.bf16.mxu0 0
      %304 = vmatpush1.bf16.msra.mxu0 0
      %305 = vmatprep.subr.bf16.mxu0 0
      %306 = vmatpush1.bf16.msra.mxu0 0
      %307 = vmatprep.subr.bf16.mxu0 0
      %308 = vmatpush1.bf16.msra.mxu0 0
      %309 = vmatprep.subr.bf16.mxu0 0
      %310 = vmatpush1.bf16.msra.mxu0 0
      %311 = vmatprep.subr.bf16.mxu0 0
      %312 = vmatpush1.bf16.msra.mxu0 0
      %313 = vmatprep.subr.bf16.mxu0 0
      %314 = vmatpush1.bf16.msra.mxu0 %v297
      %315 = vmatprep.subr.bf16.mxu0 0
      %316 = vmatpush2.bf16.msra.mxu0 0
      %317 = vmatprep.subr.bf16.mxu0 0
      %318 = vmatpush2.bf16.msra.mxu0 0
      %319 = vmatprep.subr.bf16.mxu0 0
      %320 = vmatpush2.bf16.msra.mxu0 0
      %321 = vmatprep.subr.bf16.mxu0 0
      %322 = vmatpush2.bf16.msra.mxu0 0
      %323 = vmatprep.subr.bf16.mxu0 0
      %324 = vmatpush2.bf16.msra.mxu0 0
      %325 = vmatprep.subr.bf16.mxu0 0
      %326 = vmatpush2.bf16.msra.mxu0 0
      %327 = vmatprep.subr.bf16.mxu0 0
      %328 = vmatpush2.bf16.msra.mxu0 0
      %329 = vmatprep.subr.bf16.mxu0 0
      %330 = vmatpush2.bf16.msra.mxu0 0
      %331 = vmatprep.mubr.bf16.mxu0 0
      %332 = vmatmul.mubr.bf16.gmra.mxu0 %v294
      %v333 = vpop.f32.mrf.mxu0
      %v334 = vadd.f32 %v282, %v333
      %v335 = vpop.f32.mrf.mxu0
      %v336 = vpop.f32.mrf.mxu0
      %v337 = vadd.f32 %v285, %v336
      %v338 = vpop.f32.mrf.mxu0
      %339 = vdwg.mxu0
      %s340 = scalar_lea.vmem %s199, 16
      %v341 = vld [vmem:[%s340] sm:$0xf]
      %v342 = vld [vmem:[%s340 + $0x4] sm:$0xf]
      %v345 = vunpack.c.l.b16 %v341
      %v346 = vunpack.c.l.b16 %v342
      %v347 = vpack.c.b16 %v346, %v345
      %348 = vrot.lane.b32.xlu0 %v231, 126
      %v349 = vpop.permute.xlu0 %348
      %350 = vrot.lane.b32.xlu0 %v232, 126
      %v351 = vpop.permute.xlu0 %350
      %vm352 = vcmask 1031168
      %v353 = vsel %vm352, %v349, %v351
      %v355 = vsel %vm239, %v347, 0
      %v358 = vsel %vm243, %v353, 0
      %360 = vmatprep.subr.bf16.mxu0 0
      %361 = vmatpush1.bf16.msra.mxu0 0
      %362 = vmatprep.subr.bf16.mxu0 0
      %363 = vmatpush1.bf16.msra.mxu0 0
      %364 = vmatprep.subr.bf16.mxu0 0
      %365 = vmatpush1.bf16.msra.mxu0 0
      %366 = vmatprep.subr.bf16.mxu0 0
      %367 = vmatpush1.bf16.msra.mxu0 0
      %368 = vmatprep.subr.bf16.mxu0 0
      %369 = vmatpush1.bf16.msra.mxu0 0
      %370 = vmatprep.subr.bf16.mxu0 0
      %371 = vmatpush1.bf16.msra.mxu0 0
      %372 = vmatprep.subr.bf16.mxu0 0
      %373 = vmatpush1.bf16.msra.mxu0 0
      %374 = vmatprep.subr.bf16.mxu0 0
      %375 = vmatpush1.bf16.msra.mxu0 %v358
      %376 = vmatprep.subr.bf16.mxu0 0
      %377 = vmatpush2.bf16.msra.mxu0 0
      %378 = vmatprep.subr.bf16.mxu0 0
      %379 = vmatpush2.bf16.msra.mxu0 0
      %380 = vmatprep.subr.bf16.mxu0 0
      %381 = vmatpush2.bf16.msra.mxu0 0
      %382 = vmatprep.subr.bf16.mxu0 0
      %383 = vmatpush2.bf16.msra.mxu0 0
      %384 = vmatprep.subr.bf16.mxu0 0
      %385 = vmatpush2.bf16.msra.mxu0 0
      %386 = vmatprep.subr.bf16.mxu0 0
      %387 = vmatpush2.bf16.msra.mxu0 0
      %388 = vmatprep.subr.bf16.mxu0 0
      %389 = vmatpush2.bf16.msra.mxu0 0
      %390 = vmatprep.subr.bf16.mxu0 0
      %391 = vmatpush2.bf16.msra.mxu0 0
      %392 = vmatprep.mubr.bf16.mxu0 0
      %393 = vmatmul.mubr.bf16.gmra.mxu0 %v355
      %v394 = vpop.f32.mrf.mxu0
      %v395 = vadd.f32 0.0, %v394
      %v396 = vpop.f32.mrf.mxu0
      %v397 = vpop.f32.mrf.mxu0
      %v398 = vadd.f32 0.0, %v397
      %v399 = vpop.f32.mrf.mxu0
      %400 = vdwg.mxu0
      %v401 = vadd.f32 %v334, %v395
      %v402 = vadd.f32 %v337, %v398
      %s403 = scalar_lea.vmem %s199, 24
      %v404 = vld [vmem:[%s403] sm:$0xf]
      %v405 = vld [vmem:[%s403 + $0x4] sm:$0xf]
      %v408 = vunpack.c.l.b16 %v404
      %v409 = vunpack.c.l.b16 %v405
      %v410 = vpack.c.b16 %v409, %v408
      %411 = vrot.lane.b32.xlu0 %v231, 125
      %v412 = vpop.permute.xlu0 %411
      %413 = vrot.lane.b32.xlu0 %v232, 125
      %v414 = vpop.permute.xlu0 %413
      %vm415 = vcmask 1022976
      %v416 = vsel %vm415, %v412, %v414
      %v418 = vsel %vm239, %v410, 0
      %v421 = vsel %vm243, %v416, 0
      %423 = vmatprep.subr.bf16.mxu0 0
      %424 = vmatpush1.bf16.msra.mxu0 0
      %425 = vmatprep.subr.bf16.mxu0 0
      %426 = vmatpush1.bf16.msra.mxu0 0
      %427 = vmatprep.subr.bf16.mxu0 0
      %428 = vmatpush1.bf16.msra.mxu0 0
      %429 = vmatprep.subr.bf16.mxu0 0
      %430 = vmatpush1.bf16.msra.mxu0 0
      %431 = vmatprep.subr.bf16.mxu0 0
      %432 = vmatpush1.bf16.msra.mxu0 0
      %433 = vmatprep.subr.bf16.mxu0 0
      %434 = vmatpush1.bf16.msra.mxu0 0
      %435 = vmatprep.subr.bf16.mxu0 0
      %436 = vmatpush1.bf16.msra.mxu0 0
      %437 = vmatprep.subr.bf16.mxu0 0
      %438 = vmatpush1.bf16.msra.mxu0 %v421
      %439 = vmatprep.subr.bf16.mxu0 0
      %440 = vmatpush2.bf16.msra.mxu0 0
      %441 = vmatprep.subr.bf16.mxu0 0
      %442 = vmatpush2.bf16.msra.mxu0 0
      %443 = vmatprep.subr.bf16.mxu0 0
      %444 = vmatpush2.bf16.msra.mxu0 0
      %445 = vmatprep.subr.bf16.mxu0 0
      %446 = vmatpush2.bf16.msra.mxu0 0
      %447 = vmatprep.subr.bf16.mxu0 0
      %448 = vmatpush2.bf16.msra.mxu0 0
      %449 = vmatprep.subr.bf16.mxu0 0
      %450 = vmatpush2.bf16.msra.mxu0 0
      %451 = vmatprep.subr.bf16.mxu0 0
      %452 = vmatpush2.bf16.msra.mxu0 0
      %453 = vmatprep.subr.bf16.mxu0 0
      %454 = vmatpush2.bf16.msra.mxu0 0
      %455 = vmatprep.mubr.bf16.mxu0 0
      %456 = vmatmul.mubr.bf16.gmra.mxu0 %v418
      %v457 = vpop.f32.mrf.mxu0
      %v458 = vadd.f32 0.0, %v457
      %v459 = vpop.f32.mrf.mxu0
      %v460 = vpop.f32.mrf.mxu0
      %v461 = vadd.f32 0.0, %v460
      %v462 = vpop.f32.mrf.mxu0
      %463 = vdwg.mxu0
      %v464 = vadd.f32 %v401, %v458
      %v465 = vadd.f32 %v402, %v461
      %s466 = scalar_lea.vmem %s199, 32
      %v467 = vld [vmem:[%s466] sm:$0xf]
      %v468 = vld [vmem:[%s466 + $0x4] sm:$0xf]
      %v471 = vunpack.c.l.b16 %v467
      %v472 = vunpack.c.l.b16 %v468
      %v473 = vpack.c.b16 %v472, %v471
      %474 = vrot.lane.b32.xlu0 %v231, 119
      %v475 = vpop.permute.xlu0 %474
      %476 = vrot.lane.b32.xlu0 %v232, 119
      %v477 = vpop.permute.xlu0 %476
      %vm478 = vcmask 973824
      %v479 = vsel %vm478, %v475, %v477
      %v481 = vsel %vm239, %v473, 0
      %v484 = vsel %vm243, %v479, 0
      %486 = vmatprep.subr.bf16.mxu0 0
      %487 = vmatpush1.bf16.msra.mxu0 0
      %488 = vmatprep.subr.bf16.mxu0 0
      %489 = vmatpush1.bf16.msra.mxu0 0
      %490 = vmatprep.subr.bf16.mxu0 0
      %491 = vmatpush1.bf16.msra.mxu0 0
      %492 = vmatprep.subr.bf16.mxu0 0
      %493 = vmatpush1.bf16.msra.mxu0 0
      %494 = vmatprep.subr.bf16.mxu0 0
      %495 = vmatpush1.bf16.msra.mxu0 0
      %496 = vmatprep.subr.bf16.mxu0 0
      %497 = vmatpush1.bf16.msra.mxu0 0
      %498 = vmatprep.subr.bf16.mxu0 0
      %499 = vmatpush1.bf16.msra.mxu0 0
      %500 = vmatprep.subr.bf16.mxu0 0
      %501 = vmatpush1.bf16.msra.mxu0 %v484
      %502 = vmatprep.subr.bf16.mxu0 0
      %503 = vmatpush2.bf16.msra.mxu0 0
      %504 = vmatprep.subr.bf16.mxu0 0
      %505 = vmatpush2.bf16.msra.mxu0 0
      %506 = vmatprep.subr.bf16.mxu0 0
      %507 = vmatpush2.bf16.msra.mxu0 0
      %508 = vmatprep.subr.bf16.mxu0 0
      %509 = vmatpush2.bf16.msra.mxu0 0
      %510 = vmatprep.subr.bf16.mxu0 0
      %511 = vmatpush2.bf16.msra.mxu0 0
      %512 = vmatprep.subr.bf16.mxu0 0
      %513 = vmatpush2.bf16.msra.mxu0 0
      %514 = vmatprep.subr.bf16.mxu0 0
      %515 = vmatpush2.bf16.msra.mxu0 0
      %516 = vmatprep.subr.bf16.mxu0 0
      %517 = vmatpush2.bf16.msra.mxu0 0
      %518 = vmatprep.mubr.bf16.mxu0 0
      %519 = vmatmul.mubr.bf16.gmra.mxu0 %v481
      %v520 = vpop.f32.mrf.mxu0
      %v521 = vadd.f32 0.0, %v520
      %v522 = vpop.f32.mrf.mxu0
      %v523 = vpop.f32.mrf.mxu0
      %v524 = vadd.f32 0.0, %v523
      %v525 = vpop.f32.mrf.mxu0
      %526 = vdwg.mxu0
      %v527 = vadd.f32 %v464, %v521
      %v528 = vadd.f32 %v465, %v524
      %s529 = scalar_lea.vmem %s199, 40
      %v530 = vld [vmem:[%s529] sm:$0xf]
      %v531 = vld [vmem:[%s529 + $0x4] sm:$0xf]
      %v534 = vunpack.c.l.b16 %v530
      %v535 = vunpack.c.l.b16 %v531
      %v536 = vpack.c.b16 %v535, %v534
      %537 = vrot.lane.b32.xlu0 %v231, 118
      %v538 = vpop.permute.xlu0 %537
      %539 = vrot.lane.b32.xlu0 %v232, 118
      %v540 = vpop.permute.xlu0 %539
      %vm541 = vcmask 965632
      %v542 = vsel %vm541, %v538, %v540
      %v544 = vsel %vm239, %v536, 0
      %v547 = vsel %vm243, %v542, 0
      %549 = vmatprep.subr.bf16.mxu0 0
      %550 = vmatpush1.bf16.msra.mxu0 0
      %551 = vmatprep.subr.bf16.mxu0 0
      %552 = vmatpush1.bf16.msra.mxu0 0
      %553 = vmatprep.subr.bf16.mxu0 0
      %554 = vmatpush1.bf16.msra.mxu0 0
      %555 = vmatprep.subr.bf16.mxu0 0
      %556 = vmatpush1.bf16.msra.mxu0 0
      %557 = vmatprep.subr.bf16.mxu0 0
      %558 = vmatpush1.bf16.msra.mxu0 0
      %559 = vmatprep.subr.bf16.mxu0 0
      %560 = vmatpush1.bf16.msra.mxu0 0
      %561 = vmatprep.subr.bf16.mxu0 0
      %562 = vmatpush1.bf16.msra.mxu0 0
      %563 = vmatprep.subr.bf16.mxu0 0
      %564 = vmatpush1.bf16.msra.mxu0 %v547
      %565 = vmatprep.subr.bf16.mxu0 0
      %566 = vmatpush2.bf16.msra.mxu0 0
      %567 = vmatprep.subr.bf16.mxu0 0
      %568 = vmatpush2.bf16.msra.mxu0 0
      %569 = vmatprep.subr.bf16.mxu0 0
      %570 = vmatpush2.bf16.msra.mxu0 0
      %571 = vmatprep.subr.bf16.mxu0 0
      %572 = vmatpush2.bf16.msra.mxu0 0
      %573 = vmatprep.subr.bf16.mxu0 0
      %574 = vmatpush2.bf16.msra.mxu0 0
      %575 = vmatprep.subr.bf16.mxu0 0
      %576 = vmatpush2.bf16.msra.mxu0 0
      %577 = vmatprep.subr.bf16.mxu0 0
      %578 = vmatpush2.bf16.msra.mxu0 0
      %579 = vmatprep.subr.bf16.mxu0 0
      %580 = vmatpush2.bf16.msra.mxu0 0
      %581 = vmatprep.mubr.bf16.mxu0 0
      %582 = vmatmul.mubr.bf16.gmra.mxu0 %v544
      %v583 = vpop.f32.mrf.mxu0
      %v584 = vadd.f32 0.0, %v583
      %v585 = vpop.f32.mrf.mxu0
      %v586 = vpop.f32.mrf.mxu0
      %v587 = vadd.f32 0.0, %v586
      %v588 = vpop.f32.mrf.mxu0
      %589 = vdwg.mxu0
      %v590 = vadd.f32 %v527, %v584
      %v591 = vadd.f32 %v528, %v587
      %s592 = scalar_lea.vmem %s199, 48
      %v593 = vld [vmem:[%s592] sm:$0xf]
      %v594 = vld [vmem:[%s592 + $0x4] sm:$0xf]
      %v597 = vunpack.c.l.b16 %v593
      %v598 = vunpack.c.l.b16 %v594
      %v599 = vpack.c.b16 %v598, %v597
      %600 = vrot.lane.b32.xlu0 %v231, 117
      %v601 = vpop.permute.xlu0 %600
      %602 = vrot.lane.b32.xlu0 %v232, 117
      %v603 = vpop.permute.xlu0 %602
      %vm604 = vcmask 957440
      %v605 = vsel %vm604, %v601, %v603
      %v607 = vsel %vm239, %v599, 0
      %v610 = vsel %vm243, %v605, 0
      %612 = vmatprep.subr.bf16.mxu0 0
      %613 = vmatpush1.bf16.msra.mxu0 0
      %614 = vmatprep.subr.bf16.mxu0 0
      %615 = vmatpush1.bf16.msra.mxu0 0
      %616 = vmatprep.subr.bf16.mxu0 0
      %617 = vmatpush1.bf16.msra.mxu0 0
      %618 = vmatprep.subr.bf16.mxu0 0
      %619 = vmatpush1.bf16.msra.mxu0 0
      %620 = vmatprep.subr.bf16.mxu0 0
      %621 = vmatpush1.bf16.msra.mxu0 0
      %622 = vmatprep.subr.bf16.mxu0 0
      %623 = vmatpush1.bf16.msra.mxu0 0
      %624 = vmatprep.subr.bf16.mxu0 0
      %625 = vmatpush1.bf16.msra.mxu0 0
      %626 = vmatprep.subr.bf16.mxu0 0
      %627 = vmatpush1.bf16.msra.mxu0 %v610
      %628 = vmatprep.subr.bf16.mxu0 0
      %629 = vmatpush2.bf16.msra.mxu0 0
      %630 = vmatprep.subr.bf16.mxu0 0
      %631 = vmatpush2.bf16.msra.mxu0 0
      %632 = vmatprep.subr.bf16.mxu0 0
      %633 = vmatpush2.bf16.msra.mxu0 0
      %634 = vmatprep.subr.bf16.mxu0 0
      %635 = vmatpush2.bf16.msra.mxu0 0
      %636 = vmatprep.subr.bf16.mxu0 0
      %637 = vmatpush2.bf16.msra.mxu0 0
      %638 = vmatprep.subr.bf16.mxu0 0
      %639 = vmatpush2.bf16.msra.mxu0 0
      %640 = vmatprep.subr.bf16.mxu0 0
      %641 = vmatpush2.bf16.msra.mxu0 0
      %642 = vmatprep.subr.bf16.mxu0 0
      %643 = vmatpush2.bf16.msra.mxu0 0
      %644 = vmatprep.mubr.bf16.mxu0 0
      %645 = vmatmul.mubr.bf16.gmra.mxu0 %v607
      %v646 = vpop.f32.mrf.mxu0
      %v647 = vadd.f32 0.0, %v646
      %v648 = vpop.f32.mrf.mxu0
      %v649 = vpop.f32.mrf.mxu0
      %v650 = vadd.f32 0.0, %v649
      %v651 = vpop.f32.mrf.mxu0
      %652 = vdwg.mxu0
      %v653 = vadd.f32 %v590, %v647
      %v654 = vadd.f32 %v591, %v650
      %s655 = scalar_lea.vmem %s199, 56
      %v656 = vld [vmem:[%s655] sm:$0xf]
      %v657 = vld [vmem:[%s655 + $0x4] sm:$0xf]
      %v660 = vunpack.c.l.b16 %v656
      %v661 = vunpack.c.l.b16 %v657
      %v662 = vpack.c.b16 %v661, %v660
      %663 = vrot.lane.b32.xlu0 %v231, 116
      %v664 = vpop.permute.xlu0 %663
      %665 = vrot.lane.b32.xlu0 %v232, 116
      %v666 = vpop.permute.xlu0 %665
      %vm667 = vcmask 949248
      %v668 = vsel %vm667, %v664, %v666
      %v670 = vsel %vm239, %v662, 0
      %v673 = vsel %vm243, %v668, 0
      %675 = vmatprep.subr.bf16.mxu0 0
      %676 = vmatpush1.bf16.msra.mxu0 0
      %677 = vmatprep.subr.bf16.mxu0 0
      %678 = vmatpush1.bf16.msra.mxu0 0
      %679 = vmatprep.subr.bf16.mxu0 0
      %680 = vmatpush1.bf16.msra.mxu0 0
      %681 = vmatprep.subr.bf16.mxu0 0
      %682 = vmatpush1.bf16.msra.mxu0 0
      %683 = vmatprep.subr.bf16.mxu0 0
      %684 = vmatpush1.bf16.msra.mxu0 0
      %685 = vmatprep.subr.bf16.mxu0 0
      %686 = vmatpush1.bf16.msra.mxu0 0
      %687 = vmatprep.subr.bf16.mxu0 0
      %688 = vmatpush1.bf16.msra.mxu0 0
      %689 = vmatprep.subr.bf16.mxu0 0
      %690 = vmatpush1.bf16.msra.mxu0 %v673
      %691 = vmatprep.subr.bf16.mxu0 0
      %692 = vmatpush2.bf16.msra.mxu0 0
      %693 = vmatprep.subr.bf16.mxu0 0
      %694 = vmatpush2.bf16.msra.mxu0 0
      %695 = vmatprep.subr.bf16.mxu0 0
      %696 = vmatpush2.bf16.msra.mxu0 0
      %697 = vmatprep.subr.bf16.mxu0 0
      %698 = vmatpush2.bf16.msra.mxu0 0
      %699 = vmatprep.subr.bf16.mxu0 0
      %700 = vmatpush2.bf16.msra.mxu0 0
      %701 = vmatprep.subr.bf16.mxu0 0
      %702 = vmatpush2.bf16.msra.mxu0 0
      %703 = vmatprep.subr.bf16.mxu0 0
      %704 = vmatpush2.bf16.msra.mxu0 0
      %705 = vmatprep.subr.bf16.mxu0 0
      %706 = vmatpush2.bf16.msra.mxu0 0
      %707 = vmatprep.mubr.bf16.mxu0 0
      %708 = vmatmul.mubr.bf16.gmra.mxu0 %v670
      %v709 = vpop.f32.mrf.mxu0
      %v710 = vadd.f32 0.0, %v709
      %v711 = vpop.f32.mrf.mxu0
      %v712 = vpop.f32.mrf.mxu0
      %v713 = vadd.f32 0.0, %v712
      %v714 = vpop.f32.mrf.mxu0
      %715 = vdwg.mxu0
      %v716 = vadd.f32 %v653, %v710
      %v717 = vadd.f32 %v654, %v713
      %s718 = scalar_lea.vmem %s199, 64
      %v719 = vld [vmem:[%s718] sm:$0xf]
      %v720 = vld [vmem:[%s718 + $0x4] sm:$0xf]
      %v723 = vunpack.c.l.b16 %v719
      %v724 = vunpack.c.l.b16 %v720
      %v725 = vpack.c.b16 %v724, %v723
      %726 = vrot.lane.b32.xlu0 %v231, 110
      %v727 = vpop.permute.xlu0 %726
      %728 = vrot.lane.b32.xlu0 %v232, 110
      %v729 = vpop.permute.xlu0 %728
      %vm730 = vcmask 900096
      %v731 = vsel %vm730, %v727, %v729
      %v733 = vsel %vm239, %v725, 0
      %v736 = vsel %vm243, %v731, 0
      %738 = vmatprep.subr.bf16.mxu0 0
      %739 = vmatpush1.bf16.msra.mxu0 0
      %740 = vmatprep.subr.bf16.mxu0 0
      %741 = vmatpush1.bf16.msra.mxu0 0
      %742 = vmatprep.subr.bf16.mxu0 0
      %743 = vmatpush1.bf16.msra.mxu0 0
      %744 = vmatprep.subr.bf16.mxu0 0
      %745 = vmatpush1.bf16.msra.mxu0 0
      %746 = vmatprep.subr.bf16.mxu0 0
      %747 = vmatpush1.bf16.msra.mxu0 0
      %748 = vmatprep.subr.bf16.mxu0 0
      %749 = vmatpush1.bf16.msra.mxu0 0
      %750 = vmatprep.subr.bf16.mxu0 0
      %751 = vmatpush1.bf16.msra.mxu0 0
      %752 = vmatprep.subr.bf16.mxu0 0
      %753 = vmatpush1.bf16.msra.mxu0 %v736
      %754 = vmatprep.subr.bf16.mxu0 0
      %755 = vmatpush2.bf16.msra.mxu0 0
      %756 = vmatprep.subr.bf16.mxu0 0
      %757 = vmatpush2.bf16.msra.mxu0 0
      %758 = vmatprep.subr.bf16.mxu0 0
      %759 = vmatpush2.bf16.msra.mxu0 0
      %760 = vmatprep.subr.bf16.mxu0 0
      %761 = vmatpush2.bf16.msra.mxu0 0
      %762 = vmatprep.subr.bf16.mxu0 0
      %763 = vmatpush2.bf16.msra.mxu0 0
      %764 = vmatprep.subr.bf16.mxu0 0
      %765 = vmatpush2.bf16.msra.mxu0 0
      %766 = vmatprep.subr.bf16.mxu0 0
      %767 = vmatpush2.bf16.msra.mxu0 0
      %768 = vmatprep.subr.bf16.mxu0 0
      %769 = vmatpush2.bf16.msra.mxu0 0
      %770 = vmatprep.mubr.bf16.mxu0 0
      %771 = vmatmul.mubr.bf16.gmra.mxu0 %v733
      %v772 = vpop.f32.mrf.mxu0
      %v773 = vadd.f32 0.0, %v772
      %v774 = vpop.f32.mrf.mxu0
      %v775 = vpop.f32.mrf.mxu0
      %v776 = vadd.f32 0.0, %v775
      %v777 = vpop.f32.mrf.mxu0
      %778 = vdwg.mxu0
      %v779 = vadd.f32 %v716, %v773
      %v780 = vadd.f32 %v717, %v776
      %s781 = scalar_lea.vmem %s199, 72
      %v782 = vld [vmem:[%s781] sm:$0xf]
      %v783 = vld [vmem:[%s781 + $0x4] sm:$0xf]
      %v786 = vunpack.c.l.b16 %v782
      %v787 = vunpack.c.l.b16 %v783
      %v788 = vpack.c.b16 %v787, %v786
      %789 = vrot.lane.b32.xlu0 %v231, 109
      %v790 = vpop.permute.xlu0 %789
      %791 = vrot.lane.b32.xlu0 %v232, 109
      %v792 = vpop.permute.xlu0 %791
      %vm793 = vcmask 891904
      %v794 = vsel %vm793, %v790, %v792
      %v796 = vsel %vm239, %v788, 0
      %v799 = vsel %vm243, %v794, 0
      %801 = vmatprep.subr.bf16.mxu0 0
      %802 = vmatpush1.bf16.msra.mxu0 0
      %803 = vmatprep.subr.bf16.mxu0 0
      %804 = vmatpush1.bf16.msra.mxu0 0
      %805 = vmatprep.subr.bf16.mxu0 0
      %806 = vmatpush1.bf16.msra.mxu0 0
      %807 = vmatprep.subr.bf16.mxu0 0
      %808 = vmatpush1.bf16.msra.mxu0 0
      %809 = vmatprep.subr.bf16.mxu0 0
      %810 = vmatpush1.bf16.msra.mxu0 0
      %811 = vmatprep.subr.bf16.mxu0 0
      %812 = vmatpush1.bf16.msra.mxu0 0
      %813 = vmatprep.subr.bf16.mxu0 0
      %814 = vmatpush1.bf16.msra.mxu0 0
      %815 = vmatprep.subr.bf16.mxu0 0
      %816 = vmatpush1.bf16.msra.mxu0 %v799
      %817 = vmatprep.subr.bf16.mxu0 0
      %818 = vmatpush2.bf16.msra.mxu0 0
      %819 = vmatprep.subr.bf16.mxu0 0
      %820 = vmatpush2.bf16.msra.mxu0 0
      %821 = vmatprep.subr.bf16.mxu0 0
      %822 = vmatpush2.bf16.msra.mxu0 0
      %823 = vmatprep.subr.bf16.mxu0 0
      %824 = vmatpush2.bf16.msra.mxu0 0
      %825 = vmatprep.subr.bf16.mxu0 0
      %826 = vmatpush2.bf16.msra.mxu0 0
      %827 = vmatprep.subr.bf16.mxu0 0
      %828 = vmatpush2.bf16.msra.mxu0 0
      %829 = vmatprep.subr.bf16.mxu0 0
      %830 = vmatpush2.bf16.msra.mxu0 0
      %831 = vmatprep.subr.bf16.mxu0 0
      %832 = vmatpush2.bf16.msra.mxu0 0
      %833 = vmatprep.mubr.bf16.mxu0 0
      %834 = vmatmul.mubr.bf16.gmra.mxu0 %v796
      %v835 = vpop.f32.mrf.mxu0
      %v836 = vadd.f32 0.0, %v835
      %v837 = vpop.f32.mrf.mxu0
      %v838 = vpop.f32.mrf.mxu0
      %v839 = vadd.f32 0.0, %v838
      %v840 = vpop.f32.mrf.mxu0
      %841 = vdwg.mxu0
      %v842 = vadd.f32 %v779, %v836
      %v843 = vadd.f32 %v780, %v839
      %s844 = scalar_lea.vmem %s199, 80
      %v845 = vld [vmem:[%s844] sm:$0xf]
      %v846 = vld [vmem:[%s844 + $0x4] sm:$0xf]
      %v849 = vunpack.c.l.b16 %v845
      %v850 = vunpack.c.l.b16 %v846
      %v851 = vpack.c.b16 %v850, %v849
      %852 = vrot.lane.b32.xlu0 %v231, 108
      %v853 = vpop.permute.xlu0 %852
      %854 = vrot.lane.b32.xlu0 %v232, 108
      %v855 = vpop.permute.xlu0 %854
      %vm856 = vcmask 883712
      %v857 = vsel %vm856, %v853, %v855
      %v859 = vsel %vm239, %v851, 0
      %v862 = vsel %vm243, %v857, 0
      %864 = vmatprep.subr.bf16.mxu0 0
      %865 = vmatpush1.bf16.msra.mxu0 0
      %866 = vmatprep.subr.bf16.mxu0 0
      %867 = vmatpush1.bf16.msra.mxu0 0
      %868 = vmatprep.subr.bf16.mxu0 0
      %869 = vmatpush1.bf16.msra.mxu0 0
      %870 = vmatprep.subr.bf16.mxu0 0
      %871 = vmatpush1.bf16.msra.mxu0 0
      %872 = vmatprep.subr.bf16.mxu0 0
      %873 = vmatpush1.bf16.msra.mxu0 0
      %874 = vmatprep.subr.bf16.mxu0 0
      %875 = vmatpush1.bf16.msra.mxu0 0
      %876 = vmatprep.subr.bf16.mxu0 0
      %877 = vmatpush1.bf16.msra.mxu0 0
      %878 = vmatprep.subr.bf16.mxu0 0
      %879 = vmatpush1.bf16.msra.mxu0 %v862
      %880 = vmatprep.subr.bf16.mxu0 0
      %881 = vmatpush2.bf16.msra.mxu0 0
      %882 = vmatprep.subr.bf16.mxu0 0
      %883 = vmatpush2.bf16.msra.mxu0 0
      %884 = vmatprep.subr.bf16.mxu0 0
      %885 = vmatpush2.bf16.msra.mxu0 0
      %886 = vmatprep.subr.bf16.mxu0 0
      %887 = vmatpush2.bf16.msra.mxu0 0
      %888 = vmatprep.subr.bf16.mxu0 0
      %889 = vmatpush2.bf16.msra.mxu0 0
      %890 = vmatprep.subr.bf16.mxu0 0
      %891 = vmatpush2.bf16.msra.mxu0 0
      %892 = vmatprep.subr.bf16.mxu0 0
      %893 = vmatpush2.bf16.msra.mxu0 0
      %894 = vmatprep.subr.bf16.mxu0 0
      %895 = vmatpush2.bf16.msra.mxu0 0
      %896 = vmatprep.mubr.bf16.mxu0 0
      %897 = vmatmul.mubr.bf16.gmra.mxu0 %v859
      %v898 = vpop.f32.mrf.mxu0
      %v899 = vadd.f32 0.0, %v898
      %v900 = vpop.f32.mrf.mxu0
      %v901 = vpop.f32.mrf.mxu0
      %v902 = vadd.f32 0.0, %v901
      %v903 = vpop.f32.mrf.mxu0
      %904 = vdwg.mxu0
      %v905 = vadd.f32 %v842, %v899
      %v906 = vadd.f32 %v843, %v902
      %s907 = scalar_lea.vmem %s199, 88
      %v908 = vld [vmem:[%s907] sm:$0xf]
      %v909 = vld [vmem:[%s907 + $0x4] sm:$0xf]
      %v912 = vunpack.c.l.b16 %v908
      %v913 = vunpack.c.l.b16 %v909
      %v914 = vpack.c.b16 %v913, %v912
      %915 = vrot.lane.b32.xlu0 %v231, 107
      %v916 = vpop.permute.xlu0 %915
      %917 = vrot.lane.b32.xlu0 %v232, 107
      %v918 = vpop.permute.xlu0 %917
      %vm919 = vcmask 875520
      %v920 = vsel %vm919, %v916, %v918
      %v922 = vsel %vm239, %v914, 0
      %v925 = vsel %vm243, %v920, 0
      %927 = vmatprep.subr.bf16.mxu0 0
      %928 = vmatpush1.bf16.msra.mxu0 0
      %929 = vmatprep.subr.bf16.mxu0 0
      %930 = vmatpush1.bf16.msra.mxu0 0
      %931 = vmatprep.subr.bf16.mxu0 0
      %932 = vmatpush1.bf16.msra.mxu0 0
      %933 = vmatprep.subr.bf16.mxu0 0
      %934 = vmatpush1.bf16.msra.mxu0 0
      %935 = vmatprep.subr.bf16.mxu0 0
      %936 = vmatpush1.bf16.msra.mxu0 0
      %937 = vmatprep.subr.bf16.mxu0 0
      %938 = vmatpush1.bf16.msra.mxu0 0
      %939 = vmatprep.subr.bf16.mxu0 0
      %940 = vmatpush1.bf16.msra.mxu0 0
      %941 = vmatprep.subr.bf16.mxu0 0
      %942 = vmatpush1.bf16.msra.mxu0 %v925
      %943 = vmatprep.subr.bf16.mxu0 0
      %944 = vmatpush2.bf16.msra.mxu0 0
      %945 = vmatprep.subr.bf16.mxu0 0
      %946 = vmatpush2.bf16.msra.mxu0 0
      %947 = vmatprep.subr.bf16.mxu0 0
      %948 = vmatpush2.bf16.msra.mxu0 0
      %949 = vmatprep.subr.bf16.mxu0 0
      %950 = vmatpush2.bf16.msra.mxu0 0
      %951 = vmatprep.subr.bf16.mxu0 0
      %952 = vmatpush2.bf16.msra.mxu0 0
      %953 = vmatprep.subr.bf16.mxu0 0
      %954 = vmatpush2.bf16.msra.mxu0 0
      %955 = vmatprep.subr.bf16.mxu0 0
      %956 = vmatpush2.bf16.msra.mxu0 0
      %957 = vmatprep.subr.bf16.mxu0 0
      %958 = vmatpush2.bf16.msra.mxu0 0
      %959 = vmatprep.mubr.bf16.mxu0 0
      %960 = vmatmul.mubr.bf16.gmra.mxu0 %v922
      %v961 = vpop.f32.mrf.mxu0
      %v962 = vadd.f32 0.0, %v961
      %v963 = vpop.f32.mrf.mxu0
      %v964 = vpop.f32.mrf.mxu0
      %v965 = vadd.f32 0.0, %v964
      %v966 = vpop.f32.mrf.mxu0
      %967 = vdwg.mxu0
      %v968 = vadd.f32 %v905, %v962
      %v969 = vadd.f32 %v906, %v965
      %s970 = scalar_lea.vmem %s199, 96
      %v971 = vld [vmem:[%s970] sm:$0xf]
      %v972 = vld [vmem:[%s970 + $0x4] sm:$0xf]
      %v975 = vunpack.c.l.b16 %v971
      %v976 = vunpack.c.l.b16 %v972
      %v977 = vpack.c.b16 %v976, %v975
      %978 = vrot.lane.b32.xlu0 %v231, 101
      %v979 = vpop.permute.xlu0 %978
      %980 = vrot.lane.b32.xlu0 %v232, 101
      %v981 = vpop.permute.xlu0 %980
      %vm982 = vcmask 826368
      %v983 = vsel %vm982, %v979, %v981
      %v985 = vsel %vm239, %v977, 0
      %v988 = vsel %vm243, %v983, 0
      %990 = vmatprep.subr.bf16.mxu0 0
      %991 = vmatpush1.bf16.msra.mxu0 0
      %992 = vmatprep.subr.bf16.mxu0 0
      %993 = vmatpush1.bf16.msra.mxu0 0
      %994 = vmatprep.subr.bf16.mxu0 0
      %995 = vmatpush1.bf16.msra.mxu0 0
      %996 = vmatprep.subr.bf16.mxu0 0
      %997 = vmatpush1.bf16.msra.mxu0 0
      %998 = vmatprep.subr.bf16.mxu0 0
      %999 = vmatpush1.bf16.msra.mxu0 0
      %1000 = vmatprep.subr.bf16.mxu0 0
      %1001 = vmatpush1.bf16.msra.mxu0 0
      %1002 = vmatprep.subr.bf16.mxu0 0
      %1003 = vmatpush1.bf16.msra.mxu0 0
      %1004 = vmatprep.subr.bf16.mxu0 0
      %1005 = vmatpush1.bf16.msra.mxu0 %v988
      %1006 = vmatprep.subr.bf16.mxu0 0
      %1007 = vmatpush2.bf16.msra.mxu0 0
      %1008 = vmatprep.subr.bf16.mxu0 0
      %1009 = vmatpush2.bf16.msra.mxu0 0
      %1010 = vmatprep.subr.bf16.mxu0 0
      %1011 = vmatpush2.bf16.msra.mxu0 0
      %1012 = vmatprep.subr.bf16.mxu0 0
      %1013 = vmatpush2.bf16.msra.mxu0 0
      %1014 = vmatprep.subr.bf16.mxu0 0
      %1015 = vmatpush2.bf16.msra.mxu0 0
      %1016 = vmatprep.subr.bf16.mxu0 0
      %1017 = vmatpush2.bf16.msra.mxu0 0
      %1018 = vmatprep.subr.bf16.mxu0 0
      %1019 = vmatpush2.bf16.msra.mxu0 0
      %1020 = vmatprep.subr.bf16.mxu0 0
      %1021 = vmatpush2.bf16.msra.mxu0 0
      %1022 = vmatprep.mubr.bf16.mxu0 0
      %1023 = vmatmul.mubr.bf16.gmra.mxu0 %v985
      %v1024 = vpop.f32.mrf.mxu0
      %v1025 = vadd.f32 0.0, %v1024
      %v1026 = vpop.f32.mrf.mxu0
      %v1027 = vpop.f32.mrf.mxu0
      %v1028 = vadd.f32 0.0, %v1027
      %v1029 = vpop.f32.mrf.mxu0
      %1030 = vdwg.mxu0
      %v1031 = vadd.f32 %v968, %v1025
      %v1032 = vadd.f32 %v969, %v1028
      %s1033 = scalar_lea.vmem %s199, 104
      %v1034 = vld [vmem:[%s1033] sm:$0xf]
      %v1035 = vld [vmem:[%s1033 + $0x4] sm:$0xf]
      %v1038 = vunpack.c.l.b16 %v1034
      %v1039 = vunpack.c.l.b16 %v1035
      %v1040 = vpack.c.b16 %v1039, %v1038
      %1041 = vrot.lane.b32.xlu0 %v231, 100
      %v1042 = vpop.permute.xlu0 %1041
      %1043 = vrot.lane.b32.xlu0 %v232, 100
      %v1044 = vpop.permute.xlu0 %1043
      %vm1045 = vcmask 818176
      %v1046 = vsel %vm1045, %v1042, %v1044
      %v1048 = vsel %vm239, %v1040, 0
      %v1051 = vsel %vm243, %v1046, 0
      %1053 = vmatprep.subr.bf16.mxu0 0
      %1054 = vmatpush1.bf16.msra.mxu0 0
      %1055 = vmatprep.subr.bf16.mxu0 0
      %1056 = vmatpush1.bf16.msra.mxu0 0
      %1057 = vmatprep.subr.bf16.mxu0 0
      %1058 = vmatpush1.bf16.msra.mxu0 0
      %1059 = vmatprep.subr.bf16.mxu0 0
      %1060 = vmatpush1.bf16.msra.mxu0 0
      %1061 = vmatprep.subr.bf16.mxu0 0
      %1062 = vmatpush1.bf16.msra.mxu0 0
      %1063 = vmatprep.subr.bf16.mxu0 0
      %1064 = vmatpush1.bf16.msra.mxu0 0
      %1065 = vmatprep.subr.bf16.mxu0 0
      %1066 = vmatpush1.bf16.msra.mxu0 0
      %1067 = vmatprep.subr.bf16.mxu0 0
      %1068 = vmatpush1.bf16.msra.mxu0 %v1051
      %1069 = vmatprep.subr.bf16.mxu0 0
      %1070 = vmatpush2.bf16.msra.mxu0 0
      %1071 = vmatprep.subr.bf16.mxu0 0
      %1072 = vmatpush2.bf16.msra.mxu0 0
      %1073 = vmatprep.subr.bf16.mxu0 0
      %1074 = vmatpush2.bf16.msra.mxu0 0
      %1075 = vmatprep.subr.bf16.mxu0 0
      %1076 = vmatpush2.bf16.msra.mxu0 0
      %1077 = vmatprep.subr.bf16.mxu0 0
      %1078 = vmatpush2.bf16.msra.mxu0 0
      %1079 = vmatprep.subr.bf16.mxu0 0
      %1080 = vmatpush2.bf16.msra.mxu0 0
      %1081 = vmatprep.subr.bf16.mxu0 0
      %1082 = vmatpush2.bf16.msra.mxu0 0
      %1083 = vmatprep.subr.bf16.mxu0 0
      %1084 = vmatpush2.bf16.msra.mxu0 0
      %1085 = vmatprep.mubr.bf16.mxu0 0
      %1086 = vmatmul.mubr.bf16.gmra.mxu0 %v1048
      %v1087 = vpop.f32.mrf.mxu0
      %v1088 = vadd.f32 0.0, %v1087
      %v1089 = vpop.f32.mrf.mxu0
      %v1090 = vpop.f32.mrf.mxu0
      %v1091 = vadd.f32 0.0, %v1090
      %v1092 = vpop.f32.mrf.mxu0
      %1093 = vdwg.mxu0
      %v1094 = vadd.f32 %v1031, %v1088
      %v1095 = vadd.f32 %v1032, %v1091
      %s1096 = scalar_lea.vmem %s199, 112
      %v1097 = vld [vmem:[%s1096] sm:$0xf]
      %v1098 = vld [vmem:[%s1096 + $0x4] sm:$0xf]
      %v1101 = vunpack.c.l.b16 %v1097
      %v1102 = vunpack.c.l.b16 %v1098
      %v1103 = vpack.c.b16 %v1102, %v1101
      %1104 = vrot.lane.b32.xlu0 %v231, 99
      %v1105 = vpop.permute.xlu0 %1104
      %1106 = vrot.lane.b32.xlu0 %v232, 99
      %v1107 = vpop.permute.xlu0 %1106
      %vm1108 = vcmask 809984
      %v1109 = vsel %vm1108, %v1105, %v1107
      %v1111 = vsel %vm239, %v1103, 0
      %v1114 = vsel %vm243, %v1109, 0
      %1116 = vmatprep.subr.bf16.mxu0 0
      %1117 = vmatpush1.bf16.msra.mxu0 0
      %1118 = vmatprep.subr.bf16.mxu0 0
      %1119 = vmatpush1.bf16.msra.mxu0 0
      %1120 = vmatprep.subr.bf16.mxu0 0
      %1121 = vmatpush1.bf16.msra.mxu0 0
      %1122 = vmatprep.subr.bf16.mxu0 0
      %1123 = vmatpush1.bf16.msra.mxu0 0
      %1124 = vmatprep.subr.bf16.mxu0 0
      %1125 = vmatpush1.bf16.msra.mxu0 0
      %1126 = vmatprep.subr.bf16.mxu0 0
      %1127 = vmatpush1.bf16.msra.mxu0 0
      %1128 = vmatprep.subr.bf16.mxu0 0
      %1129 = vmatpush1.bf16.msra.mxu0 0
      %1130 = vmatprep.subr.bf16.mxu0 0
      %1131 = vmatpush1.bf16.msra.mxu0 %v1114
      %1132 = vmatprep.subr.bf16.mxu0 0
      %1133 = vmatpush2.bf16.msra.mxu0 0
      %1134 = vmatprep.subr.bf16.mxu0 0
      %1135 = vmatpush2.bf16.msra.mxu0 0
      %1136 = vmatprep.subr.bf16.mxu0 0
      %1137 = vmatpush2.bf16.msra.mxu0 0
      %1138 = vmatprep.subr.bf16.mxu0 0
      %1139 = vmatpush2.bf16.msra.mxu0 0
      %1140 = vmatprep.subr.bf16.mxu0 0
      %1141 = vmatpush2.bf16.msra.mxu0 0
      %1142 = vmatprep.subr.bf16.mxu0 0
      %1143 = vmatpush2.bf16.msra.mxu0 0
      %1144 = vmatprep.subr.bf16.mxu0 0
      %1145 = vmatpush2.bf16.msra.mxu0 0
      %1146 = vmatprep.subr.bf16.mxu0 0
      %1147 = vmatpush2.bf16.msra.mxu0 0
      %1148 = vmatprep.mubr.bf16.mxu0 0
      %1149 = vmatmul.mubr.bf16.gmra.mxu0 %v1111
      %v1150 = vpop.f32.mrf.mxu0
      %v1151 = vadd.f32 0.0, %v1150
      %v1152 = vpop.f32.mrf.mxu0
      %v1153 = vpop.f32.mrf.mxu0
      %v1154 = vadd.f32 0.0, %v1153
      %v1155 = vpop.f32.mrf.mxu0
      %1156 = vdwg.mxu0
      %v1157 = vadd.f32 %v1094, %v1151
      %v1158 = vadd.f32 %v1095, %v1154
      %s1159 = scalar_lea.vmem %s199, 120
      %v1160 = vld [vmem:[%s1159] sm:$0xf]
      %v1161 = vld [vmem:[%s1159 + $0x4] sm:$0xf]
      %v1164 = vunpack.c.l.b16 %v1160
      %v1165 = vunpack.c.l.b16 %v1161
      %v1166 = vpack.c.b16 %v1165, %v1164
      %1167 = vrot.lane.b32.xlu0 %v231, 98
      %v1168 = vpop.permute.xlu0 %1167
      %1169 = vrot.lane.b32.xlu0 %v232, 98
      %v1170 = vpop.permute.xlu0 %1169
      %vm1171 = vcmask 801792
      %v1172 = vsel %vm1171, %v1168, %v1170
      %v1174 = vsel %vm239, %v1166, 0
      %v1177 = vsel %vm243, %v1172, 0
      %1179 = vmatprep.subr.bf16.mxu0 0
      %1180 = vmatpush1.bf16.msra.mxu0 0
      %1181 = vmatprep.subr.bf16.mxu0 0
      %1182 = vmatpush1.bf16.msra.mxu0 0
      %1183 = vmatprep.subr.bf16.mxu0 0
      %1184 = vmatpush1.bf16.msra.mxu0 0
      %1185 = vmatprep.subr.bf16.mxu0 0
      %1186 = vmatpush1.bf16.msra.mxu0 0
      %1187 = vmatprep.subr.bf16.mxu0 0
      %1188 = vmatpush1.bf16.msra.mxu0 0
      %1189 = vmatprep.subr.bf16.mxu0 0
      %1190 = vmatpush1.bf16.msra.mxu0 0
      %1191 = vmatprep.subr.bf16.mxu0 0
      %1192 = vmatpush1.bf16.msra.mxu0 0
      %1193 = vmatprep.subr.bf16.mxu0 0
      %1194 = vmatpush1.bf16.msra.mxu0 %v1177
      %1195 = vmatprep.subr.bf16.mxu0 0
      %1196 = vmatpush2.bf16.msra.mxu0 0
      %1197 = vmatprep.subr.bf16.mxu0 0
      %1198 = vmatpush2.bf16.msra.mxu0 0
      %1199 = vmatprep.subr.bf16.mxu0 0
      %1200 = vmatpush2.bf16.msra.mxu0 0
      %1201 = vmatprep.subr.bf16.mxu0 0
      %1202 = vmatpush2.bf16.msra.mxu0 0
      %1203 = vmatprep.subr.bf16.mxu0 0
      %1204 = vmatpush2.bf16.msra.mxu0 0
      %1205 = vmatprep.subr.bf16.mxu0 0
      %1206 = vmatpush2.bf16.msra.mxu0 0
      %1207 = vmatprep.subr.bf16.mxu0 0
      %1208 = vmatpush2.bf16.msra.mxu0 0
      %1209 = vmatprep.subr.bf16.mxu0 0
      %1210 = vmatpush2.bf16.msra.mxu0 0
      %1211 = vmatprep.mubr.bf16.mxu0 0
      %1212 = vmatmul.mubr.bf16.gmra.mxu0 %v1174
      %v1213 = vpop.f32.mrf.mxu0
      %v1214 = vadd.f32 0.0, %v1213
      %v1215 = vpop.f32.mrf.mxu0
      %v1216 = vpop.f32.mrf.mxu0
      %v1217 = vadd.f32 0.0, %v1216
      %v1218 = vpop.f32.mrf.mxu0
      %1219 = vdwg.mxu0
      %v1220 = vadd.f32 %v1157, %v1214
      %v1221 = vadd.f32 %v1158, %v1217
      %v1222 = vld [vmem:[%s2] sm:$0x1]
      %v1224 = vlaneseq
      %v1225 = vshrl.u32 %v1224, 7
      %v1226 = vsub.s32 0, %v1225
      %v1227 = vrot.slane %v1222, %v1226
      %v1229 = vmul.f32 %v1220, %v1227
      %v1230 = vmul.f32 %v1221, %v1227
      %1231 = vadd.xlane.f32.xlu0 %v1229
      %v1232 = vpop.xlane.xlu0 %1231
      %1233 = vadd.xlane.f32.xlu0 %v1230
      %v1234 = vpop.xlane.xlu0 %1233
      %v1235 = vmul.f32 %v1232, 0.027777778
      %v1236 = vmul.f32 %v1234, 0.027777778
      %v1237 = vsub.f32 %v1220, %v1235
      %v1238 = vsub.f32 %v1221, %v1236
      %v1239 = vmul.f32 %v1237, %v1227
      %v1240 = vmul.f32 %v1238, %v1227
      %v1241 = vmul.f32 %v1239, %v1239
      %v1242 = vmul.f32 %v1240, %v1240
      %1243 = vadd.xlane.f32.xlu0 %v1241
      %v1244 = vpop.xlane.xlu0 %1243
      %1245 = vadd.xlane.f32.xlu0 %v1242
      %v1246 = vpop.xlane.xlu0 %1245
      %v1247 = vmul.f32 %v1244, 0.027777778
      %v1248 = vmul.f32 %v1246, 0.027777778
      %v1249 = vadd.f32 %v1247, 1e-05
      %v1250 = vadd.f32 %v1248, 1e-05
      %v1251 = vrsqrt.pop %v1249
      %v1252 = vrsqrt.pop %v1250
      %v1253 = vmul.f32 %v1237, %v1251
      %v1254 = vmul.f32 %v1238, %v1252
      %vm1255 = vcmp.ge.f32.partialorder %v1253, 0.0
      %vm1256 = vcmp.ge.f32.partialorder %v1254, 0.0
      %v1257 = vmul.f32 %v1253, 0.2
      %v1258 = vmul.f32 %v1254, 0.2
      %v1259 = vsel %vm1255, %v1253, %v1257
      %v1260 = vsel %vm1256, %v1254, %v1258
      %v1261 = vpack.c.bf16 %v1260, %v1259
      %v1263 = vunpack.c.l.b16 %v1261
      %v1264 = vunpack.c.h.b16 %v1261
      %v1265 = vpack.c.b16 %v1263, %v1263
      %v1266 = vpack.c.b16 %v1264, %v1264
      %1269 = vst [vmem:[%s214] sm:$0xf] %v1265
      %1270 = vst [vmem:[%s214 + $0x4] sm:$0xf] %v1266
      %s1271 = smul.u32 2, %s19
      %p1272 = scmp.lt.s32.totalorder %s18, 1
      %s1273 = scalar_select %p1272, %s18, 1
      %p1274 = scmp.lt.s32.totalorder %s1271, 1
      %s1275 = scalar_select %p1274, %s1271, 1
      %s1276 = smul.addr %s1273, 2
      %s1277 = sadd.s32 %s1275, %s1276
      %s1278 = smul.addr %s1277, 4
      %s1279 = scalar_lea.vmem %s3, %s1278
      // Predicated region
      $region33: #{discriminator_forward.4} parent=31 // pred_check
        %p1280 = pneg %p119
      $region34: #{discriminator_forward.4} parent=31 // pred_check_branch
        %1282 = sbr.rel (%p1280) target = $region36
      $region35: #{discriminator_forward.4} parent=31 // pred_region
        %s1283 = smul.u32 2, %s19
      $region36: #{discriminator_forward.4} parent=31 // pred_fallthru
        _
    $region32: #{discriminator_forward.4} parent=5 // pred_fallthru
      _
    %p1284 = scmp.le.s32.totalorder 2, %s9
    // Predicated region
    $region37: #{discriminator_forward.4} parent=5 // pred_check
      %p1285 = pneg %p1284
    $region38: #{discriminator_forward.4} parent=5 // pred_check_branch
      %1287 = sbr.rel (%p1285) target = $region40
    $region39: #{discriminator_forward.4} parent=5 // pred_region
      %s1288 = ssub.s32 %s9, 2
      // Predicated region
      $region41: #{discriminator_forward.4} parent=39 // pred_check
        %p1289 = pneg %p125
      $region42: #{discriminator_forward.4} parent=39 // pred_check_branch
        %1291 = sbr.rel (%p1289) target = $region44
      $region43: #{discriminator_forward.4} parent=39 // pred_region
        %s1292 = smul.u32 2, %s21
        %p1293 = scmp.lt.s32.totalorder %s20, 1
        %s1294 = scalar_select %p1293, %s20, 1
        %p1295 = scmp.lt.s32.totalorder %s1292, 1
        %s1296 = scalar_select %p1295, %s1292, 1
        %s1297 = smul.addr %s1294, 2
        %s1298 = sadd.s32 %s1296, %s1297
        %s1299 = smul.addr %s1298, 4
        %s1300 = scalar_lea.vmem %s3, %s1299
      $region44: #{discriminator_forward.4} parent=39 // pred_fallthru
        _
    $region40: #{discriminator_forward.4} parent=5 // pred_fallthru
      _
  $region6: #{discriminator_forward.4} parent=0 // loop_footer
    %s13 = sadd.s32 1, %s9
  $region7: #{discriminator_forward.4} parent=0 // loop_footer_branch
    %8 = sbr.rel target = $region3
  $region8: #{discriminator_forward.4} parent=0 // loop_exit
    _

</llo_original>
